<compile_context>
chip_gen: v6e
topology: v6e:2x2x1
jax: 0.10.0
libtpu: 0.0.40
codegen_flags: <defaults>
</compile_context>

<pallas_src>
import jax
import jax.numpy as jnp
from jax.experimental import pallas as pl
from jax.experimental.pallas import tpu as pltpu

KH, KW = 5, 5
PAD = 2


def dwconv_kernel(x_ref, w_ref, o_ref, xpad_ref, wb_ref):
    # x_ref:    (1, H, W, C)      full image, resident across the h grid axis
    # w_ref:    (KH*KW, 1, C)     per-tap depthwise filter rows (lane-dense C)
    # o_ref:    (1, TH, W, C)     output rows [h*TH, (h+1)*TH)
    # xpad_ref: (H+2P, W+2P, C)   persistent padded image scratch (f32)
    # wb_ref:   (KH*KW, W+2P, C)  persistent sublane-broadcast weights (f32)
    n = pl.program_id(0)
    h = pl.program_id(1)
    TH, W, C = o_ref.shape[1], o_ref.shape[2], o_ref.shape[3]
    H = x_ref.shape[1]
    Wp = W + 2 * PAD
    r0 = h * TH  # first output row of this grid step

    # ---- once per kernel call: zero pad borders, hoist weight broadcasts ----
    @pl.when(jnp.logical_and(n == 0, h == 0))
    def _():
        # Zero the whole padded scratch once.  The data region is overwritten
        # per image below, so the top/bottom halo rows and the trailing pad
        # columns stay zero for every n.
        xpad_ref[...] = jnp.zeros(xpad_ref.shape, xpad_ref.dtype)
        # One (1,C)->(Wp,C) sublane broadcast per tap, done once; the MAC loop
        # then only performs aligned weight loads (no per-tap re-broadcast).
        for tap in range(KH * KW):
            wb_ref[tap] = jnp.broadcast_to(w_ref[tap], (Wp, C))

    # ---- once per image: stage rows into the padded scratch (aligned) -------
    # Padded row layout: [x row (W) | zeros (2*PAD)].  The left SAME-pad zeros
    # are supplied by the circular roll below wrapping the right-hand zeros
    # around, so this store starts at sublane 0 (no relayout shuffles).
    @pl.when(h == 0)
    def _():
        @pl.loop(0, H)
        def _(i):
            xpad_ref[i + PAD, pl.ds(0, W), :] = x_ref[0, i, :, :]

    # ---- 25-tap depthwise MAC, two output rows per iteration ----------------
    # For output row r, tap (kh, kw) contributes
    #     roll(xpad[r + kh], shift=(PAD - kw) % Wp, axis=0)[w] * W[kh, kw]
    # for w in [0, W).  Rolls are static sublane rotations (XLU slot); row and
    # weight loads are aligned full-width loads; adjacent output rows share
    # 4 of their 6 input rows and all of their rolled variants.
    n_pairs = TH // 2

    @pl.loop(0, n_pairs)
    def _(p):
        t_loc = 2 * p                  # first output row of this pair (tile coords)
        t_glob = r0 + t_loc            # xpad row of tap kh=0 for that output row
        acc0 = None
        acc1 = None
        for r_off in range(KH + 1):    # the 6 input rows feeding this pair
            row = xpad_ref[t_glob + r_off]          # (Wp, C) aligned full load
            for kw in range(KW):
                shift = (PAD - kw) % Wp
                rolled = row if shift == 0 else pltpu.roll(row, shift=shift, axis=0)
                if r_off < KH:         # -> output row t_loc,   kh = r_off
                    prod0 = rolled * wb_ref[r_off * KW + kw]
                    acc0 = prod0 if acc0 is None else acc0 + prod0
                if r_off >= 1:         # -> output row t_loc+1, kh = r_off - 1
                    prod1 = rolled * wb_ref[(r_off - 1) * KW + kw]
                    acc1 = prod1 if acc1 is None else acc1 + prod1
        o_ref[0, t_loc, :, :] = acc0[:W, :].astype(o_ref.dtype)
        o_ref[0, t_loc + 1, :, :] = acc1[:W, :].astype(o_ref.dtype)


def depthwise_conv2d(x_nchw, w_oihw, *, h_tiles=2):
    """Depthwise conv: x (N,C,H,W), w (C,1,KH,KW), stride 1, pad 2, no bias."""
    N, C, H, W = x_nchw.shape
    assert w_oihw.shape == (C, 1, KH, KW)
    assert H % h_tiles == 0
    TH = H // h_tiles
    assert TH % 2 == 0, "tile height must be even (kernel emits row pairs)"

    Hp, Wp = H + 2 * PAD, W + 2 * PAD

    # NCHW -> NHWC so C=480 maps onto the 128-lane axis (layout glue only).
    # No jnp.pad: padding lives inside the kernel's persistent scratch.
    x_nhwc = jnp.transpose(x_nchw, (0, 2, 3, 1))
    # (C,1,KH,KW) -> (KH*KW, 1, C): tap-major, lane-dense in C.
    w_taps = jnp.transpose(w_oihw[:, 0, :, :], (1, 2, 0)).reshape(KH * KW, 1, C)

    out_nhwc = pl.pallas_call(
        dwconv_kernel,
        out_shape=jax.ShapeDtypeStruct((N, H, W, C), x_nchw.dtype),
        grid_spec=pltpu.PrefetchScalarGridSpec(
            num_scalar_prefetch=0,
            grid=(N, h_tiles),
            in_specs=[
                # Full image block, constant index over h: fetched once per n.
                pl.BlockSpec((1, H, W, C), lambda n, h: (n, 0, 0, 0)),
                pl.BlockSpec((KH * KW, 1, C), lambda n, h: (0, 0, 0)),
            ],
            out_specs=pl.BlockSpec((1, TH, W, C), lambda n, h: (n, h, 0, 0)),
            scratch_shapes=[
                pltpu.VMEM((Hp, Wp, C), jnp.float32),       # padded image
                pltpu.VMEM((KH * KW, Wp, C), jnp.float32),  # broadcast weights
            ],
        ),
        compiler_params=pltpu.CompilerParams(
            # Scratch (padded image / broadcast weights) persists across grid
            # steps, so both axes must run in order on a single core.
            # TODO(synk): per-core-safe re-init + CORE_PARALLEL on the h axis
            # would unlock v7x's second TensorCore (~2x on this VPU-bound op).
            dimension_semantics=("arbitrary", "arbitrary"),
            vmem_limit_bytes=32 * 1024 * 1024,
        ),
    )(x_nhwc, w_taps)

    # NHWC -> NCHW to match the PyTorch module's output convention.
    return jnp.transpose(out_nhwc, (0, 3, 1, 2))


if __name__ == "__main__":
    key = jax.random.PRNGKey(0)
    kx, kw_key = jax.random.split(key)

    N, C, H, W = 1, 480, 28, 28  # shapes implied by the module's forward
    x = jax.random.normal(kx, (N, C, H, W), dtype=jnp.float32)
    w = jax.random.normal(kw_key, (C, 1, KH, KW), dtype=jnp.float32) * 0.1

    out = jax.block_until_ready(depthwise_conv2d(x, w))

    # Reference: XLA grouped conv with the same semantics as the torch module.
    ref = jax.lax.conv_general_dilated(
        x, w, window_strides=(1, 1), padding=((PAD, PAD), (PAD, PAD)),
        dimension_numbers=("NCHW", "OIHW", "NCHW"),
        feature_group_count=C)

    assert out.shape == (N, C, H, W)
    assert jnp.allclose(out, ref, atol=1e-4, rtol=1e-4)
    print("KERNEL_OK")
</pallas_src>

<mosaic_0001>
module attributes {stable_mosaic.version = 11 : i64} {
  func.func @dwconv_kernel(%arg0: i32, %arg1: i32, %arg2: memref<1x28x28x480xf32, #tpu.memory_space<vmem>>, %arg3: memref<25x1x480xf32, #tpu.memory_space<vmem>>, %arg4: memref<1x14x28x480xf32, #tpu.memory_space<vmem>>, %arg5: memref<32x32x480xf32, #tpu.memory_space<vmem>>, %arg6: memref<25x32x480xf32, #tpu.memory_space<vmem>>) attributes {dimension_semantics = [#tpu.dimension_semantics<arbitrary>, #tpu.dimension_semantics<arbitrary>], iteration_bounds = array<i64: 1, 2>, scalar_prefetch = 0 : i64, scratch_operands = 2 : i64, tpu.core_type = #tpu.core_type<tc>, window_params = [{transform_indices = @transform_0, window_bounds = array<i64: 1, 28, 28, 480>}, {pipeline_mode = #tpu.pipeline_mode<synchronous>, transform_indices = @transform_1, window_bounds = array<i64: 25, 1, 480>}, {transform_indices = @transform_2, window_bounds = array<i64: 1, 14, 28, 480>}]} {
    %c14_i32 = arith.constant 14 : i32
    %0 = arith.muli %arg1, %c14_i32 : i32
    %c0_i32 = arith.constant 0 : i32
    %1 = arith.cmpi eq, %arg0, %c0_i32 : i32
    %c0_i32_0 = arith.constant 0 : i32
    %2 = arith.cmpi eq, %arg1, %c0_i32_0 : i32
    %3 = arith.andi %1, %2 : i1
    %4 = arith.extui %3 : i1 to i32
    %c0_i32_1 = arith.constant 0 : i32
    %5 = arith.cmpi ne, %4, %c0_i32_1 : i32
    scf.if %5 {
      %cst = arith.constant 0.000000e+00 : f32
      %10 = vector.broadcast %cst : f32 to vector<32x32x480xf32>
      %c0 = arith.constant 0 : index
      %c0_6 = arith.constant 0 : index
      %c0_7 = arith.constant 0 : index
      %11 = vector.load %arg5[%c0, %c0_6, %c0_7] : memref<32x32x480xf32, #tpu.memory_space<vmem>>, vector<32x32x480xf32>
      tpu.vector_store %arg5[%c0, %c0_6, %c0_7], %10 {strides = array<i32>} : memref<32x32x480xf32, #tpu.memory_space<vmem>>, vector<32x32x480xf32>,
      %c0_8 = arith.constant 0 : index
      %c0_9 = arith.constant 0 : index
      %c0_10 = arith.constant 0 : index
      %12 = vector.load %arg3[%c0_8, %c0_9, %c0_10] : memref<25x1x480xf32, #tpu.memory_space<vmem>>, vector<1x1x480xf32>
      %13 = vector.shape_cast %12 : vector<1x1x480xf32> to vector<1x480xf32>
      %14 = vector.shape_cast %13 : vector<1x480xf32> to vector<1x480xf32>
      %15 = vector.broadcast %14 : vector<1x480xf32> to vector<32x480xf32>
      %c0_11 = arith.constant 0 : index
      %c0_12 = arith.constant 0 : index
      %c0_13 = arith.constant 0 : index
      %16 = vector.load %arg6[%c0_11, %c0_12, %c0_13] : memref<25x32x480xf32, #tpu.memory_space<vmem>>, vector<1x32x480xf32>
      %17 = vector.shape_cast %16 : vector<1x32x480xf32> to vector<32x480xf32>
      %18 = vector.shape_cast %15 : vector<32x480xf32> to vector<1x32x480xf32>
      tpu.vector_store %arg6[%c0_11, %c0_12, %c0_13], %18 {strides = array<i32>} : memref<25x32x480xf32, #tpu.memory_space<vmem>>, vector<1x32x480xf32>,
      %c1 = arith.constant 1 : index
      %c0_14 = arith.constant 0 : index
      %c0_15 = arith.constant 0 : index
      %19 = vector.load %arg3[%c1, %c0_14, %c0_15] : memref<25x1x480xf32, #tpu.memory_space<vmem>>, vector<1x1x480xf32>
      %20 = vector.shape_cast %19 : vector<1x1x480xf32> to vector<1x480xf32>
      %21 = vector.shape_cast %20 : vector<1x480xf32> to vector<1x480xf32>
      %22 = vector.broadcast %21 : vector<1x480xf32> to vector<32x480xf32>
      %c1_16 = arith.constant 1 : index
      %c0_17 = arith.constant 0 : index
      %c0_18 = arith.constant 0 : index
      %23 = vector.load %arg6[%c1_16, %c0_17, %c0_18] : memref<25x32x480xf32, #tpu.memory_space<vmem>>, vector<1x32x480xf32>
      %24 = vector.shape_cast %23 : vector<1x32x480xf32> to vector<32x480xf32>
      %25 = vector.shape_cast %22 : vector<32x480xf32> to vector<1x32x480xf32>
      tpu.vector_store %arg6[%c1_16, %c0_17, %c0_18], %25 {strides = array<i32>} : memref<25x32x480xf32, #tpu.memory_space<vmem>>, vector<1x32x480xf32>,
      %c2 = arith.constant 2 : index
      %c0_19 = arith.constant 0 : index
      %c0_20 = arith.constant 0 : index
      %26 = vector.load %arg3[%c2, %c0_19, %c0_20] : memref<25x1x480xf32, #tpu.memory_space<vmem>>, vector<1x1x480xf32>
      %27 = vector.shape_cast %26 : vector<1x1x480xf32> to vector<1x480xf32>
      %28 = vector.shape_cast %27 : vector<1x480xf32> to vector<1x480xf32>
      %29 = vector.broadcast %28 : vector<1x480xf32> to vector<32x480xf32>
      %c2_21 = arith.constant 2 : index
      %c0_22 = arith.constant 0 : index
      %c0_23 = arith.constant 0 : index
      %30 = vector.load %arg6[%c2_21, %c0_22, %c0_23] : memref<25x32x480xf32, #tpu.memory_space<vmem>>, vector<1x32x480xf32>
      %31 = vector.shape_cast %30 : vector<1x32x480xf32> to vector<32x480xf32>
      %32 = vector.shape_cast %29 : vector<32x480xf32> to vector<1x32x480xf32>
      tpu.vector_store %arg6[%c2_21, %c0_22, %c0_23], %32 {strides = array<i32>} : memref<25x32x480xf32, #tpu.memory_space<vmem>>, vector<1x32x480xf32>,
      %c3 = arith.constant 3 : index
      %c0_24 = arith.constant 0 : index
      %c0_25 = arith.constant 0 : index
      %33 = vector.load %arg3[%c3, %c0_24, %c0_25] : memref<25x1x480xf32, #tpu.memory_space<vmem>>, vector<1x1x480xf32>
      %34 = vector.shape_cast %33 : vector<1x1x480xf32> to vector<1x480xf32>
      %35 = vector.shape_cast %34 : vector<1x480xf32> to vector<1x480xf32>
      %36 = vector.broadcast %35 : vector<1x480xf32> to vector<32x480xf32>
      %c3_26 = arith.constant 3 : index
      %c0_27 = arith.constant 0 : index
      %c0_28 = arith.constant 0 : index
      %37 = vector.load %arg6[%c3_26, %c0_27, %c0_28] : memref<25x32x480xf32, #tpu.memory_space<vmem>>, vector<1x32x480xf32>
      %38 = vector.shape_cast %37 : vector<1x32x480xf32> to vector<32x480xf32>
      %39 = vector.shape_cast %36 : vector<32x480xf32> to vector<1x32x480xf32>
      tpu.vector_store %arg6[%c3_26, %c0_27, %c0_28], %39 {strides = array<i32>} : memref<25x32x480xf32, #tpu.memory_space<vmem>>, vector<1x32x480xf32>,
      %c4 = arith.constant 4 : index
      %c0_29 = arith.constant 0 : index
      %c0_30 = arith.constant 0 : index
      %40 = vector.load %arg3[%c4, %c0_29, %c0_30] : memref<25x1x480xf32, #tpu.memory_space<vmem>>, vector<1x1x480xf32>
      %41 = vector.shape_cast %40 : vector<1x1x480xf32> to vector<1x480xf32>
      %42 = vector.shape_cast %41 : vector<1x480xf32> to vector<1x480xf32>
      %43 = vector.broadcast %42 : vector<1x480xf32> to vector<32x480xf32>
      %c4_31 = arith.constant 4 : index
      %c0_32 = arith.constant 0 : index
      %c0_33 = arith.constant 0 : index
      %44 = vector.load %arg6[%c4_31, %c0_32, %c0_33] : memref<25x32x480xf32, #tpu.memory_space<vmem>>, vector<1x32x480xf32>
      %45 = vector.shape_cast %44 : vector<1x32x480xf32> to vector<32x480xf32>
      %46 = vector.shape_cast %43 : vector<32x480xf32> to vector<1x32x480xf32>
      tpu.vector_store %arg6[%c4_31, %c0_32, %c0_33], %46 {strides = array<i32>} : memref<25x32x480xf32, #tpu.memory_space<vmem>>, vector<1x32x480xf32>,
      %c5 = arith.constant 5 : index
      %c0_34 = arith.constant 0 : index
      %c0_35 = arith.constant 0 : index
      %47 = vector.load %arg3[%c5, %c0_34, %c0_35] : memref<25x1x480xf32, #tpu.memory_space<vmem>>, vector<1x1x480xf32>
      %48 = vector.shape_cast %47 : vector<1x1x480xf32> to vector<1x480xf32>
      %49 = vector.shape_cast %48 : vector<1x480xf32> to vector<1x480xf32>
      %50 = vector.broadcast %49 : vector<1x480xf32> to vector<32x480xf32>
      %c5_36 = arith.constant 5 : index
      %c0_37 = arith.constant 0 : index
      %c0_38 = arith.constant 0 : index
      %51 = vector.load %arg6[%c5_36, %c0_37, %c0_38] : memref<25x32x480xf32, #tpu.memory_space<vmem>>, vector<1x32x480xf32>
      %52 = vector.shape_cast %51 : vector<1x32x480xf32> to vector<32x480xf32>
      %53 = vector.shape_cast %50 : vector<32x480xf32> to vector<1x32x480xf32>
      tpu.vector_store %arg6[%c5_36, %c0_37, %c0_38], %53 {strides = array<i32>} : memref<25x32x480xf32, #tpu.memory_space<vmem>>, vector<1x32x480xf32>,
      %c6 = arith.constant 6 : index
      %c0_39 = arith.constant 0 : index
      %c0_40 = arith.constant 0 : index
      %54 = vector.load %arg3[%c6, %c0_39, %c0_40] : memref<25x1x480xf32, #tpu.memory_space<vmem>>, vector<1x1x480xf32>
      %55 = vector.shape_cast %54 : vector<1x1x480xf32> to vector<1x480xf32>
      %56 = vector.shape_cast %55 : vector<1x480xf32> to vector<1x480xf32>
      %57 = vector.broadcast %56 : vector<1x480xf32> to vector<32x480xf32>
      %c6_41 = arith.constant 6 : index
      %c0_42 = arith.constant 0 : index
      %c0_43 = arith.constant 0 : index
      %58 = vector.load %arg6[%c6_41, %c0_42, %c0_43] : memref<25x32x480xf32, #tpu.memory_space<vmem>>, vector<1x32x480xf32>
      %59 = vector.shape_cast %58 : vector<1x32x480xf32> to vector<32x480xf32>
      %60 = vector.shape_cast %57 : vector<32x480xf32> to vector<1x32x480xf32>
      tpu.vector_store %arg6[%c6_41, %c0_42, %c0_43], %60 {strides = array<i32>} : memref<25x32x480xf32, #tpu.memory_space<vmem>>, vector<1x32x480xf32>,
      %c7 = arith.constant 7 : index
      %c0_44 = arith.constant 0 : index
      %c0_45 = arith.constant 0 : index
      %61 = vector.load %arg3[%c7, %c0_44, %c0_45] : memref<25x1x480xf32, #tpu.memory_space<vmem>>, vector<1x1x480xf32>
      %62 = vector.shape_cast %61 : vector<1x1x480xf32> to vector<1x480xf32>
      %63 = vector.shape_cast %62 : vector<1x480xf32> to vector<1x480xf32>
      %64 = vector.broadcast %63 : vector<1x480xf32> to vector<32x480xf32>
      %c7_46 = arith.constant 7 : index
      %c0_47 = arith.constant 0 : index
      %c0_48 = arith.constant 0 : index
      %65 = vector.load %arg6[%c7_46, %c0_47, %c0_48] : memref<25x32x480xf32, #tpu.memory_space<vmem>>, vector<1x32x480xf32>
      %66 = vector.shape_cast %65 : vector<1x32x480xf32> to vector<32x480xf32>
      %67 = vector.shape_cast %64 : vector<32x480xf32> to vector<1x32x480xf32>
      tpu.vector_store %arg6[%c7_46, %c0_47, %c0_48], %67 {strides = array<i32>} : memref<25x32x480xf32, #tpu.memory_space<vmem>>, vector<1x32x480xf32>,
      %c8 = arith.constant 8 : index
      %c0_49 = arith.constant 0 : index
      %c0_50 = arith.constant 0 : index
      %68 = vector.load %arg3[%c8, %c0_49, %c0_50] : memref<25x1x480xf32, #tpu.memory_space<vmem>>, vector<1x1x480xf32>
      %69 = vector.shape_cast %68 : vector<1x1x480xf32> to vector<1x480xf32>
      %70 = vector.shape_cast %69 : vector<1x480xf32> to vector<1x480xf32>
      %71 = vector.broadcast %70 : vector<1x480xf32> to vector<32x480xf32>
      %c8_51 = arith.constant 8 : index
      %c0_52 = arith.constant 0 : index
      %c0_53 = arith.constant 0 : index
      %72 = vector.load %arg6[%c8_51, %c0_52, %c0_53] : memref<25x32x480xf32, #tpu.memory_space<vmem>>, vector<1x32x480xf32>
      %73 = vector.shape_cast %72 : vector<1x32x480xf32> to vector<32x480xf32>
      %74 = vector.shape_cast %71 : vector<32x480xf32> to vector<1x32x480xf32>
      tpu.vector_store %arg6[%c8_51, %c0_52, %c0_53], %74 {strides = array<i32>} : memref<25x32x480xf32, #tpu.memory_space<vmem>>, vector<1x32x480xf32>,
      %c9 = arith.constant 9 : index
      %c0_54 = arith.constant 0 : index
      %c0_55 = arith.constant 0 : index
      %75 = vector.load %arg3[%c9, %c0_54, %c0_55] : memref<25x1x480xf32, #tpu.memory_space<vmem>>, vector<1x1x480xf32>
      %76 = vector.shape_cast %75 : vector<1x1x480xf32> to vector<1x480xf32>
      %77 = vector.shape_cast %76 : vector<1x480xf32> to vector<1x480xf32>
      %78 = vector.broadcast %77 : vector<1x480xf32> to vector<32x480xf32>
      %c9_56 = arith.constant 9 : index
      %c0_57 = arith.constant 0 : index
      %c0_58 = arith.constant 0 : index
      %79 = vector.load %arg6[%c9_56, %c0_57, %c0_58] : memref<25x32x480xf32, #tpu.memory_space<vmem>>, vector<1x32x480xf32>
      %80 = vector.shape_cast %79 : vector<1x32x480xf32> to vector<32x480xf32>
      %81 = vector.shape_cast %78 : vector<32x480xf32> to vector<1x32x480xf32>
      tpu.vector_store %arg6[%c9_56, %c0_57, %c0_58], %81 {strides = array<i32>} : memref<25x32x480xf32, #tpu.memory_space<vmem>>, vector<1x32x480xf32>,
      %c10 = arith.constant 10 : index
      %c0_59 = arith.constant 0 : index
      %c0_60 = arith.constant 0 : index
      %82 = vector.load %arg3[%c10, %c0_59, %c0_60] : memref<25x1x480xf32, #tpu.memory_space<vmem>>, vector<1x1x480xf32>
      %83 = vector.shape_cast %82 : vector<1x1x480xf32> to vector<1x480xf32>
      %84 = vector.shape_cast %83 : vector<1x480xf32> to vector<1x480xf32>
      %85 = vector.broadcast %84 : vector<1x480xf32> to vector<32x480xf32>
      %c10_61 = arith.constant 10 : index
      %c0_62 = arith.constant 0 : index
      %c0_63 = arith.constant 0 : index
      %86 = vector.load %arg6[%c10_61, %c0_62, %c0_63] : memref<25x32x480xf32, #tpu.memory_space<vmem>>, vector<1x32x480xf32>
      %87 = vector.shape_cast %86 : vector<1x32x480xf32> to vector<32x480xf32>
      %88 = vector.shape_cast %85 : vector<32x480xf32> to vector<1x32x480xf32>
      tpu.vector_store %arg6[%c10_61, %c0_62, %c0_63], %88 {strides = array<i32>} : memref<25x32x480xf32, #tpu.memory_space<vmem>>, vector<1x32x480xf32>,
      %c11 = arith.constant 11 : index
      %c0_64 = arith.constant 0 : index
      %c0_65 = arith.constant 0 : index
      %89 = vector.load %arg3[%c11, %c0_64, %c0_65] : memref<25x1x480xf32, #tpu.memory_space<vmem>>, vector<1x1x480xf32>
      %90 = vector.shape_cast %89 : vector<1x1x480xf32> to vector<1x480xf32>
      %91 = vector.shape_cast %90 : vector<1x480xf32> to vector<1x480xf32>
      %92 = vector.broadcast %91 : vector<1x480xf32> to vector<32x480xf32>
      %c11_66 = arith.constant 11 : index
      %c0_67 = arith.constant 0 : index
      %c0_68 = arith.constant 0 : index
      %93 = vector.load %arg6[%c11_66, %c0_67, %c0_68] : memref<25x32x480xf32, #tpu.memory_space<vmem>>, vector<1x32x480xf32>
      %94 = vector.shape_cast %93 : vector<1x32x480xf32> to vector<32x480xf32>
      %95 = vector.shape_cast %92 : vector<32x480xf32> to vector<1x32x480xf32>
      tpu.vector_store %arg6[%c11_66, %c0_67, %c0_68], %95 {strides = array<i32>} : memref<25x32x480xf32, #tpu.memory_space<vmem>>, vector<1x32x480xf32>,
      %c12 = arith.constant 12 : index
      %c0_69 = arith.constant 0 : index
      %c0_70 = arith.constant 0 : index
      %96 = vector.load %arg3[%c12, %c0_69, %c0_70] : memref<25x1x480xf32, #tpu.memory_space<vmem>>, vector<1x1x480xf32>
      %97 = vector.shape_cast %96 : vector<1x1x480xf32> to vector<1x480xf32>
      %98 = vector.shape_cast %97 : vector<1x480xf32> to vector<1x480xf32>
      %99 = vector.broadcast %98 : vector<1x480xf32> to vector<32x480xf32>
      %c12_71 = arith.constant 12 : index
      %c0_72 = arith.constant 0 : index
      %c0_73 = arith.constant 0 : index
      %100 = vector.load %arg6[%c12_71, %c0_72, %c0_73] : memref<25x32x480xf32, #tpu.memory_space<vmem>>, vector<1x32x480xf32>
      %101 = vector.shape_cast %100 : vector<1x32x480xf32> to vector<32x480xf32>
      %102 = vector.shape_cast %99 : vector<32x480xf32> to vector<1x32x480xf32>
      tpu.vector_store %arg6[%c12_71, %c0_72, %c0_73], %102 {strides = array<i32>} : memref<25x32x480xf32, #tpu.memory_space<vmem>>, vector<1x32x480xf32>,
      %c13 = arith.constant 13 : index
      %c0_74 = arith.constant 0 : index
      %c0_75 = arith.constant 0 : index
      %103 = vector.load %arg3[%c13, %c0_74, %c0_75] : memref<25x1x480xf32, #tpu.memory_space<vmem>>, vector<1x1x480xf32>
      %104 = vector.shape_cast %103 : vector<1x1x480xf32> to vector<1x480xf32>
      %105 = vector.shape_cast %104 : vector<1x480xf32> to vector<1x480xf32>
      %106 = vector.broadcast %105 : vector<1x480xf32> to vector<32x480xf32>
      %c13_76 = arith.constant 13 : index
      %c0_77 = arith.constant 0 : index
      %c0_78 = arith.constant 0 : index
      %107 = vector.load %arg6[%c13_76, %c0_77, %c0_78] : memref<25x32x480xf32, #tpu.memory_space<vmem>>, vector<1x32x480xf32>
      %108 = vector.shape_cast %107 : vector<1x32x480xf32> to vector<32x480xf32>
      %109 = vector.shape_cast %106 : vector<32x480xf32> to vector<1x32x480xf32>
      tpu.vector_store %arg6[%c13_76, %c0_77, %c0_78], %109 {strides = array<i32>} : memref<25x32x480xf32, #tpu.memory_space<vmem>>, vector<1x32x480xf32>,
      %c14 = arith.constant 14 : index
      %c0_79 = arith.constant 0 : index
      %c0_80 = arith.constant 0 : index
      %110 = vector.load %arg3[%c14, %c0_79, %c0_80] : memref<25x1x480xf32, #tpu.memory_space<vmem>>, vector<1x1x480xf32>
      %111 = vector.shape_cast %110 : vector<1x1x480xf32> to vector<1x480xf32>
      %112 = vector.shape_cast %111 : vector<1x480xf32> to vector<1x480xf32>
      %113 = vector.broadcast %112 : vector<1x480xf32> to vector<32x480xf32>
      %c14_81 = arith.constant 14 : index
      %c0_82 = arith.constant 0 : index
      %c0_83 = arith.constant 0 : index
      %114 = vector.load %arg6[%c14_81, %c0_82, %c0_83] : memref<25x32x480xf32, #tpu.memory_space<vmem>>, vector<1x32x480xf32>
      %115 = vector.shape_cast %114 : vector<1x32x480xf32> to vector<32x480xf32>
      %116 = vector.shape_cast %113 : vector<32x480xf32> to vector<1x32x480xf32>
      tpu.vector_store %arg6[%c14_81, %c0_82, %c0_83], %116 {strides = array<i32>} : memref<25x32x480xf32, #tpu.memory_space<vmem>>, vector<1x32x480xf32>,
      %c15 = arith.constant 15 : index
      %c0_84 = arith.constant 0 : index
      %c0_85 = arith.constant 0 : index
      %117 = vector.load %arg3[%c15, %c0_84, %c0_85] : memref<25x1x480xf32, #tpu.memory_space<vmem>>, vector<1x1x480xf32>
      %118 = vector.shape_cast %117 : vector<1x1x480xf32> to vector<1x480xf32>
      %119 = vector.shape_cast %118 : vector<1x480xf32> to vector<1x480xf32>
      %120 = vector.broadcast %119 : vector<1x480xf32> to vector<32x480xf32>
      %c15_86 = arith.constant 15 : index
      %c0_87 = arith.constant 0 : index
      %c0_88 = arith.constant 0 : index
      %121 = vector.load %arg6[%c15_86, %c0_87, %c0_88] : memref<25x32x480xf32, #tpu.memory_space<vmem>>, vector<1x32x480xf32>
      %122 = vector.shape_cast %121 : vector<1x32x480xf32> to vector<32x480xf32>
      %123 = vector.shape_cast %120 : vector<32x480xf32> to vector<1x32x480xf32>
      tpu.vector_store %arg6[%c15_86, %c0_87, %c0_88], %123 {strides = array<i32>} : memref<25x32x480xf32, #tpu.memory_space<vmem>>, vector<1x32x480xf32>,
      %c16 = arith.constant 16 : index
      %c0_89 = arith.constant 0 : index
      %c0_90 = arith.constant 0 : index
      %124 = vector.load %arg3[%c16, %c0_89, %c0_90] : memref<25x1x480xf32, #tpu.memory_space<vmem>>, vector<1x1x480xf32>
      %125 = vector.shape_cast %124 : vector<1x1x480xf32> to vector<1x480xf32>
      %126 = vector.shape_cast %125 : vector<1x480xf32> to vector<1x480xf32>
      %127 = vector.broadcast %126 : vector<1x480xf32> to vector<32x480xf32>
      %c16_91 = arith.constant 16 : index
      %c0_92 = arith.constant 0 : index
      %c0_93 = arith.constant 0 : index
      %128 = vector.load %arg6[%c16_91, %c0_92, %c0_93] : memref<25x32x480xf32, #tpu.memory_space<vmem>>, vector<1x32x480xf32>
      %129 = vector.shape_cast %128 : vector<1x32x480xf32> to vector<32x480xf32>
      %130 = vector.shape_cast %127 : vector<32x480xf32> to vector<1x32x480xf32>
      tpu.vector_store %arg6[%c16_91, %c0_92, %c0_93], %130 {strides = array<i32>} : memref<25x32x480xf32, #tpu.memory_space<vmem>>, vector<1x32x480xf32>,
      %c17 = arith.constant 17 : index
      %c0_94 = arith.constant 0 : index
      %c0_95 = arith.constant 0 : index
      %131 = vector.load %arg3[%c17, %c0_94, %c0_95] : memref<25x1x480xf32, #tpu.memory_space<vmem>>, vector<1x1x480xf32>
      %132 = vector.shape_cast %131 : vector<1x1x480xf32> to vector<1x480xf32>
      %133 = vector.shape_cast %132 : vector<1x480xf32> to vector<1x480xf32>
      %134 = vector.broadcast %133 : vector<1x480xf32> to vector<32x480xf32>
      %c17_96 = arith.constant 17 : index
      %c0_97 = arith.constant 0 : index
      %c0_98 = arith.constant 0 : index
      %135 = vector.load %arg6[%c17_96, %c0_97, %c0_98] : memref<25x32x480xf32, #tpu.memory_space<vmem>>, vector<1x32x480xf32>
      %136 = vector.shape_cast %135 : vector<1x32x480xf32> to vector<32x480xf32>
      %137 = vector.shape_cast %134 : vector<32x480xf32> to vector<1x32x480xf32>
      tpu.vector_store %arg6[%c17_96, %c0_97, %c0_98], %137 {strides = array<i32>} : memref<25x32x480xf32, #tpu.memory_space<vmem>>, vector<1x32x480xf32>,
      %c18 = arith.constant 18 : index
      %c0_99 = arith.constant 0 : index
      %c0_100 = arith.constant 0 : index
      %138 = vector.load %arg3[%c18, %c0_99, %c0_100] : memref<25x1x480xf32, #tpu.memory_space<vmem>>, vector<1x1x480xf32>
      %139 = vector.shape_cast %138 : vector<1x1x480xf32> to vector<1x480xf32>
      %140 = vector.shape_cast %139 : vector<1x480xf32> to vector<1x480xf32>
      %141 = vector.broadcast %140 : vector<1x480xf32> to vector<32x480xf32>
      %c18_101 = arith.constant 18 : index
      %c0_102 = arith.constant 0 : index
      %c0_103 = arith.constant 0 : index
      %142 = vector.load %arg6[%c18_101, %c0_102, %c0_103] : memref<25x32x480xf32, #tpu.memory_space<vmem>>, vector<1x32x480xf32>
      %143 = vector.shape_cast %142 : vector<1x32x480xf32> to vector<32x480xf32>
      %144 = vector.shape_cast %141 : vector<32x480xf32> to vector<1x32x480xf32>
      tpu.vector_store %arg6[%c18_101, %c0_102, %c0_103], %144 {strides = array<i32>} : memref<25x32x480xf32, #tpu.memory_space<vmem>>, vector<1x32x480xf32>,
      %c19 = arith.constant 19 : index
      %c0_104 = arith.constant 0 : index
      %c0_105 = arith.constant 0 : index
      %145 = vector.load %arg3[%c19, %c0_104, %c0_105] : memref<25x1x480xf32, #tpu.memory_space<vmem>>, vector<1x1x480xf32>
      %146 = vector.shape_cast %145 : vector<1x1x480xf32> to vector<1x480xf32>
      %147 = vector.shape_cast %146 : vector<1x480xf32> to vector<1x480xf32>
      %148 = vector.broadcast %147 : vector<1x480xf32> to vector<32x480xf32>
      %c19_106 = arith.constant 19 : index
      %c0_107 = arith.constant 0 : index
      %c0_108 = arith.constant 0 : index
      %149 = vector.load %arg6[%c19_106, %c0_107, %c0_108] : memref<25x32x480xf32, #tpu.memory_space<vmem>>, vector<1x32x480xf32>
      %150 = vector.shape_cast %149 : vector<1x32x480xf32> to vector<32x480xf32>
      %151 = vector.shape_cast %148 : vector<32x480xf32> to vector<1x32x480xf32>
      tpu.vector_store %arg6[%c19_106, %c0_107, %c0_108], %151 {strides = array<i32>} : memref<25x32x480xf32, #tpu.memory_space<vmem>>, vector<1x32x480xf32>,
      %c20 = arith.constant 20 : index
      %c0_109 = arith.constant 0 : index
      %c0_110 = arith.constant 0 : index
      %152 = vector.load %arg3[%c20, %c0_109, %c0_110] : memref<25x1x480xf32, #tpu.memory_space<vmem>>, vector<1x1x480xf32>
      %153 = vector.shape_cast %152 : vector<1x1x480xf32> to vector<1x480xf32>
      %154 = vector.shape_cast %153 : vector<1x480xf32> to vector<1x480xf32>
      %155 = vector.broadcast %154 : vector<1x480xf32> to vector<32x480xf32>
      %c20_111 = arith.constant 20 : index
      %c0_112 = arith.constant 0 : index
      %c0_113 = arith.constant 0 : index
      %156 = vector.load %arg6[%c20_111, %c0_112, %c0_113] : memref<25x32x480xf32, #tpu.memory_space<vmem>>, vector<1x32x480xf32>
      %157 = vector.shape_cast %156 : vector<1x32x480xf32> to vector<32x480xf32>
      %158 = vector.shape_cast %155 : vector<32x480xf32> to vector<1x32x480xf32>
      tpu.vector_store %arg6[%c20_111, %c0_112, %c0_113], %158 {strides = array<i32>} : memref<25x32x480xf32, #tpu.memory_space<vmem>>, vector<1x32x480xf32>,
      %c21 = arith.constant 21 : index
      %c0_114 = arith.constant 0 : index
      %c0_115 = arith.constant 0 : index
      %159 = vector.load %arg3[%c21, %c0_114, %c0_115] : memref<25x1x480xf32, #tpu.memory_space<vmem>>, vector<1x1x480xf32>
      %160 = vector.shape_cast %159 : vector<1x1x480xf32> to vector<1x480xf32>
      %161 = vector.shape_cast %160 : vector<1x480xf32> to vector<1x480xf32>
      %162 = vector.broadcast %161 : vector<1x480xf32> to vector<32x480xf32>
      %c21_116 = arith.constant 21 : index
      %c0_117 = arith.constant 0 : index
      %c0_118 = arith.constant 0 : index
      %163 = vector.load %arg6[%c21_116, %c0_117, %c0_118] : memref<25x32x480xf32, #tpu.memory_space<vmem>>, vector<1x32x480xf32>
      %164 = vector.shape_cast %163 : vector<1x32x480xf32> to vector<32x480xf32>
      %165 = vector.shape_cast %162 : vector<32x480xf32> to vector<1x32x480xf32>
      tpu.vector_store %arg6[%c21_116, %c0_117, %c0_118], %165 {strides = array<i32>} : memref<25x32x480xf32, #tpu.memory_space<vmem>>, vector<1x32x480xf32>,
      %c22 = arith.constant 22 : index
      %c0_119 = arith.constant 0 : index
      %c0_120 = arith.constant 0 : index
      %166 = vector.load %arg3[%c22, %c0_119, %c0_120] : memref<25x1x480xf32, #tpu.memory_space<vmem>>, vector<1x1x480xf32>
      %167 = vector.shape_cast %166 : vector<1x1x480xf32> to vector<1x480xf32>
      %168 = vector.shape_cast %167 : vector<1x480xf32> to vector<1x480xf32>
      %169 = vector.broadcast %168 : vector<1x480xf32> to vector<32x480xf32>
      %c22_121 = arith.constant 22 : index
      %c0_122 = arith.constant 0 : index
      %c0_123 = arith.constant 0 : index
      %170 = vector.load %arg6[%c22_121, %c0_122, %c0_123] : memref<25x32x480xf32, #tpu.memory_space<vmem>>, vector<1x32x480xf32>
      %171 = vector.shape_cast %170 : vector<1x32x480xf32> to vector<32x480xf32>
      %172 = vector.shape_cast %169 : vector<32x480xf32> to vector<1x32x480xf32>
      tpu.vector_store %arg6[%c22_121, %c0_122, %c0_123], %172 {strides = array<i32>} : memref<25x32x480xf32, #tpu.memory_space<vmem>>, vector<1x32x480xf32>,
      %c23 = arith.constant 23 : index
      %c0_124 = arith.constant 0 : index
      %c0_125 = arith.constant 0 : index
      %173 = vector.load %arg3[%c23, %c0_124, %c0_125] : memref<25x1x480xf32, #tpu.memory_space<vmem>>, vector<1x1x480xf32>
      %174 = vector.shape_cast %173 : vector<1x1x480xf32> to vector<1x480xf32>
      %175 = vector.shape_cast %174 : vector<1x480xf32> to vector<1x480xf32>
      %176 = vector.broadcast %175 : vector<1x480xf32> to vector<32x480xf32>
      %c23_126 = arith.constant 23 : index
      %c0_127 = arith.constant 0 : index
      %c0_128 = arith.constant 0 : index
      %177 = vector.load %arg6[%c23_126, %c0_127, %c0_128] : memref<25x32x480xf32, #tpu.memory_space<vmem>>, vector<1x32x480xf32>
      %178 = vector.shape_cast %177 : vector<1x32x480xf32> to vector<32x480xf32>
      %179 = vector.shape_cast %176 : vector<32x480xf32> to vector<1x32x480xf32>
      tpu.vector_store %arg6[%c23_126, %c0_127, %c0_128], %179 {strides = array<i32>} : memref<25x32x480xf32, #tpu.memory_space<vmem>>, vector<1x32x480xf32>,
      %c24 = arith.constant 24 : index
      %c0_129 = arith.constant 0 : index
      %c0_130 = arith.constant 0 : index
      %180 = vector.load %arg3[%c24, %c0_129, %c0_130] : memref<25x1x480xf32, #tpu.memory_space<vmem>>, vector<1x1x480xf32>
      %181 = vector.shape_cast %180 : vector<1x1x480xf32> to vector<1x480xf32>
      %182 = vector.shape_cast %181 : vector<1x480xf32> to vector<1x480xf32>
      %183 = vector.broadcast %182 : vector<1x480xf32> to vector<32x480xf32>
      %c24_131 = arith.constant 24 : index
      %c0_132 = arith.constant 0 : index
      %c0_133 = arith.constant 0 : index
      %184 = vector.load %arg6[%c24_131, %c0_132, %c0_133] : memref<25x32x480xf32, #tpu.memory_space<vmem>>, vector<1x32x480xf32>
      %185 = vector.shape_cast %184 : vector<1x32x480xf32> to vector<32x480xf32>
      %186 = vector.shape_cast %183 : vector<32x480xf32> to vector<1x32x480xf32>
      tpu.vector_store %arg6[%c24_131, %c0_132, %c0_133], %186 {strides = array<i32>} : memref<25x32x480xf32, #tpu.memory_space<vmem>>, vector<1x32x480xf32>,
    } else {
    }
    %c0_i32_2 = arith.constant 0 : i32
    %6 = arith.cmpi eq, %arg1, %c0_i32_2 : i32
    %7 = arith.extui %6 : i1 to i32
    %c0_i32_3 = arith.constant 0 : i32
    %8 = arith.cmpi ne, %7, %c0_i32_3 : i32
    scf.if %8 {
      %c0_i32_6 = arith.constant 0 : i32
      %c28_i32 = arith.constant 28 : i32
      %10 = arith.addi %c0_i32_6, %c28_i32 : i32
      %c1_i32_7 = arith.constant 1 : i32
      scf.for %arg7 = %c0_i32_6 to %10 step %c1_i32_7  : i32 {
        %c1_i32_9 = arith.constant 1 : i32
        %11 = arith.muli %arg7, %c1_i32_9 : i32
        %c0_i32_10 = arith.constant 0 : i32
        %12 = arith.addi %c0_i32_10, %11 : i32
        %c0 = arith.constant 0 : index
        %13 = arith.index_cast %12 : i32 to index
        %c0_11 = arith.constant 0 : index
        %c0_12 = arith.constant 0 : index
        %14 = vector.load %arg2[%c0, %13, %c0_11, %c0_12] : memref<1x28x28x480xf32, #tpu.memory_space<vmem>>, vector<1x1x28x480xf32>
        %15 = vector.shape_cast %14 : vector<1x1x28x480xf32> to vector<28x480xf32>
        %c2_i32 = arith.constant 2 : i32
        %16 = arith.addi %12, %c2_i32 : i32
        %17 = arith.index_cast %16 : i32 to index
        %c0_13 = arith.constant 0 : index
        %c0_14 = arith.constant 0 : index
        %18 = vector.load %arg5[%17, %c0_13, %c0_14] : memref<32x32x480xf32, #tpu.memory_space<vmem>>, vector<1x28x480xf32>
        %19 = vector.shape_cast %18 : vector<1x28x480xf32> to vector<28x480xf32>
        %20 = vector.shape_cast %15 : vector<28x480xf32> to vector<1x28x480xf32>
        tpu.vector_store %arg5[%17, %c0_13, %c0_14], %20 {strides = array<i32>} : memref<32x32x480xf32, #tpu.memory_space<vmem>>, vector<1x28x480xf32>,
      }
      %c28_i32_8 = arith.constant 28 : i32
    } else {
    }
    %c0_i32_4 = arith.constant 0 : i32
    %c7_i32 = arith.constant 7 : i32
    %9 = arith.addi %c0_i32_4, %c7_i32 : i32
    %c1_i32 = arith.constant 1 : i32
    scf.for %arg7 = %c0_i32_4 to %9 step %c1_i32  : i32 {
      %c1_i32_6 = arith.constant 1 : i32
      %10 = arith.muli %arg7, %c1_i32_6 : i32
      %c0_i32_7 = arith.constant 0 : i32
      %11 = arith.addi %c0_i32_7, %10 : i32
      %c2_i32 = arith.constant 2 : i32
      %12 = arith.muli %c2_i32, %11 : i32
      %13 = arith.addi %0, %12 : i32
      %c0_i32_8 = arith.constant 0 : i32
      %14 = arith.addi %13, %c0_i32_8 : i32
      %15 = arith.index_cast %14 : i32 to index
      %c0 = arith.constant 0 : index
      %c0_9 = arith.constant 0 : index
      %16 = vector.load %arg5[%15, %c0, %c0_9] : memref<32x32x480xf32, #tpu.memory_space<vmem>>, vector<1x32x480xf32>
      %17 = vector.shape_cast %16 : vector<1x32x480xf32> to vector<32x480xf32>
      %c2_i32_10 = arith.constant 2 : i32
      %18 = tpu.dynamic_rotate %17 by %c2_i32_10 dim 0 : vector<32x480xf32>, i32 -> vector<32x480xf32>
      %c0_11 = arith.constant 0 : index
      %c0_12 = arith.constant 0 : index
      %c0_13 = arith.constant 0 : index
      %19 = vector.load %arg6[%c0_11, %c0_12, %c0_13] : memref<25x32x480xf32, #tpu.memory_space<vmem>>, vector<1x32x480xf32>
      %20 = vector.shape_cast %19 : vector<1x32x480xf32> to vector<32x480xf32>
      %21 = arith.mulf %18, %20 : vector<32x480xf32>
      %c1_i32_14 = arith.constant 1 : i32
      %22 = tpu.dynamic_rotate %17 by %c1_i32_14 dim 0 : vector<32x480xf32>, i32 -> vector<32x480xf32>
      %c1 = arith.constant 1 : index
      %c0_15 = arith.constant 0 : index
      %c0_16 = arith.constant 0 : index
      %23 = vector.load %arg6[%c1, %c0_15, %c0_16] : memref<25x32x480xf32, #tpu.memory_space<vmem>>, vector<1x32x480xf32>
      %24 = vector.shape_cast %23 : vector<1x32x480xf32> to vector<32x480xf32>
      %25 = arith.mulf %22, %24 : vector<32x480xf32>
      %26 = arith.addf %21, %25 : vector<32x480xf32>
      %c2 = arith.constant 2 : index
      %c0_17 = arith.constant 0 : index
      %c0_18 = arith.constant 0 : index
      %27 = vector.load %arg6[%c2, %c0_17, %c0_18] : memref<25x32x480xf32, #tpu.memory_space<vmem>>, vector<1x32x480xf32>
      %28 = vector.shape_cast %27 : vector<1x32x480xf32> to vector<32x480xf32>
      %29 = arith.mulf %17, %28 : vector<32x480xf32>
      %30 = arith.addf %26, %29 : vector<32x480xf32>
      %c31_i32 = arith.constant 31 : i32
      %31 = tpu.dynamic_rotate %17 by %c31_i32 dim 0 : vector<32x480xf32>, i32 -> vector<32x480xf32>
      %c3 = arith.constant 3 : index
      %c0_19 = arith.constant 0 : index
      %c0_20 = arith.constant 0 : index
      %32 = vector.load %arg6[%c3, %c0_19, %c0_20] : memref<25x32x480xf32, #tpu.memory_space<vmem>>, vector<1x32x480xf32>
      %33 = vector.shape_cast %32 : vector<1x32x480xf32> to vector<32x480xf32>
      %34 = arith.mulf %31, %33 : vector<32x480xf32>
      %35 = arith.addf %30, %34 : vector<32x480xf32>
      %c30_i32 = arith.constant 30 : i32
      %36 = tpu.dynamic_rotate %17 by %c30_i32 dim 0 : vector<32x480xf32>, i32 -> vector<32x480xf32>
      %c4 = arith.constant 4 : index
      %c0_21 = arith.constant 0 : index
      %c0_22 = arith.constant 0 : index
      %37 = vector.load %arg6[%c4, %c0_21, %c0_22] : memref<25x32x480xf32, #tpu.memory_space<vmem>>, vector<1x32x480xf32>
      %38 = vector.shape_cast %37 : vector<1x32x480xf32> to vector<32x480xf32>
      %39 = arith.mulf %36, %38 : vector<32x480xf32>
      %40 = arith.addf %35, %39 : vector<32x480xf32>
      %c1_i32_23 = arith.constant 1 : i32
      %41 = arith.addi %13, %c1_i32_23 : i32
      %42 = arith.index_cast %41 : i32 to index
      %c0_24 = arith.constant 0 : index
      %c0_25 = arith.constant 0 : index
      %43 = vector.load %arg5[%42, %c0_24, %c0_25] : memref<32x32x480xf32, #tpu.memory_space<vmem>>, vector<1x32x480xf32>
      %44 = vector.shape_cast %43 : vector<1x32x480xf32> to vector<32x480xf32>
      %c2_i32_26 = arith.constant 2 : i32
      %45 = tpu.dynamic_rotate %44 by %c2_i32_26 dim 0 : vector<32x480xf32>, i32 -> vector<32x480xf32>
      %c5 = arith.constant 5 : index
      %c0_27 = arith.constant 0 : index
      %c0_28 = arith.constant 0 : index
      %46 = vector.load %arg6[%c5, %c0_27, %c0_28] : memref<25x32x480xf32, #tpu.memory_space<vmem>>, vector<1x32x480xf32>
      %47 = vector.shape_cast %46 : vector<1x32x480xf32> to vector<32x480xf32>
      %48 = arith.mulf %45, %47 : vector<32x480xf32>
      %49 = arith.addf %40, %48 : vector<32x480xf32>
      %c0_29 = arith.constant 0 : index
      %c0_30 = arith.constant 0 : index
      %c0_31 = arith.constant 0 : index
      %50 = vector.load %arg6[%c0_29, %c0_30, %c0_31] : memref<25x32x480xf32, #tpu.memory_space<vmem>>, vector<1x32x480xf32>
      %51 = vector.shape_cast %50 : vector<1x32x480xf32> to vector<32x480xf32>
      %52 = arith.mulf %45, %51 : vector<32x480xf32>
      %c1_i32_32 = arith.constant 1 : i32
      %53 = tpu.dynamic_rotate %44 by %c1_i32_32 dim 0 : vector<32x480xf32>, i32 -> vector<32x480xf32>
      %c6 = arith.constant 6 : index
      %c0_33 = arith.constant 0 : index
      %c0_34 = arith.constant 0 : index
      %54 = vector.load %arg6[%c6, %c0_33, %c0_34] : memref<25x32x480xf32, #tpu.memory_space<vmem>>, vector<1x32x480xf32>
      %55 = vector.shape_cast %54 : vector<1x32x480xf32> to vector<32x480xf32>
      %56 = arith.mulf %53, %55 : vector<32x480xf32>
      %57 = arith.addf %49, %56 : vector<32x480xf32>
      %c1_35 = arith.constant 1 : index
      %c0_36 = arith.constant 0 : index
      %c0_37 = arith.constant 0 : index
      %58 = vector.load %arg6[%c1_35, %c0_36, %c0_37] : memref<25x32x480xf32, #tpu.memory_space<vmem>>, vector<1x32x480xf32>
      %59 = vector.shape_cast %58 : vector<1x32x480xf32> to vector<32x480xf32>
      %60 = arith.mulf %53, %59 : vector<32x480xf32>
      %61 = arith.addf %52, %60 : vector<32x480xf32>
      %c7 = arith.constant 7 : index
      %c0_38 = arith.constant 0 : index
      %c0_39 = arith.constant 0 : index
      %62 = vector.load %arg6[%c7, %c0_38, %c0_39] : memref<25x32x480xf32, #tpu.memory_space<vmem>>, vector<1x32x480xf32>
      %63 = vector.shape_cast %62 : vector<1x32x480xf32> to vector<32x480xf32>
      %64 = arith.mulf %44, %63 : vector<32x480xf32>
      %65 = arith.addf %57, %64 : vector<32x480xf32>
      %c2_40 = arith.constant 2 : index
      %c0_41 = arith.constant 0 : index
      %c0_42 = arith.constant 0 : index
      %66 = vector.load %arg6[%c2_40, %c0_41, %c0_42] : memref<25x32x480xf32, #tpu.memory_space<vmem>>, vector<1x32x480xf32>
      %67 = vector.shape_cast %66 : vector<1x32x480xf32> to vector<32x480xf32>
      %68 = arith.mulf %44, %67 : vector<32x480xf32>
      %69 = arith.addf %61, %68 : vector<32x480xf32>
      %c31_i32_43 = arith.constant 31 : i32
      %70 = tpu.dynamic_rotate %44 by %c31_i32_43 dim 0 : vector<32x480xf32>, i32 -> vector<32x480xf32>
      %c8 = arith.constant 8 : index
      %c0_44 = arith.constant 0 : index
      %c0_45 = arith.constant 0 : index
      %71 = vector.load %arg6[%c8, %c0_44, %c0_45] : memref<25x32x480xf32, #tpu.memory_space<vmem>>, vector<1x32x480xf32>
      %72 = vector.shape_cast %71 : vector<1x32x480xf32> to vector<32x480xf32>
      %73 = arith.mulf %70, %72 : vector<32x480xf32>
      %74 = arith.addf %65, %73 : vector<32x480xf32>
      %c3_46 = arith.constant 3 : index
      %c0_47 = arith.constant 0 : index
      %c0_48 = arith.constant 0 : index
      %75 = vector.load %arg6[%c3_46, %c0_47, %c0_48] : memref<25x32x480xf32, #tpu.memory_space<vmem>>, vector<1x32x480xf32>
      %76 = vector.shape_cast %75 : vector<1x32x480xf32> to vector<32x480xf32>
      %77 = arith.mulf %70, %76 : vector<32x480xf32>
      %78 = arith.addf %69, %77 : vector<32x480xf32>
      %c30_i32_49 = arith.constant 30 : i32
      %79 = tpu.dynamic_rotate %44 by %c30_i32_49 dim 0 : vector<32x480xf32>, i32 -> vector<32x480xf32>
      %c9 = arith.constant 9 : index
      %c0_50 = arith.constant 0 : index
      %c0_51 = arith.constant 0 : index
      %80 = vector.load %arg6[%c9, %c0_50, %c0_51] : memref<25x32x480xf32, #tpu.memory_space<vmem>>, vector<1x32x480xf32>
      %81 = vector.shape_cast %80 : vector<1x32x480xf32> to vector<32x480xf32>
      %82 = arith.mulf %79, %81 : vector<32x480xf32>
      %83 = arith.addf %74, %82 : vector<32x480xf32>
      %c4_52 = arith.constant 4 : index
      %c0_53 = arith.constant 0 : index
      %c0_54 = arith.constant 0 : index
      %84 = vector.load %arg6[%c4_52, %c0_53, %c0_54] : memref<25x32x480xf32, #tpu.memory_space<vmem>>, vector<1x32x480xf32>
      %85 = vector.shape_cast %84 : vector<1x32x480xf32> to vector<32x480xf32>
      %86 = arith.mulf %79, %85 : vector<32x480xf32>
      %87 = arith.addf %78, %86 : vector<32x480xf32>
      %c2_i32_55 = arith.constant 2 : i32
      %88 = arith.addi %13, %c2_i32_55 : i32
      %89 = arith.index_cast %88 : i32 to index
      %c0_56 = arith.constant 0 : index
      %c0_57 = arith.constant 0 : index
      %90 = vector.load %arg5[%89, %c0_56, %c0_57] : memref<32x32x480xf32, #tpu.memory_space<vmem>>, vector<1x32x480xf32>
      %91 = vector.shape_cast %90 : vector<1x32x480xf32> to vector<32x480xf32>
      %c2_i32_58 = arith.constant 2 : i32
      %92 = tpu.dynamic_rotate %91 by %c2_i32_58 dim 0 : vector<32x480xf32>, i32 -> vector<32x480xf32>
      %c10 = arith.constant 10 : index
      %c0_59 = arith.constant 0 : index
      %c0_60 = arith.constant 0 : index
      %93 = vector.load %arg6[%c10, %c0_59, %c0_60] : memref<25x32x480xf32, #tpu.memory_space<vmem>>, vector<1x32x480xf32>
      %94 = vector.shape_cast %93 : vector<1x32x480xf32> to vector<32x480xf32>
      %95 = arith.mulf %92, %94 : vector<32x480xf32>
      %96 = arith.addf %83, %95 : vector<32x480xf32>
      %c5_61 = arith.constant 5 : index
      %c0_62 = arith.constant 0 : index
      %c0_63 = arith.constant 0 : index
      %97 = vector.load %arg6[%c5_61, %c0_62, %c0_63] : memref<25x32x480xf32, #tpu.memory_space<vmem>>, vector<1x32x480xf32>
      %98 = vector.shape_cast %97 : vector<1x32x480xf32> to vector<32x480xf32>
      %99 = arith.mulf %92, %98 : vector<32x480xf32>
      %100 = arith.addf %87, %99 : vector<32x480xf32>
      %c1_i32_64 = arith.constant 1 : i32
      %101 = tpu.dynamic_rotate %91 by %c1_i32_64 dim 0 : vector<32x480xf32>, i32 -> vector<32x480xf32>
      %c11 = arith.constant 11 : index
      %c0_65 = arith.constant 0 : index
      %c0_66 = arith.constant 0 : index
      %102 = vector.load %arg6[%c11, %c0_65, %c0_66] : memref<25x32x480xf32, #tpu.memory_space<vmem>>, vector<1x32x480xf32>
      %103 = vector.shape_cast %102 : vector<1x32x480xf32> to vector<32x480xf32>
      %104 = arith.mulf %101, %103 : vector<32x480xf32>
      %105 = arith.addf %96, %104 : vector<32x480xf32>
      %c6_67 = arith.constant 6 : index
      %c0_68 = arith.constant 0 : index
      %c0_69 = arith.constant 0 : index
      %106 = vector.load %arg6[%c6_67, %c0_68, %c0_69] : memref<25x32x480xf32, #tpu.memory_space<vmem>>, vector<1x32x480xf32>
      %107 = vector.shape_cast %106 : vector<1x32x480xf32> to vector<32x480xf32>
      %108 = arith.mulf %101, %107 : vector<32x480xf32>
      %109 = arith.addf %100, %108 : vector<32x480xf32>
      %c12 = arith.constant 12 : index
      %c0_70 = arith.constant 0 : index
      %c0_71 = arith.constant 0 : index
      %110 = vector.load %arg6[%c12, %c0_70, %c0_71] : memref<25x32x480xf32, #tpu.memory_space<vmem>>, vector<1x32x480xf32>
      %111 = vector.shape_cast %110 : vector<1x32x480xf32> to vector<32x480xf32>
      %112 = arith.mulf %91, %111 : vector<32x480xf32>
      %113 = arith.addf %105, %112 : vector<32x480xf32>
      %c7_72 = arith.constant 7 : index
      %c0_73 = arith.constant 0 : index
      %c0_74 = arith.constant 0 : index
      %114 = vector.load %arg6[%c7_72, %c0_73, %c0_74] : memref<25x32x480xf32, #tpu.memory_space<vmem>>, vector<1x32x480xf32>
      %115 = vector.shape_cast %114 : vector<1x32x480xf32> to vector<32x480xf32>
      %116 = arith.mulf %91, %115 : vector<32x480xf32>
      %117 = arith.addf %109, %116 : vector<32x480xf32>
      %c31_i32_75 = arith.constant 31 : i32
      %118 = tpu.dynamic_rotate %91 by %c31_i32_75 dim 0 : vector<32x480xf32>, i32 -> vector<32x480xf32>
      %c13 = arith.constant 13 : index
      %c0_76 = arith.constant 0 : index
      %c0_77 = arith.constant 0 : index
      %119 = vector.load %arg6[%c13, %c0_76, %c0_77] : memref<25x32x480xf32, #tpu.memory_space<vmem>>, vector<1x32x480xf32>
      %120 = vector.shape_cast %119 : vector<1x32x480xf32> to vector<32x480xf32>
      %121 = arith.mulf %118, %120 : vector<32x480xf32>
      %122 = arith.addf %113, %121 : vector<32x480xf32>
      %c8_78 = arith.constant 8 : index
      %c0_79 = arith.constant 0 : index
      %c0_80 = arith.constant 0 : index
      %123 = vector.load %arg6[%c8_78, %c0_79, %c0_80] : memref<25x32x480xf32, #tpu.memory_space<vmem>>, vector<1x32x480xf32>
      %124 = vector.shape_cast %123 : vector<1x32x480xf32> to vector<32x480xf32>
      %125 = arith.mulf %118, %124 : vector<32x480xf32>
      %126 = arith.addf %117, %125 : vector<32x480xf32>
      %c30_i32_81 = arith.constant 30 : i32
      %127 = tpu.dynamic_rotate %91 by %c30_i32_81 dim 0 : vector<32x480xf32>, i32 -> vector<32x480xf32>
      %c14 = arith.constant 14 : index
      %c0_82 = arith.constant 0 : index
      %c0_83 = arith.constant 0 : index
      %128 = vector.load %arg6[%c14, %c0_82, %c0_83] : memref<25x32x480xf32, #tpu.memory_space<vmem>>, vector<1x32x480xf32>
      %129 = vector.shape_cast %128 : vector<1x32x480xf32> to vector<32x480xf32>
      %130 = arith.mulf %127, %129 : vector<32x480xf32>
      %131 = arith.addf %122, %130 : vector<32x480xf32>
      %c9_84 = arith.constant 9 : index
      %c0_85 = arith.constant 0 : index
      %c0_86 = arith.constant 0 : index
      %132 = vector.load %arg6[%c9_84, %c0_85, %c0_86] : memref<25x32x480xf32, #tpu.memory_space<vmem>>, vector<1x32x480xf32>
      %133 = vector.shape_cast %132 : vector<1x32x480xf32> to vector<32x480xf32>
      %134 = arith.mulf %127, %133 : vector<32x480xf32>
      %135 = arith.addf %126, %134 : vector<32x480xf32>
      %c3_i32 = arith.constant 3 : i32
      %136 = arith.addi %13, %c3_i32 : i32
      %137 = arith.index_cast %136 : i32 to index
      %c0_87 = arith.constant 0 : index
      %c0_88 = arith.constant 0 : index
      %138 = vector.load %arg5[%137, %c0_87, %c0_88] : memref<32x32x480xf32, #tpu.memory_space<vmem>>, vector<1x32x480xf32>
      %139 = vector.shape_cast %138 : vector<1x32x480xf32> to vector<32x480xf32>
      %c2_i32_89 = arith.constant 2 : i32
      %140 = tpu.dynamic_rotate %139 by %c2_i32_89 dim 0 : vector<32x480xf32>, i32 -> vector<32x480xf32>
      %c15 = arith.constant 15 : index
      %c0_90 = arith.constant 0 : index
      %c0_91 = arith.constant 0 : index
      %141 = vector.load %arg6[%c15, %c0_90, %c0_91] : memref<25x32x480xf32, #tpu.memory_space<vmem>>, vector<1x32x480xf32>
      %142 = vector.shape_cast %141 : vector<1x32x480xf32> to vector<32x480xf32>
      %143 = arith.mulf %140, %142 : vector<32x480xf32>
      %144 = arith.addf %131, %143 : vector<32x480xf32>
      %c10_92 = arith.constant 10 : index
      %c0_93 = arith.constant 0 : index
      %c0_94 = arith.constant 0 : index
      %145 = vector.load %arg6[%c10_92, %c0_93, %c0_94] : memref<25x32x480xf32, #tpu.memory_space<vmem>>, vector<1x32x480xf32>
      %146 = vector.shape_cast %145 : vector<1x32x480xf32> to vector<32x480xf32>
      %147 = arith.mulf %140, %146 : vector<32x480xf32>
      %148 = arith.addf %135, %147 : vector<32x480xf32>
      %c1_i32_95 = arith.constant 1 : i32
      %149 = tpu.dynamic_rotate %139 by %c1_i32_95 dim 0 : vector<32x480xf32>, i32 -> vector<32x480xf32>
      %c16 = arith.constant 16 : index
      %c0_96 = arith.constant 0 : index
      %c0_97 = arith.constant 0 : index
      %150 = vector.load %arg6[%c16, %c0_96, %c0_97] : memref<25x32x480xf32, #tpu.memory_space<vmem>>, vector<1x32x480xf32>
      %151 = vector.shape_cast %150 : vector<1x32x480xf32> to vector<32x480xf32>
      %152 = arith.mulf %149, %151 : vector<32x480xf32>
      %153 = arith.addf %144, %152 : vector<32x480xf32>
      %c11_98 = arith.constant 11 : index
      %c0_99 = arith.constant 0 : index
      %c0_100 = arith.constant 0 : index
      %154 = vector.load %arg6[%c11_98, %c0_99, %c0_100] : memref<25x32x480xf32, #tpu.memory_space<vmem>>, vector<1x32x480xf32>
      %155 = vector.shape_cast %154 : vector<1x32x480xf32> to vector<32x480xf32>
      %156 = arith.mulf %149, %155 : vector<32x480xf32>
      %157 = arith.addf %148, %156 : vector<32x480xf32>
      %c17 = arith.constant 17 : index
      %c0_101 = arith.constant 0 : index
      %c0_102 = arith.constant 0 : index
      %158 = vector.load %arg6[%c17, %c0_101, %c0_102] : memref<25x32x480xf32, #tpu.memory_space<vmem>>, vector<1x32x480xf32>
      %159 = vector.shape_cast %158 : vector<1x32x480xf32> to vector<32x480xf32>
      %160 = arith.mulf %139, %159 : vector<32x480xf32>
      %161 = arith.addf %153, %160 : vector<32x480xf32>
      %c12_103 = arith.constant 12 : index
      %c0_104 = arith.constant 0 : index
      %c0_105 = arith.constant 0 : index
      %162 = vector.load %arg6[%c12_103, %c0_104, %c0_105] : memref<25x32x480xf32, #tpu.memory_space<vmem>>, vector<1x32x480xf32>
      %163 = vector.shape_cast %162 : vector<1x32x480xf32> to vector<32x480xf32>
      %164 = arith.mulf %139, %163 : vector<32x480xf32>
      %165 = arith.addf %157, %164 : vector<32x480xf32>
      %c31_i32_106 = arith.constant 31 : i32
      %166 = tpu.dynamic_rotate %139 by %c31_i32_106 dim 0 : vector<32x480xf32>, i32 -> vector<32x480xf32>
      %c18 = arith.constant 18 : index
      %c0_107 = arith.constant 0 : index
      %c0_108 = arith.constant 0 : index
      %167 = vector.load %arg6[%c18, %c0_107, %c0_108] : memref<25x32x480xf32, #tpu.memory_space<vmem>>, vector<1x32x480xf32>
      %168 = vector.shape_cast %167 : vector<1x32x480xf32> to vector<32x480xf32>
      %169 = arith.mulf %166, %168 : vector<32x480xf32>
      %170 = arith.addf %161, %169 : vector<32x480xf32>
      %c13_109 = arith.constant 13 : index
      %c0_110 = arith.constant 0 : index
      %c0_111 = arith.constant 0 : index
      %171 = vector.load %arg6[%c13_109, %c0_110, %c0_111] : memref<25x32x480xf32, #tpu.memory_space<vmem>>, vector<1x32x480xf32>
      %172 = vector.shape_cast %171 : vector<1x32x480xf32> to vector<32x480xf32>
      %173 = arith.mulf %166, %172 : vector<32x480xf32>
      %174 = arith.addf %165, %173 : vector<32x480xf32>
      %c30_i32_112 = arith.constant 30 : i32
      %175 = tpu.dynamic_rotate %139 by %c30_i32_112 dim 0 : vector<32x480xf32>, i32 -> vector<32x480xf32>
      %c19 = arith.constant 19 : index
      %c0_113 = arith.constant 0 : index
      %c0_114 = arith.constant 0 : index
      %176 = vector.load %arg6[%c19, %c0_113, %c0_114] : memref<25x32x480xf32, #tpu.memory_space<vmem>>, vector<1x32x480xf32>
      %177 = vector.shape_cast %176 : vector<1x32x480xf32> to vector<32x480xf32>
      %178 = arith.mulf %175, %177 : vector<32x480xf32>
      %179 = arith.addf %170, %178 : vector<32x480xf32>
      %c14_115 = arith.constant 14 : index
      %c0_116 = arith.constant 0 : index
      %c0_117 = arith.constant 0 : index
      %180 = vector.load %arg6[%c14_115, %c0_116, %c0_117] : memref<25x32x480xf32, #tpu.memory_space<vmem>>, vector<1x32x480xf32>
      %181 = vector.shape_cast %180 : vector<1x32x480xf32> to vector<32x480xf32>
      %182 = arith.mulf %175, %181 : vector<32x480xf32>
      %183 = arith.addf %174, %182 : vector<32x480xf32>
      %c4_i32 = arith.constant 4 : i32
      %184 = arith.addi %13, %c4_i32 : i32
      %185 = arith.index_cast %184 : i32 to index
      %c0_118 = arith.constant 0 : index
      %c0_119 = arith.constant 0 : index
      %186 = vector.load %arg5[%185, %c0_118, %c0_119] : memref<32x32x480xf32, #tpu.memory_space<vmem>>, vector<1x32x480xf32>
      %187 = vector.shape_cast %186 : vector<1x32x480xf32> to vector<32x480xf32>
      %c2_i32_120 = arith.constant 2 : i32
      %188 = tpu.dynamic_rotate %187 by %c2_i32_120 dim 0 : vector<32x480xf32>, i32 -> vector<32x480xf32>
      %c20 = arith.constant 20 : index
      %c0_121 = arith.constant 0 : index
      %c0_122 = arith.constant 0 : index
      %189 = vector.load %arg6[%c20, %c0_121, %c0_122] : memref<25x32x480xf32, #tpu.memory_space<vmem>>, vector<1x32x480xf32>
      %190 = vector.shape_cast %189 : vector<1x32x480xf32> to vector<32x480xf32>
      %191 = arith.mulf %188, %190 : vector<32x480xf32>
      %192 = arith.addf %179, %191 : vector<32x480xf32>
      %c15_123 = arith.constant 15 : index
      %c0_124 = arith.constant 0 : index
      %c0_125 = arith.constant 0 : index
      %193 = vector.load %arg6[%c15_123, %c0_124, %c0_125] : memref<25x32x480xf32, #tpu.memory_space<vmem>>, vector<1x32x480xf32>
      %194 = vector.shape_cast %193 : vector<1x32x480xf32> to vector<32x480xf32>
      %195 = arith.mulf %188, %194 : vector<32x480xf32>
      %196 = arith.addf %183, %195 : vector<32x480xf32>
      %c1_i32_126 = arith.constant 1 : i32
      %197 = tpu.dynamic_rotate %187 by %c1_i32_126 dim 0 : vector<32x480xf32>, i32 -> vector<32x480xf32>
      %c21 = arith.constant 21 : index
      %c0_127 = arith.constant 0 : index
      %c0_128 = arith.constant 0 : index
      %198 = vector.load %arg6[%c21, %c0_127, %c0_128] : memref<25x32x480xf32, #tpu.memory_space<vmem>>, vector<1x32x480xf32>
      %199 = vector.shape_cast %198 : vector<1x32x480xf32> to vector<32x480xf32>
      %200 = arith.mulf %197, %199 : vector<32x480xf32>
      %201 = arith.addf %192, %200 : vector<32x480xf32>
      %c16_129 = arith.constant 16 : index
      %c0_130 = arith.constant 0 : index
      %c0_131 = arith.constant 0 : index
      %202 = vector.load %arg6[%c16_129, %c0_130, %c0_131] : memref<25x32x480xf32, #tpu.memory_space<vmem>>, vector<1x32x480xf32>
      %203 = vector.shape_cast %202 : vector<1x32x480xf32> to vector<32x480xf32>
      %204 = arith.mulf %197, %203 : vector<32x480xf32>
      %205 = arith.addf %196, %204 : vector<32x480xf32>
      %c22 = arith.constant 22 : index
      %c0_132 = arith.constant 0 : index
      %c0_133 = arith.constant 0 : index
      %206 = vector.load %arg6[%c22, %c0_132, %c0_133] : memref<25x32x480xf32, #tpu.memory_space<vmem>>, vector<1x32x480xf32>
      %207 = vector.shape_cast %206 : vector<1x32x480xf32> to vector<32x480xf32>
      %208 = arith.mulf %187, %207 : vector<32x480xf32>
      %209 = arith.addf %201, %208 : vector<32x480xf32>
      %c17_134 = arith.constant 17 : index
      %c0_135 = arith.constant 0 : index
      %c0_136 = arith.constant 0 : index
      %210 = vector.load %arg6[%c17_134, %c0_135, %c0_136] : memref<25x32x480xf32, #tpu.memory_space<vmem>>, vector<1x32x480xf32>
      %211 = vector.shape_cast %210 : vector<1x32x480xf32> to vector<32x480xf32>
      %212 = arith.mulf %187, %211 : vector<32x480xf32>
      %213 = arith.addf %205, %212 : vector<32x480xf32>
      %c31_i32_137 = arith.constant 31 : i32
      %214 = tpu.dynamic_rotate %187 by %c31_i32_137 dim 0 : vector<32x480xf32>, i32 -> vector<32x480xf32>
      %c23 = arith.constant 23 : index
      %c0_138 = arith.constant 0 : index
      %c0_139 = arith.constant 0 : index
      %215 = vector.load %arg6[%c23, %c0_138, %c0_139] : memref<25x32x480xf32, #tpu.memory_space<vmem>>, vector<1x32x480xf32>
      %216 = vector.shape_cast %215 : vector<1x32x480xf32> to vector<32x480xf32>
      %217 = arith.mulf %214, %216 : vector<32x480xf32>
      %218 = arith.addf %209, %217 : vector<32x480xf32>
      %c18_140 = arith.constant 18 : index
      %c0_141 = arith.constant 0 : index
      %c0_142 = arith.constant 0 : index
      %219 = vector.load %arg6[%c18_140, %c0_141, %c0_142] : memref<25x32x480xf32, #tpu.memory_space<vmem>>, vector<1x32x480xf32>
      %220 = vector.shape_cast %219 : vector<1x32x480xf32> to vector<32x480xf32>
      %221 = arith.mulf %214, %220 : vector<32x480xf32>
      %222 = arith.addf %213, %221 : vector<32x480xf32>
      %c30_i32_143 = arith.constant 30 : i32
      %223 = tpu.dynamic_rotate %187 by %c30_i32_143 dim 0 : vector<32x480xf32>, i32 -> vector<32x480xf32>
      %c24 = arith.constant 24 : index
      %c0_144 = arith.constant 0 : index
      %c0_145 = arith.constant 0 : index
      %224 = vector.load %arg6[%c24, %c0_144, %c0_145] : memref<25x32x480xf32, #tpu.memory_space<vmem>>, vector<1x32x480xf32>
      %225 = vector.shape_cast %224 : vector<1x32x480xf32> to vector<32x480xf32>
      %226 = arith.mulf %223, %225 : vector<32x480xf32>
      %227 = arith.addf %218, %226 : vector<32x480xf32>
      %c19_146 = arith.constant 19 : index
      %c0_147 = arith.constant 0 : index
      %c0_148 = arith.constant 0 : index
      %228 = vector.load %arg6[%c19_146, %c0_147, %c0_148] : memref<25x32x480xf32, #tpu.memory_space<vmem>>, vector<1x32x480xf32>
      %229 = vector.shape_cast %228 : vector<1x32x480xf32> to vector<32x480xf32>
      %230 = arith.mulf %223, %229 : vector<32x480xf32>
      %231 = arith.addf %222, %230 : vector<32x480xf32>
      %c5_i32 = arith.constant 5 : i32
      %232 = arith.addi %13, %c5_i32 : i32
      %233 = arith.index_cast %232 : i32 to index
      %c0_149 = arith.constant 0 : index
      %c0_150 = arith.constant 0 : index
      %234 = vector.load %arg5[%233, %c0_149, %c0_150] : memref<32x32x480xf32, #tpu.memory_space<vmem>>, vector<1x32x480xf32>
      %235 = vector.shape_cast %234 : vector<1x32x480xf32> to vector<32x480xf32>
      %c2_i32_151 = arith.constant 2 : i32
      %236 = tpu.dynamic_rotate %235 by %c2_i32_151 dim 0 : vector<32x480xf32>, i32 -> vector<32x480xf32>
      %c20_152 = arith.constant 20 : index
      %c0_153 = arith.constant 0 : index
      %c0_154 = arith.constant 0 : index
      %237 = vector.load %arg6[%c20_152, %c0_153, %c0_154] : memref<25x32x480xf32, #tpu.memory_space<vmem>>, vector<1x32x480xf32>
      %238 = vector.shape_cast %237 : vector<1x32x480xf32> to vector<32x480xf32>
      %239 = arith.mulf %236, %238 : vector<32x480xf32>
      %240 = arith.addf %231, %239 : vector<32x480xf32>
      %c1_i32_155 = arith.constant 1 : i32
      %241 = tpu.dynamic_rotate %235 by %c1_i32_155 dim 0 : vector<32x480xf32>, i32 -> vector<32x480xf32>
      %c21_156 = arith.constant 21 : index
      %c0_157 = arith.constant 0 : index
      %c0_158 = arith.constant 0 : index
      %242 = vector.load %arg6[%c21_156, %c0_157, %c0_158] : memref<25x32x480xf32, #tpu.memory_space<vmem>>, vector<1x32x480xf32>
      %243 = vector.shape_cast %242 : vector<1x32x480xf32> to vector<32x480xf32>
      %244 = arith.mulf %241, %243 : vector<32x480xf32>
      %245 = arith.addf %240, %244 : vector<32x480xf32>
      %c22_159 = arith.constant 22 : index
      %c0_160 = arith.constant 0 : index
      %c0_161 = arith.constant 0 : index
      %246 = vector.load %arg6[%c22_159, %c0_160, %c0_161] : memref<25x32x480xf32, #tpu.memory_space<vmem>>, vector<1x32x480xf32>
      %247 = vector.shape_cast %246 : vector<1x32x480xf32> to vector<32x480xf32>
      %248 = arith.mulf %235, %247 : vector<32x480xf32>
      %249 = arith.addf %245, %248 : vector<32x480xf32>
      %c31_i32_162 = arith.constant 31 : i32
      %250 = tpu.dynamic_rotate %235 by %c31_i32_162 dim 0 : vector<32x480xf32>, i32 -> vector<32x480xf32>
      %c23_163 = arith.constant 23 : index
      %c0_164 = arith.constant 0 : index
      %c0_165 = arith.constant 0 : index
      %251 = vector.load %arg6[%c23_163, %c0_164, %c0_165] : memref<25x32x480xf32, #tpu.memory_space<vmem>>, vector<1x32x480xf32>
      %252 = vector.shape_cast %251 : vector<1x32x480xf32> to vector<32x480xf32>
      %253 = arith.mulf %250, %252 : vector<32x480xf32>
      %254 = arith.addf %249, %253 : vector<32x480xf32>
      %c30_i32_166 = arith.constant 30 : i32
      %255 = tpu.dynamic_rotate %235 by %c30_i32_166 dim 0 : vector<32x480xf32>, i32 -> vector<32x480xf32>
      %c24_167 = arith.constant 24 : index
      %c0_168 = arith.constant 0 : index
      %c0_169 = arith.constant 0 : index
      %256 = vector.load %arg6[%c24_167, %c0_168, %c0_169] : memref<25x32x480xf32, #tpu.memory_space<vmem>>, vector<1x32x480xf32>
      %257 = vector.shape_cast %256 : vector<1x32x480xf32> to vector<32x480xf32>
      %258 = arith.mulf %255, %257 : vector<32x480xf32>
      %259 = arith.addf %254, %258 : vector<32x480xf32>
      %260 = vector.extract_strided_slice %227 {offsets = [0, 0], sizes = [28, 480], strides = [1, 1]} : vector<32x480xf32> to vector<28x480xf32>
      %c0_170 = arith.constant 0 : index
      %261 = arith.index_cast %12 : i32 to index
      %c0_171 = arith.constant 0 : index
      %c0_172 = arith.constant 0 : index
      %262 = vector.load %arg4[%c0_170, %261, %c0_171, %c0_172] : memref<1x14x28x480xf32, #tpu.memory_space<vmem>>, vector<1x1x28x480xf32>
      %263 = vector.shape_cast %262 : vector<1x1x28x480xf32> to vector<28x480xf32>
      %264 = vector.shape_cast %260 : vector<28x480xf32> to vector<1x1x28x480xf32>
      tpu.vector_store %arg4[%c0_170, %261, %c0_171, %c0_172], %264 {strides = array<i32>} : memref<1x14x28x480xf32, #tpu.memory_space<vmem>>, vector<1x1x28x480xf32>,
      %265 = vector.extract_strided_slice %259 {offsets = [0, 0], sizes = [28, 480], strides = [1, 1]} : vector<32x480xf32> to vector<28x480xf32>
      %c1_i32_173 = arith.constant 1 : i32
      %266 = arith.addi %12, %c1_i32_173 : i32
      %c0_174 = arith.constant 0 : index
      %267 = arith.index_cast %266 : i32 to index
      %c0_175 = arith.constant 0 : index
      %c0_176 = arith.constant 0 : index
      %268 = vector.load %arg4[%c0_174, %267, %c0_175, %c0_176] : memref<1x14x28x480xf32, #tpu.memory_space<vmem>>, vector<1x1x28x480xf32>
      %269 = vector.shape_cast %268 : vector<1x1x28x480xf32> to vector<28x480xf32>
      %270 = vector.shape_cast %265 : vector<28x480xf32> to vector<1x1x28x480xf32>
      tpu.vector_store %arg4[%c0_174, %267, %c0_175, %c0_176], %270 {strides = array<i32>} : memref<1x14x28x480xf32, #tpu.memory_space<vmem>>, vector<1x1x28x480xf32>,
    }
    %c7_i32_5 = arith.constant 7 : i32
    return
  }
  func.func @transform_0(%arg0: i32, %arg1: i32) -> (i32, i32, i32, i32) {
    %c0_i32 = arith.constant 0 : i32
    %c0_i32_0 = arith.constant 0 : i32
    %c0_i32_1 = arith.constant 0 : i32
    %c0_i32_2 = arith.constant 0 : i32
    return %arg0, %c0_i32, %c0_i32_0, %c0_i32_1 : i32, i32, i32, i32
  }
  func.func @transform_1(%arg0: i32, %arg1: i32) -> (i32, i32, i32) {
    %c0_i32 = arith.constant 0 : i32
    %c0_i32_0 = arith.constant 0 : i32
    %c0_i32_1 = arith.constant 0 : i32
    %c0_i32_2 = arith.constant 0 : i32
    return %c0_i32, %c0_i32_0, %c0_i32_1 : i32, i32, i32
  }
  func.func @transform_2(%arg0: i32, %arg1: i32) -> (i32, i32, i32, i32) {
    %c0_i32 = arith.constant 0 : i32
    %c0_i32_0 = arith.constant 0 : i32
    %c0_i32_1 = arith.constant 0 : i32
    return %arg0, %arg1, %c0_i32, %c0_i32_0 : i32, i32, i32, i32
  }
}

</mosaic_0001>

<llo_original>
// kernel: tpu_custom_call.1
$region0: #{tpu_custom_call.1}
  #allocation0 [shape = 'u32[]', space=smem, size = 0x4, offset = 0x4, fixed_abs, tag = 'smem constant byte address 0x4 - core index']
  #allocation1 [shape = 'u32[144,128]{1,0:T(1,128)}', space=vmem, size = 0x12000, scoped, tag = 'internal scratch']
  #allocation2 [shape = 'f32[32,32,480]{2,1,0:T(8,128)}', space=vmem, size = 0x200000, scoped, tag = 'scratch operand']
  #allocation3 [shape = 'f32[25,32,480]{2,1,0:T(8,128)}', space=vmem, size = 0x190000, scoped, tag = 'scratch operand']
  %s0 = inlined_call_operand.vmem [shape: f32[1,28,28,480], index: 0, kind: input, shape index: {}]
  %s1 = inlined_call_operand.vmem [shape: f32[25,1,480], index: 1, kind: input, shape index: {}]
  %s2 = inlined_call_operand.vmem [shape: f32[1,28,28,480], index: 2, kind: output, shape index: {}]
  %s3 = sld [smem:[#allocation0]]
  $region63: #{tpu_custom_call.1} parent=0
    _
  %s5 = ssub.s32 1, %s3
  %s6 = scalar_select 0, %s5, %s3
  loop: start=0, step=1, limit=4
  $region2: #{tpu_custom_call.1} parent=0 // loop_pre_header
    _
  $region3: #{tpu_custom_call.1} parent=0 // loop_header
    %s8 = sphi 0, %s12
    %p9 = scmp.ge.s32.totalorder %s8, 4
    %s15 = sphi 0, %s27
    %s16 = sphi 0, %s23
    %s17 = sphi 0, %s15
    %s18 = sphi 0, %s16
    %s19 = sphi 0, %s17
    %s20 = sphi 0, %s18
    %s30 = sphi 0, %s32
    %s33 = sphi 0, %s30
    %s34 = sphi 0, %s33
    %s50 = sphi 0, %s34
    %s54 = sphi 0, %s54
    %s56 = sphi 0, %s54
    %s57 = sphi 0, %s56
    %s71 = sphi 0, %s57
    %s79 = sphi 0, %s81
    %s82 = sphi 0, %s79
    %s83 = sphi 0, %s82
    %s99 = sphi 0, %s83
  $region4: #{tpu_custom_call.1} parent=0 // loop_header_branch
    %11 = sbr.rel (%p9) target = $region8
  $region5: #{tpu_custom_call.1} parent=0 // loop_body
    %s13 = ssub.s32 %s8, 1
    %s14 = ssub.s32 %s8, 2
    %s21 = sadd.s32 1, %s16
    %p22 = scmp.ge.s32.totalorder %s21, 2
    %s23 = scalar_select %p22, 0, %s21
    %s24 = sadd.s32 1, %s15
    %s25 = scalar_select %p22, %s24, %s15
    %p26 = scmp.ge.s32.totalorder %s25, 1
    %s27 = scalar_select %p26, 0, %s25
    %s28 = ssub.s32 %s15, %s27
    %p29 = scmp.eq.s32.totalorder %s28, 0
    %s31 = sadd.s32 %s30, 1
    %s32 = scalar_select %p29, %s30, %s31
    %p35 = pneg %p29
    %p36 = scmp.eq.s32.totalorder %s8, 1
    %p37 = por %p35, %p36
    %p38 = scmp.ne.s32.totalorder %s30, %s33
    %p39 = scmp.eq.s32.totalorder %s8, 0
    %p40 = por %p38, %p39
    %p41 = scmp.ne.s32.totalorder %s30, %s33
    %p42 = scmp.eq.s32.totalorder %s13, 1
    %p43 = por %p41, %p42
    %p44 = scmp.ne.s32.totalorder %s33, %s34
    %p45 = scmp.eq.s32.totalorder %s13, 0
    %p46 = por %p44, %p45
    %p47 = scmp.ne.s32.totalorder %s33, %s34
    %p48 = scmp.eq.s32.totalorder %s14, 1
    %p49 = por %p47, %p48
    %p51 = scmp.ne.s32.totalorder %s34, %s50
    %p52 = scmp.eq.s32.totalorder %s14, 0
    %p53 = por %p51, %p52
    %s55 = sadd.s32 %s54, 1
    %p58 = scmp.eq.s32.totalorder %s8, 1
    %p59 = scmp.ne.s32.totalorder %s54, %s56
    %p60 = scmp.eq.s32.totalorder %s8, 0
    %p61 = por %p59, %p60
    %p62 = scmp.ne.s32.totalorder %s54, %s56
    %p63 = scmp.eq.s32.totalorder %s13, 1
    %p64 = por %p62, %p63
    %p65 = scmp.ne.s32.totalorder %s56, %s57
    %p66 = scmp.eq.s32.totalorder %s13, 0
    %p67 = por %p65, %p66
    %p68 = scmp.ne.s32.totalorder %s56, %s57
    %p69 = scmp.eq.s32.totalorder %s14, 1
    %p70 = por %p68, %p69
    %p72 = scmp.ne.s32.totalorder %s57, %s71
    %p73 = scmp.eq.s32.totalorder %s14, 0
    %p74 = por %p72, %p73
    %s75 = ssub.s32 %s15, %s27
    %s76 = ssub.s32 %s16, %s23
    %s77 = sor.u32 %s75, %s76
    %p78 = scmp.eq.s32.totalorder %s77, 0
    %s80 = sadd.s32 %s79, 1
    %s81 = scalar_select %p78, %s79, %s80
    %p84 = pneg %p78
    %p85 = scmp.eq.s32.totalorder %s8, 1
    %p86 = por %p84, %p85
    %p87 = scmp.ne.s32.totalorder %s79, %s82
    %p88 = scmp.eq.s32.totalorder %s8, 0
    %p89 = por %p87, %p88
    %p90 = scmp.ne.s32.totalorder %s79, %s82
    %p91 = scmp.eq.s32.totalorder %s13, 1
    %p92 = por %p90, %p91
    %p93 = scmp.ne.s32.totalorder %s82, %s83
    %p94 = scmp.eq.s32.totalorder %s13, 0
    %p95 = por %p93, %p94
    %p96 = scmp.ne.s32.totalorder %s82, %s83
    %p97 = scmp.eq.s32.totalorder %s14, 1
    %p98 = por %p96, %p97
    %p100 = scmp.ne.s32.totalorder %s83, %s99
    %p101 = scmp.eq.s32.totalorder %s14, 0
    %p102 = por %p100, %p101
    %p103 = scmp.le.s32.totalorder 1, %s8
    %p104 = scmp.lt.s32.totalorder %s8, 3
    %p105 = pnand %p103, %p104
    %p106 = pneg %p105
    // Predicated region
    $region9: #{tpu_custom_call.1} parent=5 // pred_check
      _
    $region10: #{tpu_custom_call.1} parent=5 // pred_check_branch
      %108 = sbr.rel (%p105) target = $region12
    $region11: #{tpu_custom_call.1} parent=5 // pred_region
      %s109 = ssub.s32 %s8, 1
      // Predicated region
      $region13: #{tpu_custom_call.1} parent=11 // pred_check
        %p110 = pneg %p46
      $region14: #{tpu_custom_call.1} parent=11 // pred_check_branch
        %112 = sbr.rel (%p110) target = $region16
      $region15: #{tpu_custom_call.1} parent=11 // pred_region
        %p113 = scmp.lt.s32.totalorder %s17, 0
        %s114 = scalar_select %p113, %s17, 0
        %s115 = smul.addr %s114, 448
        %s116 = smul.addr %s115, 8
        %s117 = scalar_lea.vmem %s0, %s116
      $region16: #{tpu_custom_call.1} parent=11 // pred_fallthru
        _
      // Predicated region
      $region17: #{tpu_custom_call.1} parent=11 // pred_check
        %p118 = pneg %p67
      $region18: #{tpu_custom_call.1} parent=11 // pred_check_branch
        %120 = sbr.rel (%p118) target = $region20
      $region19: #{tpu_custom_call.1} parent=11 // pred_region
        _
      $region20: #{tpu_custom_call.1} parent=11 // pred_fallthru
        _
    $region12: #{tpu_custom_call.1} parent=5 // pred_fallthru
      _
    %p121 = scmp.lt.s32.totalorder %s8, 2
    // Predicated region
    $region21: #{tpu_custom_call.1} parent=5 // pred_check
      %p122 = pneg %p121
    $region22: #{tpu_custom_call.1} parent=5 // pred_check_branch
      %124 = sbr.rel (%p122) target = $region24
    $region23: #{tpu_custom_call.1} parent=5 // pred_region
      _
    $region24: #{tpu_custom_call.1} parent=5 // pred_fallthru
      _
    %p125 = scmp.le.s32.totalorder 1, %s8
    %p126 = scmp.lt.s32.totalorder %s8, 3
    %p127 = pnand %p125, %p126
    %p128 = pneg %p127
    // Predicated region
    $region25: #{tpu_custom_call.1} parent=5 // pred_check
      _
    $region26: #{tpu_custom_call.1} parent=5 // pred_check_branch
      %130 = sbr.rel (%p127) target = $region28
    $region27: #{tpu_custom_call.1} parent=5 // pred_region
      %s131 = ssub.s32 %s8, 1
      %p132 = scmp.lt.s32.totalorder %s17, 0
      %s133 = scalar_select %p132, %s17, 0
      %s134 = smul.addr %s133, 448
      %s135 = smul.addr %s134, 8
      %s136 = scalar_lea.vmem %s0, %s135
      %p137 = pneg %p46
      %p138 = pneg %p43
      %p139 = pneg %p67
      %p140 = pneg %p64
      %p141 = pneg %p95
      %p142 = pneg %p92
      %s143 = smul.u32 14, %s18
      %p144 = scmp.lt.s32.totalorder %s17, 0
      %s145 = scalar_select %p144, %s17, 0
      %p146 = scmp.lt.s32.totalorder %s143, 27
      %s147 = scalar_select %p146, %s143, 27
      %s148 = smul.addr %s147, 16
      %s149 = smul.addr %s145, 448
      %s150 = sadd.s32 %s148, %s149
      %s151 = smul.addr %s150, 8
      %s152 = scalar_lea.vmem %s2, %s151
      %p153 = scmp.lt.s32.totalorder %s17, 0
      %s154 = scalar_select %p153, %s17, 0
      %s155 = smul.addr %s154, 448
      %s156 = smul.addr %s155, 8
      %s157 = scalar_lea.vmem %s0, %s156
      %s158 = smul.u32 14, %s18
      %p159 = scmp.lt.s32.totalorder %s17, 0
      %s160 = scalar_select %p159, %s17, 0
      %p161 = scmp.lt.s32.totalorder %s158, 27
      %s162 = scalar_select %p161, %s158, 27
      %s163 = smul.addr %s162, 16
      %s164 = smul.addr %s160, 448
      %s165 = sadd.s32 %s163, %s164
      %s166 = smul.addr %s165, 8
      %s167 = scalar_lea.vmem %s2, %s166
      %s168 = smul.u32 14, %s18
      %s169 = smul.u32 %s18, 14
      %p170 = scmp.eq.s32.totalorder %s17, 0
      %p171 = scmp.eq.s32.totalorder %s18, 0
      %p172 = pnand %p170, %p171
      %p173 = pneg %p172
      // Predicated region
      $region29: #{tpu_custom_call.1} parent=27 // pred_check
        _
      $region30: #{tpu_custom_call.1} parent=27 // pred_check_branch
        %175 = sbr.rel (%p172) target = $region32
      $region31: #{tpu_custom_call.1} parent=27 // pred_region
        %176 = vst [vmem:[#allocation2] sm:$0xff] 0.0
        %177 = vst [vmem:[#allocation2 + $0x8] sm:$0xff] 0.0
        %178 = vst [vmem:[#allocation2 + $0x10] sm:$0xff] 0.0
        %vm179 = vcmask 785408
        %180 = vst.msk [vmem:[#allocation2 + $0x18] sm:$0xff] %vm179, 0.0
        %181 = vst [vmem:[#allocation2 + $0x20] sm:$0xff] 0.0
        %182 = vst [vmem:[#allocation2 + $0x28] sm:$0xff] 0.0
        %183 = vst [vmem:[#allocation2 + $0x30] sm:$0xff] 0.0
        %184 = vst.msk [vmem:[#allocation2 + $0x38] sm:$0xff] %vm179, 0.0
        %185 = vst [vmem:[#allocation2 + $0x40] sm:$0xff] 0.0
        %186 = vst [vmem:[#allocation2 + $0x48] sm:$0xff] 0.0
        %187 = vst [vmem:[#allocation2 + $0x50] sm:$0xff] 0.0
        %188 = vst.msk [vmem:[#allocation2 + $0x58] sm:$0xff] %vm179, 0.0
        %189 = vst [vmem:[#allocation2 + $0x60] sm:$0xff] 0.0
        %190 = vst [vmem:[#allocation2 + $0x68] sm:$0xff] 0.0
        %191 = vst [vmem:[#allocation2 + $0x70] sm:$0xff] 0.0
        %192 = vst.msk [vmem:[#allocation2 + $0x78] sm:$0xff] %vm179, 0.0
        %193 = vst [vmem:[#allocation2 + $0x80] sm:$0xff] 0.0
        %194 = vst [vmem:[#allocation2 + $0x88] sm:$0xff] 0.0
        %195 = vst [vmem:[#allocation2 + $0x90] sm:$0xff] 0.0
        %196 = vst.msk [vmem:[#allocation2 + $0x98] sm:$0xff] %vm179, 0.0
        %197 = vst [vmem:[#allocation2 + $0xa0] sm:$0xff] 0.0
        %198 = vst [vmem:[#allocation2 + $0xa8] sm:$0xff] 0.0
        %199 = vst [vmem:[#allocation2 + $0xb0] sm:$0xff] 0.0
        %200 = vst.msk [vmem:[#allocation2 + $0xb8] sm:$0xff] %vm179, 0.0
        %201 = vst [vmem:[#allocation2 + $0xc0] sm:$0xff] 0.0
        %202 = vst [vmem:[#allocation2 + $0xc8] sm:$0xff] 0.0
        %203 = vst [vmem:[#allocation2 + $0xd0] sm:$0xff] 0.0
        %204 = vst.msk [vmem:[#allocation2 + $0xd8] sm:$0xff] %vm179, 0.0
        %205 = vst [vmem:[#allocation2 + $0xe0] sm:$0xff] 0.0
        %206 = vst [vmem:[#allocation2 + $0xe8] sm:$0xff] 0.0
        %207 = vst [vmem:[#allocation2 + $0xf0] sm:$0xff] 0.0
        %208 = vst.msk [vmem:[#allocation2 + $0xf8] sm:$0xff] %vm179, 0.0
        %209 = vst [vmem:[#allocation2 + $0x100] sm:$0xff] 0.0
        %210 = vst [vmem:[#allocation2 + $0x108] sm:$0xff] 0.0
        %211 = vst [vmem:[#allocation2 + $0x110] sm:$0xff] 0.0
        %212 = vst.msk [vmem:[#allocation2 + $0x118] sm:$0xff] %vm179, 0.0
        %213 = vst [vmem:[#allocation2 + $0x120] sm:$0xff] 0.0
        %214 = vst [vmem:[#allocation2 + $0x128] sm:$0xff] 0.0
        %215 = vst [vmem:[#allocation2 + $0x130] sm:$0xff] 0.0
        %216 = vst.msk [vmem:[#allocation2 + $0x138] sm:$0xff] %vm179, 0.0
        %217 = vst [vmem:[#allocation2 + $0x140] sm:$0xff] 0.0
        %218 = vst [vmem:[#allocation2 + $0x148] sm:$0xff] 0.0
        %219 = vst [vmem:[#allocation2 + $0x150] sm:$0xff] 0.0
        %220 = vst.msk [vmem:[#allocation2 + $0x158] sm:$0xff] %vm179, 0.0
        %221 = vst [vmem:[#allocation2 + $0x160] sm:$0xff] 0.0
        %222 = vst [vmem:[#allocation2 + $0x168] sm:$0xff] 0.0
        %223 = vst [vmem:[#allocation2 + $0x170] sm:$0xff] 0.0
        %224 = vst.msk [vmem:[#allocation2 + $0x178] sm:$0xff] %vm179, 0.0
        %225 = vst [vmem:[#allocation2 + $0x180] sm:$0xff] 0.0
        %226 = vst [vmem:[#allocation2 + $0x188] sm:$0xff] 0.0
        %227 = vst [vmem:[#allocation2 + $0x190] sm:$0xff] 0.0
        %228 = vst.msk [vmem:[#allocation2 + $0x198] sm:$0xff] %vm179, 0.0
        %229 = vst [vmem:[#allocation2 + $0x1a0] sm:$0xff] 0.0
        %230 = vst [vmem:[#allocation2 + $0x1a8] sm:$0xff] 0.0
        %231 = vst [vmem:[#allocation2 + $0x1b0] sm:$0xff] 0.0
        %232 = vst.msk [vmem:[#allocation2 + $0x1b8] sm:$0xff] %vm179, 0.0
        %233 = vst [vmem:[#allocation2 + $0x1c0] sm:$0xff] 0.0
        %234 = vst [vmem:[#allocation2 + $0x1c8] sm:$0xff] 0.0
        %235 = vst [vmem:[#allocation2 + $0x1d0] sm:$0xff] 0.0
        %236 = vst.msk [vmem:[#allocation2 + $0x1d8] sm:$0xff] %vm179, 0.0
        %237 = vst [vmem:[#allocation2 + $0x1e0] sm:$0xff] 0.0
        %238 = vst [vmem:[#allocation2 + $0x1e8] sm:$0xff] 0.0
        %239 = vst [vmem:[#allocation2 + $0x1f0] sm:$0xff] 0.0
        %240 = vst.msk [vmem:[#allocation2 + $0x1f8] sm:$0xff] %vm179, 0.0
        %241 = vst [vmem:[#allocation2 + $0x200] sm:$0xff] 0.0
        %242 = vst [vmem:[#allocation2 + $0x208] sm:$0xff] 0.0
        %243 = vst [vmem:[#allocation2 + $0x210] sm:$0xff] 0.0
        %244 = vst.msk [vmem:[#allocation2 + $0x218] sm:$0xff] %vm179, 0.0
        %245 = vst [vmem:[#allocation2 + $0x220] sm:$0xff] 0.0
        %246 = vst [vmem:[#allocation2 + $0x228] sm:$0xff] 0.0
        %247 = vst [vmem:[#allocation2 + $0x230] sm:$0xff] 0.0
        %248 = vst.msk [vmem:[#allocation2 + $0x238] sm:$0xff] %vm179, 0.0
        %249 = vst [vmem:[#allocation2 + $0x240] sm:$0xff] 0.0
        %250 = vst [vmem:[#allocation2 + $0x248] sm:$0xff] 0.0
        %251 = vst [vmem:[#allocation2 + $0x250] sm:$0xff] 0.0
        %252 = vst.msk [vmem:[#allocation2 + $0x258] sm:$0xff] %vm179, 0.0
        %253 = vst [vmem:[#allocation2 + $0x260] sm:$0xff] 0.0
        %254 = vst [vmem:[#allocation2 + $0x268] sm:$0xff] 0.0
        %255 = vst [vmem:[#allocation2 + $0x270] sm:$0xff] 0.0
        %256 = vst.msk [vmem:[#allocation2 + $0x278] sm:$0xff] %vm179, 0.0
        %257 = vst [vmem:[#allocation2 + $0x280] sm:$0xff] 0.0
        %258 = vst [vmem:[#allocation2 + $0x288] sm:$0xff] 0.0
        %259 = vst [vmem:[#allocation2 + $0x290] sm:$0xff] 0.0
        %260 = vst.msk [vmem:[#allocation2 + $0x298] sm:$0xff] %vm179, 0.0
        %261 = vst [vmem:[#allocation2 + $0x2a0] sm:$0xff] 0.0
        %262 = vst [vmem:[#allocation2 + $0x2a8] sm:$0xff] 0.0
        %263 = vst [vmem:[#allocation2 + $0x2b0] sm:$0xff] 0.0
        %264 = vst.msk [vmem:[#allocation2 + $0x2b8] sm:$0xff] %vm179, 0.0
        %265 = vst [vmem:[#allocation2 + $0x2c0] sm:$0xff] 0.0
        %266 = vst [vmem:[#allocation2 + $0x2c8] sm:$0xff] 0.0
        %267 = vst [vmem:[#allocation2 + $0x2d0] sm:$0xff] 0.0
        %268 = vst.msk [vmem:[#allocation2 + $0x2d8] sm:$0xff] %vm179, 0.0
        %269 = vst [vmem:[#allocation2 + $0x2e0] sm:$0xff] 0.0
        %270 = vst [vmem:[#allocation2 + $0x2e8] sm:$0xff] 0.0
        %271 = vst [vmem:[#allocation2 + $0x2f0] sm:$0xff] 0.0
        %272 = vst.msk [vmem:[#allocation2 + $0x2f8] sm:$0xff] %vm179, 0.0
        %273 = vst [vmem:[#allocation2 + $0x300] sm:$0xff] 0.0
        %274 = vst [vmem:[#allocation2 + $0x308] sm:$0xff] 0.0
        %275 = vst [vmem:[#allocation2 + $0x310] sm:$0xff] 0.0
        %276 = vst.msk [vmem:[#allocation2 + $0x318] sm:$0xff] %vm179, 0.0
        %277 = vst [vmem:[#allocation2 + $0x320] sm:$0xff] 0.0
        %278 = vst [vmem:[#allocation2 + $0x328] sm:$0xff] 0.0
        %279 = vst [vmem:[#allocation2 + $0x330] sm:$0xff] 0.0
        %280 = vst.msk [vmem:[#allocation2 + $0x338] sm:$0xff] %vm179, 0.0
        %281 = vst [vmem:[#allocation2 + $0x340] sm:$0xff] 0.0
        %282 = vst [vmem:[#allocation2 + $0x348] sm:$0xff] 0.0
        %283 = vst [vmem:[#allocation2 + $0x350] sm:$0xff] 0.0
        %284 = vst.msk [vmem:[#allocation2 + $0x358] sm:$0xff] %vm179, 0.0
        %285 = vst [vmem:[#allocation2 + $0x360] sm:$0xff] 0.0
        %286 = vst [vmem:[#allocation2 + $0x368] sm:$0xff] 0.0
        %287 = vst [vmem:[#allocation2 + $0x370] sm:$0xff] 0.0
        %288 = vst.msk [vmem:[#allocation2 + $0x378] sm:$0xff] %vm179, 0.0
        %289 = vst [vmem:[#allocation2 + $0x380] sm:$0xff] 0.0
        %290 = vst [vmem:[#allocation2 + $0x388] sm:$0xff] 0.0
        %291 = vst [vmem:[#allocation2 + $0x390] sm:$0xff] 0.0
        %292 = vst.msk [vmem:[#allocation2 + $0x398] sm:$0xff] %vm179, 0.0
        %293 = vst [vmem:[#allocation2 + $0x3a0] sm:$0xff] 0.0
        %294 = vst [vmem:[#allocation2 + $0x3a8] sm:$0xff] 0.0
        %295 = vst [vmem:[#allocation2 + $0x3b0] sm:$0xff] 0.0
        %296 = vst.msk [vmem:[#allocation2 + $0x3b8] sm:$0xff] %vm179, 0.0
        %297 = vst [vmem:[#allocation2 + $0x3c0] sm:$0xff] 0.0
        %298 = vst [vmem:[#allocation2 + $0x3c8] sm:$0xff] 0.0
        %299 = vst [vmem:[#allocation2 + $0x3d0] sm:$0xff] 0.0
        %300 = vst.msk [vmem:[#allocation2 + $0x3d8] sm:$0xff] %vm179, 0.0
        %301 = vst [vmem:[#allocation2 + $0x3e0] sm:$0xff] 0.0
        %302 = vst [vmem:[#allocation2 + $0x3e8] sm:$0xff] 0.0
        %303 = vst [vmem:[#allocation2 + $0x3f0] sm:$0xff] 0.0
        %304 = vst.msk [vmem:[#allocation2 + $0x3f8] sm:$0xff] %vm179, 0.0
        %305 = vst [vmem:[#allocation2 + $0x400] sm:$0xff] 0.0
        %306 = vst [vmem:[#allocation2 + $0x408] sm:$0xff] 0.0
        %307 = vst [vmem:[#allocation2 + $0x410] sm:$0xff] 0.0
        %308 = vst.msk [vmem:[#allocation2 + $0x418] sm:$0xff] %vm179, 0.0
        %309 = vst [vmem:[#allocation2 + $0x420] sm:$0xff] 0.0
        %310 = vst [vmem:[#allocation2 + $0x428] sm:$0xff] 0.0
        %311 = vst [vmem:[#allocation2 + $0x430] sm:$0xff] 0.0
        %312 = vst.msk [vmem:[#allocation2 + $0x438] sm:$0xff] %vm179, 0.0
        %313 = vst [vmem:[#allocation2 + $0x440] sm:$0xff] 0.0
        %314 = vst [vmem:[#allocation2 + $0x448] sm:$0xff] 0.0
        %315 = vst [vmem:[#allocation2 + $0x450] sm:$0xff] 0.0
        %316 = vst.msk [vmem:[#allocation2 + $0x458] sm:$0xff] %vm179, 0.0
        %317 = vst [vmem:[#allocation2 + $0x460] sm:$0xff] 0.0
        %318 = vst [vmem:[#allocation2 + $0x468] sm:$0xff] 0.0
        %319 = vst [vmem:[#allocation2 + $0x470] sm:$0xff] 0.0
        %320 = vst.msk [vmem:[#allocation2 + $0x478] sm:$0xff] %vm179, 0.0
        %321 = vst [vmem:[#allocation2 + $0x480] sm:$0xff] 0.0
        %322 = vst [vmem:[#allocation2 + $0x488] sm:$0xff] 0.0
        %323 = vst [vmem:[#allocation2 + $0x490] sm:$0xff] 0.0
        %324 = vst.msk [vmem:[#allocation2 + $0x498] sm:$0xff] %vm179, 0.0
        %325 = vst [vmem:[#allocation2 + $0x4a0] sm:$0xff] 0.0
        %326 = vst [vmem:[#allocation2 + $0x4a8] sm:$0xff] 0.0
        %327 = vst [vmem:[#allocation2 + $0x4b0] sm:$0xff] 0.0
        %328 = vst.msk [vmem:[#allocation2 + $0x4b8] sm:$0xff] %vm179, 0.0
        %329 = vst [vmem:[#allocation2 + $0x4c0] sm:$0xff] 0.0
        %330 = vst [vmem:[#allocation2 + $0x4c8] sm:$0xff] 0.0
        %331 = vst [vmem:[#allocation2 + $0x4d0] sm:$0xff] 0.0
        %332 = vst.msk [vmem:[#allocation2 + $0x4d8] sm:$0xff] %vm179, 0.0
        %333 = vst [vmem:[#allocation2 + $0x4e0] sm:$0xff] 0.0
        %334 = vst [vmem:[#allocation2 + $0x4e8] sm:$0xff] 0.0
        %335 = vst [vmem:[#allocation2 + $0x4f0] sm:$0xff] 0.0
        %336 = vst.msk [vmem:[#allocation2 + $0x4f8] sm:$0xff] %vm179, 0.0
        %337 = vst [vmem:[#allocation2 + $0x500] sm:$0xff] 0.0
        %338 = vst [vmem:[#allocation2 + $0x508] sm:$0xff] 0.0
        %339 = vst [vmem:[#allocation2 + $0x510] sm:$0xff] 0.0
        %340 = vst.msk [vmem:[#allocation2 + $0x518] sm:$0xff] %vm179, 0.0
        %341 = vst [vmem:[#allocation2 + $0x520] sm:$0xff] 0.0
        %342 = vst [vmem:[#allocation2 + $0x528] sm:$0xff] 0.0
        %343 = vst [vmem:[#allocation2 + $0x530] sm:$0xff] 0.0
        %344 = vst.msk [vmem:[#allocation2 + $0x538] sm:$0xff] %vm179, 0.0
        %345 = vst [vmem:[#allocation2 + $0x540] sm:$0xff] 0.0
        %346 = vst [vmem:[#allocation2 + $0x548] sm:$0xff] 0.0
        %347 = vst [vmem:[#allocation2 + $0x550] sm:$0xff] 0.0
        %348 = vst.msk [vmem:[#allocation2 + $0x558] sm:$0xff] %vm179, 0.0
        %349 = vst [vmem:[#allocation2 + $0x560] sm:$0xff] 0.0
        %350 = vst [vmem:[#allocation2 + $0x568] sm:$0xff] 0.0
        %351 = vst [vmem:[#allocation2 + $0x570] sm:$0xff] 0.0
        %352 = vst.msk [vmem:[#allocation2 + $0x578] sm:$0xff] %vm179, 0.0
        %353 = vst [vmem:[#allocation2 + $0x580] sm:$0xff] 0.0
        %354 = vst [vmem:[#allocation2 + $0x588] sm:$0xff] 0.0
        %355 = vst [vmem:[#allocation2 + $0x590] sm:$0xff] 0.0
        %356 = vst.msk [vmem:[#allocation2 + $0x598] sm:$0xff] %vm179, 0.0
        %357 = vst [vmem:[#allocation2 + $0x5a0] sm:$0xff] 0.0
        %358 = vst [vmem:[#allocation2 + $0x5a8] sm:$0xff] 0.0
        %359 = vst [vmem:[#allocation2 + $0x5b0] sm:$0xff] 0.0
        %360 = vst.msk [vmem:[#allocation2 + $0x5b8] sm:$0xff] %vm179, 0.0
        %361 = vst [vmem:[#allocation2 + $0x5c0] sm:$0xff] 0.0
        %362 = vst [vmem:[#allocation2 + $0x5c8] sm:$0xff] 0.0
        %363 = vst [vmem:[#allocation2 + $0x5d0] sm:$0xff] 0.0
        %364 = vst.msk [vmem:[#allocation2 + $0x5d8] sm:$0xff] %vm179, 0.0
        %365 = vst [vmem:[#allocation2 + $0x5e0] sm:$0xff] 0.0
        %366 = vst [vmem:[#allocation2 + $0x5e8] sm:$0xff] 0.0
        %367 = vst [vmem:[#allocation2 + $0x5f0] sm:$0xff] 0.0
        %368 = vst.msk [vmem:[#allocation2 + $0x5f8] sm:$0xff] %vm179, 0.0
        %369 = vst [vmem:[#allocation2 + $0x600] sm:$0xff] 0.0
        %370 = vst [vmem:[#allocation2 + $0x608] sm:$0xff] 0.0
        %371 = vst [vmem:[#allocation2 + $0x610] sm:$0xff] 0.0
        %372 = vst.msk [vmem:[#allocation2 + $0x618] sm:$0xff] %vm179, 0.0
        %373 = vst [vmem:[#allocation2 + $0x620] sm:$0xff] 0.0
        %374 = vst [vmem:[#allocation2 + $0x628] sm:$0xff] 0.0
        %375 = vst [vmem:[#allocation2 + $0x630] sm:$0xff] 0.0
        %376 = vst.msk [vmem:[#allocation2 + $0x638] sm:$0xff] %vm179, 0.0
        %377 = vst [vmem:[#allocation2 + $0x640] sm:$0xff] 0.0
        %378 = vst [vmem:[#allocation2 + $0x648] sm:$0xff] 0.0
        %379 = vst [vmem:[#allocation2 + $0x650] sm:$0xff] 0.0
        %380 = vst.msk [vmem:[#allocation2 + $0x658] sm:$0xff] %vm179, 0.0
        %381 = vst [vmem:[#allocation2 + $0x660] sm:$0xff] 0.0
        %382 = vst [vmem:[#allocation2 + $0x668] sm:$0xff] 0.0
        %383 = vst [vmem:[#allocation2 + $0x670] sm:$0xff] 0.0
        %384 = vst.msk [vmem:[#allocation2 + $0x678] sm:$0xff] %vm179, 0.0
        %385 = vst [vmem:[#allocation2 + $0x680] sm:$0xff] 0.0
        %386 = vst [vmem:[#allocation2 + $0x688] sm:$0xff] 0.0
        %387 = vst [vmem:[#allocation2 + $0x690] sm:$0xff] 0.0
        %388 = vst.msk [vmem:[#allocation2 + $0x698] sm:$0xff] %vm179, 0.0
        %389 = vst [vmem:[#allocation2 + $0x6a0] sm:$0xff] 0.0
        %390 = vst [vmem:[#allocation2 + $0x6a8] sm:$0xff] 0.0
        %391 = vst [vmem:[#allocation2 + $0x6b0] sm:$0xff] 0.0
        %392 = vst.msk [vmem:[#allocation2 + $0x6b8] sm:$0xff] %vm179, 0.0
        %393 = vst [vmem:[#allocation2 + $0x6c0] sm:$0xff] 0.0
        %394 = vst [vmem:[#allocation2 + $0x6c8] sm:$0xff] 0.0
        %395 = vst [vmem:[#allocation2 + $0x6d0] sm:$0xff] 0.0
        %396 = vst.msk [vmem:[#allocation2 + $0x6d8] sm:$0xff] %vm179, 0.0
        %397 = vst [vmem:[#allocation2 + $0x6e0] sm:$0xff] 0.0
        %398 = vst [vmem:[#allocation2 + $0x6e8] sm:$0xff] 0.0
        %399 = vst [vmem:[#allocation2 + $0x6f0] sm:$0xff] 0.0
        %400 = vst.msk [vmem:[#allocation2 + $0x6f8] sm:$0xff] %vm179, 0.0
        %401 = vst [vmem:[#allocation2 + $0x700] sm:$0xff] 0.0
        %402 = vst [vmem:[#allocation2 + $0x708] sm:$0xff] 0.0
        %403 = vst [vmem:[#allocation2 + $0x710] sm:$0xff] 0.0
        %404 = vst.msk [vmem:[#allocation2 + $0x718] sm:$0xff] %vm179, 0.0
        %405 = vst [vmem:[#allocation2 + $0x720] sm:$0xff] 0.0
        %406 = vst [vmem:[#allocation2 + $0x728] sm:$0xff] 0.0
        %407 = vst [vmem:[#allocation2 + $0x730] sm:$0xff] 0.0
        %408 = vst.msk [vmem:[#allocation2 + $0x738] sm:$0xff] %vm179, 0.0
        %409 = vst [vmem:[#allocation2 + $0x740] sm:$0xff] 0.0
        %410 = vst [vmem:[#allocation2 + $0x748] sm:$0xff] 0.0
        %411 = vst [vmem:[#allocation2 + $0x750] sm:$0xff] 0.0
        %412 = vst.msk [vmem:[#allocation2 + $0x758] sm:$0xff] %vm179, 0.0
        %413 = vst [vmem:[#allocation2 + $0x760] sm:$0xff] 0.0
        %414 = vst [vmem:[#allocation2 + $0x768] sm:$0xff] 0.0
        %415 = vst [vmem:[#allocation2 + $0x770] sm:$0xff] 0.0
        %416 = vst.msk [vmem:[#allocation2 + $0x778] sm:$0xff] %vm179, 0.0
        %417 = vst [vmem:[#allocation2 + $0x780] sm:$0xff] 0.0
        %418 = vst [vmem:[#allocation2 + $0x788] sm:$0xff] 0.0
        %419 = vst [vmem:[#allocation2 + $0x790] sm:$0xff] 0.0
        %420 = vst.msk [vmem:[#allocation2 + $0x798] sm:$0xff] %vm179, 0.0
        %421 = vst [vmem:[#allocation2 + $0x7a0] sm:$0xff] 0.0
        %422 = vst [vmem:[#allocation2 + $0x7a8] sm:$0xff] 0.0
        %423 = vst [vmem:[#allocation2 + $0x7b0] sm:$0xff] 0.0
        %424 = vst.msk [vmem:[#allocation2 + $0x7b8] sm:$0xff] %vm179, 0.0
        %425 = vst [vmem:[#allocation2 + $0x7c0] sm:$0xff] 0.0
        %426 = vst [vmem:[#allocation2 + $0x7c8] sm:$0xff] 0.0
        %427 = vst [vmem:[#allocation2 + $0x7d0] sm:$0xff] 0.0
        %428 = vst.msk [vmem:[#allocation2 + $0x7d8] sm:$0xff] %vm179, 0.0
        %429 = vst [vmem:[#allocation2 + $0x7e0] sm:$0xff] 0.0
        %430 = vst [vmem:[#allocation2 + $0x7e8] sm:$0xff] 0.0
        %431 = vst [vmem:[#allocation2 + $0x7f0] sm:$0xff] 0.0
        %432 = vst.msk [vmem:[#allocation2 + $0x7f8] sm:$0xff] %vm179, 0.0
        %433 = vst [vmem:[#allocation2 + $0x800] sm:$0xff] 0.0
        %434 = vst [vmem:[#allocation2 + $0x808] sm:$0xff] 0.0
        %435 = vst [vmem:[#allocation2 + $0x810] sm:$0xff] 0.0
        %436 = vst.msk [vmem:[#allocation2 + $0x818] sm:$0xff] %vm179, 0.0
        %437 = vst [vmem:[#allocation2 + $0x820] sm:$0xff] 0.0
        %438 = vst [vmem:[#allocation2 + $0x828] sm:$0xff] 0.0
        %439 = vst [vmem:[#allocation2 + $0x830] sm:$0xff] 0.0
        %440 = vst.msk [vmem:[#allocation2 + $0x838] sm:$0xff] %vm179, 0.0
        %441 = vst [vmem:[#allocation2 + $0x840] sm:$0xff] 0.0
        %442 = vst [vmem:[#allocation2 + $0x848] sm:$0xff] 0.0
        %443 = vst [vmem:[#allocation2 + $0x850] sm:$0xff] 0.0
        %444 = vst.msk [vmem:[#allocation2 + $0x858] sm:$0xff] %vm179, 0.0
        %445 = vst [vmem:[#allocation2 + $0x860] sm:$0xff] 0.0
        %446 = vst [vmem:[#allocation2 + $0x868] sm:$0xff] 0.0
        %447 = vst [vmem:[#allocation2 + $0x870] sm:$0xff] 0.0
        %448 = vst.msk [vmem:[#allocation2 + $0x878] sm:$0xff] %vm179, 0.0
        %449 = vst [vmem:[#allocation2 + $0x880] sm:$0xff] 0.0
        %450 = vst [vmem:[#allocation2 + $0x888] sm:$0xff] 0.0
        %451 = vst [vmem:[#allocation2 + $0x890] sm:$0xff] 0.0
        %452 = vst.msk [vmem:[#allocation2 + $0x898] sm:$0xff] %vm179, 0.0
        %453 = vst [vmem:[#allocation2 + $0x8a0] sm:$0xff] 0.0
        %454 = vst [vmem:[#allocation2 + $0x8a8] sm:$0xff] 0.0
        %455 = vst [vmem:[#allocation2 + $0x8b0] sm:$0xff] 0.0
        %456 = vst.msk [vmem:[#allocation2 + $0x8b8] sm:$0xff] %vm179, 0.0
        %457 = vst [vmem:[#allocation2 + $0x8c0] sm:$0xff] 0.0
        %458 = vst [vmem:[#allocation2 + $0x8c8] sm:$0xff] 0.0
        %459 = vst [vmem:[#allocation2 + $0x8d0] sm:$0xff] 0.0
        %460 = vst.msk [vmem:[#allocation2 + $0x8d8] sm:$0xff] %vm179, 0.0
        %461 = vst [vmem:[#allocation2 + $0x8e0] sm:$0xff] 0.0
        %462 = vst [vmem:[#allocation2 + $0x8e8] sm:$0xff] 0.0
        %463 = vst [vmem:[#allocation2 + $0x8f0] sm:$0xff] 0.0
        %464 = vst.msk [vmem:[#allocation2 + $0x8f8] sm:$0xff] %vm179, 0.0
        %465 = vst [vmem:[#allocation2 + $0x900] sm:$0xff] 0.0
        %466 = vst [vmem:[#allocation2 + $0x908] sm:$0xff] 0.0
        %467 = vst [vmem:[#allocation2 + $0x910] sm:$0xff] 0.0
        %468 = vst.msk [vmem:[#allocation2 + $0x918] sm:$0xff] %vm179, 0.0
        %469 = vst [vmem:[#allocation2 + $0x920] sm:$0xff] 0.0
        %470 = vst [vmem:[#allocation2 + $0x928] sm:$0xff] 0.0
        %471 = vst [vmem:[#allocation2 + $0x930] sm:$0xff] 0.0
        %472 = vst.msk [vmem:[#allocation2 + $0x938] sm:$0xff] %vm179, 0.0
        %473 = vst [vmem:[#allocation2 + $0x940] sm:$0xff] 0.0
        %474 = vst [vmem:[#allocation2 + $0x948] sm:$0xff] 0.0
        %475 = vst [vmem:[#allocation2 + $0x950] sm:$0xff] 0.0
        %476 = vst.msk [vmem:[#allocation2 + $0x958] sm:$0xff] %vm179, 0.0
        %477 = vst [vmem:[#allocation2 + $0x960] sm:$0xff] 0.0
        %478 = vst [vmem:[#allocation2 + $0x968] sm:$0xff] 0.0
        %479 = vst [vmem:[#allocation2 + $0x970] sm:$0xff] 0.0
        %480 = vst.msk [vmem:[#allocation2 + $0x978] sm:$0xff] %vm179, 0.0
        %481 = vst [vmem:[#allocation2 + $0x980] sm:$0xff] 0.0
        %482 = vst [vmem:[#allocation2 + $0x988] sm:$0xff] 0.0
        %483 = vst [vmem:[#allocation2 + $0x990] sm:$0xff] 0.0
        %484 = vst.msk [vmem:[#allocation2 + $0x998] sm:$0xff] %vm179, 0.0
        %485 = vst [vmem:[#allocation2 + $0x9a0] sm:$0xff] 0.0
        %486 = vst [vmem:[#allocation2 + $0x9a8] sm:$0xff] 0.0
        %487 = vst [vmem:[#allocation2 + $0x9b0] sm:$0xff] 0.0
        %488 = vst.msk [vmem:[#allocation2 + $0x9b8] sm:$0xff] %vm179, 0.0
        %489 = vst [vmem:[#allocation2 + $0x9c0] sm:$0xff] 0.0
        %490 = vst [vmem:[#allocation2 + $0x9c8] sm:$0xff] 0.0
        %491 = vst [vmem:[#allocation2 + $0x9d0] sm:$0xff] 0.0
        %492 = vst.msk [vmem:[#allocation2 + $0x9d8] sm:$0xff] %vm179, 0.0
        %493 = vst [vmem:[#allocation2 + $0x9e0] sm:$0xff] 0.0
        %494 = vst [vmem:[#allocation2 + $0x9e8] sm:$0xff] 0.0
        %495 = vst [vmem:[#allocation2 + $0x9f0] sm:$0xff] 0.0
        %496 = vst.msk [vmem:[#allocation2 + $0x9f8] sm:$0xff] %vm179, 0.0
        %497 = vst [vmem:[#allocation2 + $0xa00] sm:$0xff] 0.0
        %498 = vst [vmem:[#allocation2 + $0xa08] sm:$0xff] 0.0
        %499 = vst [vmem:[#allocation2 + $0xa10] sm:$0xff] 0.0
        %500 = vst.msk [vmem:[#allocation2 + $0xa18] sm:$0xff] %vm179, 0.0
        %501 = vst [vmem:[#allocation2 + $0xa20] sm:$0xff] 0.0
        %502 = vst [vmem:[#allocation2 + $0xa28] sm:$0xff] 0.0
        %503 = vst [vmem:[#allocation2 + $0xa30] sm:$0xff] 0.0
        %504 = vst.msk [vmem:[#allocation2 + $0xa38] sm:$0xff] %vm179, 0.0
        %505 = vst [vmem:[#allocation2 + $0xa40] sm:$0xff] 0.0
        %506 = vst [vmem:[#allocation2 + $0xa48] sm:$0xff] 0.0
        %507 = vst [vmem:[#allocation2 + $0xa50] sm:$0xff] 0.0
        %508 = vst.msk [vmem:[#allocation2 + $0xa58] sm:$0xff] %vm179, 0.0
        %509 = vst [vmem:[#allocation2 + $0xa60] sm:$0xff] 0.0
        %510 = vst [vmem:[#allocation2 + $0xa68] sm:$0xff] 0.0
        %511 = vst [vmem:[#allocation2 + $0xa70] sm:$0xff] 0.0
        %512 = vst.msk [vmem:[#allocation2 + $0xa78] sm:$0xff] %vm179, 0.0
        %513 = vst [vmem:[#allocation2 + $0xa80] sm:$0xff] 0.0
        %514 = vst [vmem:[#allocation2 + $0xa88] sm:$0xff] 0.0
        %515 = vst [vmem:[#allocation2 + $0xa90] sm:$0xff] 0.0
        %516 = vst.msk [vmem:[#allocation2 + $0xa98] sm:$0xff] %vm179, 0.0
        %517 = vst [vmem:[#allocation2 + $0xaa0] sm:$0xff] 0.0
        %518 = vst [vmem:[#allocation2 + $0xaa8] sm:$0xff] 0.0
        %519 = vst [vmem:[#allocation2 + $0xab0] sm:$0xff] 0.0
        %520 = vst.msk [vmem:[#allocation2 + $0xab8] sm:$0xff] %vm179, 0.0
        %521 = vst [vmem:[#allocation2 + $0xac0] sm:$0xff] 0.0
        %522 = vst [vmem:[#allocation2 + $0xac8] sm:$0xff] 0.0
        %523 = vst [vmem:[#allocation2 + $0xad0] sm:$0xff] 0.0
        %524 = vst.msk [vmem:[#allocation2 + $0xad8] sm:$0xff] %vm179, 0.0
        %525 = vst [vmem:[#allocation2 + $0xae0] sm:$0xff] 0.0
        %526 = vst [vmem:[#allocation2 + $0xae8] sm:$0xff] 0.0
        %527 = vst [vmem:[#allocation2 + $0xaf0] sm:$0xff] 0.0
        %528 = vst.msk [vmem:[#allocation2 + $0xaf8] sm:$0xff] %vm179, 0.0
        %529 = vst [vmem:[#allocation2 + $0xb00] sm:$0xff] 0.0
        %530 = vst [vmem:[#allocation2 + $0xb08] sm:$0xff] 0.0
        %531 = vst [vmem:[#allocation2 + $0xb10] sm:$0xff] 0.0
        %532 = vst.msk [vmem:[#allocation2 + $0xb18] sm:$0xff] %vm179, 0.0
        %533 = vst [vmem:[#allocation2 + $0xb20] sm:$0xff] 0.0
        %534 = vst [vmem:[#allocation2 + $0xb28] sm:$0xff] 0.0
        %535 = vst [vmem:[#allocation2 + $0xb30] sm:$0xff] 0.0
        %536 = vst.msk [vmem:[#allocation2 + $0xb38] sm:$0xff] %vm179, 0.0
        %537 = vst [vmem:[#allocation2 + $0xb40] sm:$0xff] 0.0
        %538 = vst [vmem:[#allocation2 + $0xb48] sm:$0xff] 0.0
        %539 = vst [vmem:[#allocation2 + $0xb50] sm:$0xff] 0.0
        %540 = vst.msk [vmem:[#allocation2 + $0xb58] sm:$0xff] %vm179, 0.0
        %541 = vst [vmem:[#allocation2 + $0xb60] sm:$0xff] 0.0
        %542 = vst [vmem:[#allocation2 + $0xb68] sm:$0xff] 0.0
        %543 = vst [vmem:[#allocation2 + $0xb70] sm:$0xff] 0.0
        %544 = vst.msk [vmem:[#allocation2 + $0xb78] sm:$0xff] %vm179, 0.0
        %545 = vst [vmem:[#allocation2 + $0xb80] sm:$0xff] 0.0
        %546 = vst [vmem:[#allocation2 + $0xb88] sm:$0xff] 0.0
        %547 = vst [vmem:[#allocation2 + $0xb90] sm:$0xff] 0.0
        %548 = vst.msk [vmem:[#allocation2 + $0xb98] sm:$0xff] %vm179, 0.0
        %549 = vst [vmem:[#allocation2 + $0xba0] sm:$0xff] 0.0
        %550 = vst [vmem:[#allocation2 + $0xba8] sm:$0xff] 0.0
        %551 = vst [vmem:[#allocation2 + $0xbb0] sm:$0xff] 0.0
        %552 = vst.msk [vmem:[#allocation2 + $0xbb8] sm:$0xff] %vm179, 0.0
        %553 = vst [vmem:[#allocation2 + $0xbc0] sm:$0xff] 0.0
        %554 = vst [vmem:[#allocation2 + $0xbc8] sm:$0xff] 0.0
        %555 = vst [vmem:[#allocation2 + $0xbd0] sm:$0xff] 0.0
        %556 = vst.msk [vmem:[#allocation2 + $0xbd8] sm:$0xff] %vm179, 0.0
        %557 = vst [vmem:[#allocation2 + $0xbe0] sm:$0xff] 0.0
        %558 = vst [vmem:[#allocation2 + $0xbe8] sm:$0xff] 0.0
        %559 = vst [vmem:[#allocation2 + $0xbf0] sm:$0xff] 0.0
        %560 = vst.msk [vmem:[#allocation2 + $0xbf8] sm:$0xff] %vm179, 0.0
        %561 = vst [vmem:[#allocation2 + $0xc00] sm:$0xff] 0.0
        %562 = vst [vmem:[#allocation2 + $0xc08] sm:$0xff] 0.0
        %563 = vst [vmem:[#allocation2 + $0xc10] sm:$0xff] 0.0
        %564 = vst.msk [vmem:[#allocation2 + $0xc18] sm:$0xff] %vm179, 0.0
        %565 = vst [vmem:[#allocation2 + $0xc20] sm:$0xff] 0.0
        %566 = vst [vmem:[#allocation2 + $0xc28] sm:$0xff] 0.0
        %567 = vst [vmem:[#allocation2 + $0xc30] sm:$0xff] 0.0
        %568 = vst.msk [vmem:[#allocation2 + $0xc38] sm:$0xff] %vm179, 0.0
        %569 = vst [vmem:[#allocation2 + $0xc40] sm:$0xff] 0.0
        %570 = vst [vmem:[#allocation2 + $0xc48] sm:$0xff] 0.0
        %571 = vst [vmem:[#allocation2 + $0xc50] sm:$0xff] 0.0
        %572 = vst.msk [vmem:[#allocation2 + $0xc58] sm:$0xff] %vm179, 0.0
        %573 = vst [vmem:[#allocation2 + $0xc60] sm:$0xff] 0.0
        %574 = vst [vmem:[#allocation2 + $0xc68] sm:$0xff] 0.0
        %575 = vst [vmem:[#allocation2 + $0xc70] sm:$0xff] 0.0
        %576 = vst.msk [vmem:[#allocation2 + $0xc78] sm:$0xff] %vm179, 0.0
        %577 = vst [vmem:[#allocation2 + $0xc80] sm:$0xff] 0.0
        %578 = vst [vmem:[#allocation2 + $0xc88] sm:$0xff] 0.0
        %579 = vst [vmem:[#allocation2 + $0xc90] sm:$0xff] 0.0
        %580 = vst.msk [vmem:[#allocation2 + $0xc98] sm:$0xff] %vm179, 0.0
        %581 = vst [vmem:[#allocation2 + $0xca0] sm:$0xff] 0.0
        %582 = vst [vmem:[#allocation2 + $0xca8] sm:$0xff] 0.0
        %583 = vst [vmem:[#allocation2 + $0xcb0] sm:$0xff] 0.0
        %584 = vst.msk [vmem:[#allocation2 + $0xcb8] sm:$0xff] %vm179, 0.0
        %585 = vst [vmem:[#allocation2 + $0xcc0] sm:$0xff] 0.0
        %586 = vst [vmem:[#allocation2 + $0xcc8] sm:$0xff] 0.0
        %587 = vst [vmem:[#allocation2 + $0xcd0] sm:$0xff] 0.0
        %588 = vst.msk [vmem:[#allocation2 + $0xcd8] sm:$0xff] %vm179, 0.0
        %589 = vst [vmem:[#allocation2 + $0xce0] sm:$0xff] 0.0
        %590 = vst [vmem:[#allocation2 + $0xce8] sm:$0xff] 0.0
        %591 = vst [vmem:[#allocation2 + $0xcf0] sm:$0xff] 0.0
        %592 = vst.msk [vmem:[#allocation2 + $0xcf8] sm:$0xff] %vm179, 0.0
        %593 = vst [vmem:[#allocation2 + $0xd00] sm:$0xff] 0.0
        %594 = vst [vmem:[#allocation2 + $0xd08] sm:$0xff] 0.0
        %595 = vst [vmem:[#allocation2 + $0xd10] sm:$0xff] 0.0
        %596 = vst.msk [vmem:[#allocation2 + $0xd18] sm:$0xff] %vm179, 0.0
        %597 = vst [vmem:[#allocation2 + $0xd20] sm:$0xff] 0.0
        %598 = vst [vmem:[#allocation2 + $0xd28] sm:$0xff] 0.0
        %599 = vst [vmem:[#allocation2 + $0xd30] sm:$0xff] 0.0
        %600 = vst.msk [vmem:[#allocation2 + $0xd38] sm:$0xff] %vm179, 0.0
        %601 = vst [vmem:[#allocation2 + $0xd40] sm:$0xff] 0.0
        %602 = vst [vmem:[#allocation2 + $0xd48] sm:$0xff] 0.0
        %603 = vst [vmem:[#allocation2 + $0xd50] sm:$0xff] 0.0
        %604 = vst.msk [vmem:[#allocation2 + $0xd58] sm:$0xff] %vm179, 0.0
        %605 = vst [vmem:[#allocation2 + $0xd60] sm:$0xff] 0.0
        %606 = vst [vmem:[#allocation2 + $0xd68] sm:$0xff] 0.0
        %607 = vst [vmem:[#allocation2 + $0xd70] sm:$0xff] 0.0
        %608 = vst.msk [vmem:[#allocation2 + $0xd78] sm:$0xff] %vm179, 0.0
        %609 = vst [vmem:[#allocation2 + $0xd80] sm:$0xff] 0.0
        %610 = vst [vmem:[#allocation2 + $0xd88] sm:$0xff] 0.0
        %611 = vst [vmem:[#allocation2 + $0xd90] sm:$0xff] 0.0
        %612 = vst.msk [vmem:[#allocation2 + $0xd98] sm:$0xff] %vm179, 0.0
        %613 = vst [vmem:[#allocation2 + $0xda0] sm:$0xff] 0.0
        %614 = vst [vmem:[#allocation2 + $0xda8] sm:$0xff] 0.0
        %615 = vst [vmem:[#allocation2 + $0xdb0] sm:$0xff] 0.0
        %616 = vst.msk [vmem:[#allocation2 + $0xdb8] sm:$0xff] %vm179, 0.0
        %617 = vst [vmem:[#allocation2 + $0xdc0] sm:$0xff] 0.0
        %618 = vst [vmem:[#allocation2 + $0xdc8] sm:$0xff] 0.0
        %619 = vst [vmem:[#allocation2 + $0xdd0] sm:$0xff] 0.0
        %620 = vst.msk [vmem:[#allocation2 + $0xdd8] sm:$0xff] %vm179, 0.0
        %621 = vst [vmem:[#allocation2 + $0xde0] sm:$0xff] 0.0
        %622 = vst [vmem:[#allocation2 + $0xde8] sm:$0xff] 0.0
        %623 = vst [vmem:[#allocation2 + $0xdf0] sm:$0xff] 0.0
        %624 = vst.msk [vmem:[#allocation2 + $0xdf8] sm:$0xff] %vm179, 0.0
        %625 = vst [vmem:[#allocation2 + $0xe00] sm:$0xff] 0.0
        %626 = vst [vmem:[#allocation2 + $0xe08] sm:$0xff] 0.0
        %627 = vst [vmem:[#allocation2 + $0xe10] sm:$0xff] 0.0
        %628 = vst.msk [vmem:[#allocation2 + $0xe18] sm:$0xff] %vm179, 0.0
        %629 = vst [vmem:[#allocation2 + $0xe20] sm:$0xff] 0.0
        %630 = vst [vmem:[#allocation2 + $0xe28] sm:$0xff] 0.0
        %631 = vst [vmem:[#allocation2 + $0xe30] sm:$0xff] 0.0
        %632 = vst.msk [vmem:[#allocation2 + $0xe38] sm:$0xff] %vm179, 0.0
        %633 = vst [vmem:[#allocation2 + $0xe40] sm:$0xff] 0.0
        %634 = vst [vmem:[#allocation2 + $0xe48] sm:$0xff] 0.0
        %635 = vst [vmem:[#allocation2 + $0xe50] sm:$0xff] 0.0
        %636 = vst.msk [vmem:[#allocation2 + $0xe58] sm:$0xff] %vm179, 0.0
        %637 = vst [vmem:[#allocation2 + $0xe60] sm:$0xff] 0.0
        %638 = vst [vmem:[#allocation2 + $0xe68] sm:$0xff] 0.0
        %639 = vst [vmem:[#allocation2 + $0xe70] sm:$0xff] 0.0
        %640 = vst.msk [vmem:[#allocation2 + $0xe78] sm:$0xff] %vm179, 0.0
        %641 = vst [vmem:[#allocation2 + $0xe80] sm:$0xff] 0.0
        %642 = vst [vmem:[#allocation2 + $0xe88] sm:$0xff] 0.0
        %643 = vst [vmem:[#allocation2 + $0xe90] sm:$0xff] 0.0
        %644 = vst.msk [vmem:[#allocation2 + $0xe98] sm:$0xff] %vm179, 0.0
        %645 = vst [vmem:[#allocation2 + $0xea0] sm:$0xff] 0.0
        %646 = vst [vmem:[#allocation2 + $0xea8] sm:$0xff] 0.0
        %647 = vst [vmem:[#allocation2 + $0xeb0] sm:$0xff] 0.0
        %648 = vst.msk [vmem:[#allocation2 + $0xeb8] sm:$0xff] %vm179, 0.0
        %649 = vst [vmem:[#allocation2 + $0xec0] sm:$0xff] 0.0
        %650 = vst [vmem:[#allocation2 + $0xec8] sm:$0xff] 0.0
        %651 = vst [vmem:[#allocation2 + $0xed0] sm:$0xff] 0.0
        %652 = vst.msk [vmem:[#allocation2 + $0xed8] sm:$0xff] %vm179, 0.0
        %653 = vst [vmem:[#allocation2 + $0xee0] sm:$0xff] 0.0
        %654 = vst [vmem:[#allocation2 + $0xee8] sm:$0xff] 0.0
        %655 = vst [vmem:[#allocation2 + $0xef0] sm:$0xff] 0.0
        %656 = vst.msk [vmem:[#allocation2 + $0xef8] sm:$0xff] %vm179, 0.0
        %657 = vst [vmem:[#allocation2 + $0xf00] sm:$0xff] 0.0
        %658 = vst [vmem:[#allocation2 + $0xf08] sm:$0xff] 0.0
        %659 = vst [vmem:[#allocation2 + $0xf10] sm:$0xff] 0.0
        %660 = vst.msk [vmem:[#allocation2 + $0xf18] sm:$0xff] %vm179, 0.0
        %661 = vst [vmem:[#allocation2 + $0xf20] sm:$0xff] 0.0
        %662 = vst [vmem:[#allocation2 + $0xf28] sm:$0xff] 0.0
        %663 = vst [vmem:[#allocation2 + $0xf30] sm:$0xff] 0.0
        %664 = vst.msk [vmem:[#allocation2 + $0xf38] sm:$0xff] %vm179, 0.0
        %665 = vst [vmem:[#allocation2 + $0xf40] sm:$0xff] 0.0
        %666 = vst [vmem:[#allocation2 + $0xf48] sm:$0xff] 0.0
        %667 = vst [vmem:[#allocation2 + $0xf50] sm:$0xff] 0.0
        %668 = vst.msk [vmem:[#allocation2 + $0xf58] sm:$0xff] %vm179, 0.0
        %669 = vst [vmem:[#allocation2 + $0xf60] sm:$0xff] 0.0
        %670 = vst [vmem:[#allocation2 + $0xf68] sm:$0xff] 0.0
        %671 = vst [vmem:[#allocation2 + $0xf70] sm:$0xff] 0.0
        %672 = vst.msk [vmem:[#allocation2 + $0xf78] sm:$0xff] %vm179, 0.0
        %673 = vst [vmem:[#allocation2 + $0xf80] sm:$0xff] 0.0
        %674 = vst [vmem:[#allocation2 + $0xf88] sm:$0xff] 0.0
        %675 = vst [vmem:[#allocation2 + $0xf90] sm:$0xff] 0.0
        %676 = vst.msk [vmem:[#allocation2 + $0xf98] sm:$0xff] %vm179, 0.0
        %677 = vst [vmem:[#allocation2 + $0xfa0] sm:$0xff] 0.0
        %678 = vst [vmem:[#allocation2 + $0xfa8] sm:$0xff] 0.0
        %679 = vst [vmem:[#allocation2 + $0xfb0] sm:$0xff] 0.0
        %680 = vst.msk [vmem:[#allocation2 + $0xfb8] sm:$0xff] %vm179, 0.0
        %681 = vst [vmem:[#allocation2 + $0xfc0] sm:$0xff] 0.0
        %682 = vst [vmem:[#allocation2 + $0xfc8] sm:$0xff] 0.0
        %683 = vst [vmem:[#allocation2 + $0xfd0] sm:$0xff] 0.0
        %684 = vst.msk [vmem:[#allocation2 + $0xfd8] sm:$0xff] %vm179, 0.0
        %685 = vst [vmem:[#allocation2 + $0xfe0] sm:$0xff] 0.0
        %686 = vst [vmem:[#allocation2 + $0xfe8] sm:$0xff] 0.0
        %687 = vst [vmem:[#allocation2 + $0xff0] sm:$0xff] 0.0
        %688 = vst.msk [vmem:[#allocation2 + $0xff8] sm:$0xff] %vm179, 0.0
        %v689 = vld [vmem:[%s1] sm:$0xf]
        %v691 = vlaneseq
        %v692 = vshrl.u32 %v691, 7
        %v693 = vsub.s32 0, %v692
        %v694 = vrot.slane %v689, %v693
        %v695 = vlaneseq
        %v696 = vshrl.u32 %v695, 7
        %v697 = vsub.s32 1, %v696
        %v698 = vrot.slane %v689, %v697
        %v699 = vlaneseq
        %v700 = vshrl.u32 %v699, 7
        %v701 = vsub.s32 2, %v700
        %v702 = vrot.slane %v689, %v701
        %v703 = vlaneseq
        %v704 = vshrl.u32 %v703, 7
        %v705 = vsub.s32 3, %v704
        %v706 = vrot.slane %v689, %v705
        %711 = vst [vmem:[#allocation3] sm:$0xff] %v694
        %712 = vst [vmem:[#allocation3 + $0x8] sm:$0xff] %v698
        %713 = vst [vmem:[#allocation3 + $0x10] sm:$0xff] %v702
        %714 = vst.msk [vmem:[#allocation3 + $0x18] sm:$0xff] %vm179, %v706
        %715 = vst [vmem:[#allocation3 + $0x20] sm:$0xff] %v694
        %716 = vst [vmem:[#allocation3 + $0x28] sm:$0xff] %v698
        %717 = vst [vmem:[#allocation3 + $0x30] sm:$0xff] %v702
        %718 = vst.msk [vmem:[#allocation3 + $0x38] sm:$0xff] %vm179, %v706
        %719 = vst [vmem:[#allocation3 + $0x40] sm:$0xff] %v694
        %720 = vst [vmem:[#allocation3 + $0x48] sm:$0xff] %v698
        %721 = vst [vmem:[#allocation3 + $0x50] sm:$0xff] %v702
        %722 = vst.msk [vmem:[#allocation3 + $0x58] sm:$0xff] %vm179, %v706
        %723 = vst [vmem:[#allocation3 + $0x60] sm:$0xff] %v694
        %724 = vst [vmem:[#allocation3 + $0x68] sm:$0xff] %v698
        %725 = vst [vmem:[#allocation3 + $0x70] sm:$0xff] %v702
        %726 = vst.msk [vmem:[#allocation3 + $0x78] sm:$0xff] %vm179, %v706
        %s727 = scalar_lea.vmem %s1, 4
        %v728 = vld [vmem:[%s727] sm:$0xf]
        %v730 = vlaneseq
        %v731 = vshrl.u32 %v730, 7
        %v732 = vsub.s32 0, %v731
        %v733 = vrot.slane %v728, %v732
        %v734 = vlaneseq
        %v735 = vshrl.u32 %v734, 7
        %v736 = vsub.s32 1, %v735
        %v737 = vrot.slane %v728, %v736
        %v738 = vlaneseq
        %v739 = vshrl.u32 %v738, 7
        %v740 = vsub.s32 2, %v739
        %v741 = vrot.slane %v728, %v740
        %v742 = vlaneseq
        %v743 = vshrl.u32 %v742, 7
        %v744 = vsub.s32 3, %v743
        %v745 = vrot.slane %v728, %v744
        %s750 = scalar_lea.vmem [#allocation3], 128
        %751 = vst [vmem:[%s750] sm:$0xff] %v733
        %752 = vst [vmem:[%s750 + $0x8] sm:$0xff] %v737
        %753 = vst [vmem:[%s750 + $0x10] sm:$0xff] %v741
        %754 = vst.msk [vmem:[%s750 + $0x18] sm:$0xff] %vm179, %v745
        %755 = vst [vmem:[%s750 + $0x20] sm:$0xff] %v733
        %756 = vst [vmem:[%s750 + $0x28] sm:$0xff] %v737
        %757 = vst [vmem:[%s750 + $0x30] sm:$0xff] %v741
        %758 = vst.msk [vmem:[%s750 + $0x38] sm:$0xff] %vm179, %v745
        %759 = vst [vmem:[%s750 + $0x40] sm:$0xff] %v733
        %760 = vst [vmem:[%s750 + $0x48] sm:$0xff] %v737
        %761 = vst [vmem:[%s750 + $0x50] sm:$0xff] %v741
        %762 = vst.msk [vmem:[%s750 + $0x58] sm:$0xff] %vm179, %v745
        %763 = vst [vmem:[%s750 + $0x60] sm:$0xff] %v733
        %764 = vst [vmem:[%s750 + $0x68] sm:$0xff] %v737
        %765 = vst [vmem:[%s750 + $0x70] sm:$0xff] %v741
        %766 = vst.msk [vmem:[%s750 + $0x78] sm:$0xff] %vm179, %v745
        %s767 = scalar_lea.vmem %s1, 8
        %v768 = vld [vmem:[%s767] sm:$0xf]
        %v770 = vlaneseq
        %v771 = vshrl.u32 %v770, 7
        %v772 = vsub.s32 0, %v771
        %v773 = vrot.slane %v768, %v772
        %v774 = vlaneseq
        %v775 = vshrl.u32 %v774, 7
        %v776 = vsub.s32 1, %v775
        %v777 = vrot.slane %v768, %v776
        %v778 = vlaneseq
        %v779 = vshrl.u32 %v778, 7
        %v780 = vsub.s32 2, %v779
        %v781 = vrot.slane %v768, %v780
        %v782 = vlaneseq
        %v783 = vshrl.u32 %v782, 7
        %v784 = vsub.s32 3, %v783
        %v785 = vrot.slane %v768, %v784
        %s790 = scalar_lea.vmem [#allocation3], 256
        %791 = vst [vmem:[%s790] sm:$0xff] %v773
        %792 = vst [vmem:[%s790 + $0x8] sm:$0xff] %v777
        %793 = vst [vmem:[%s790 + $0x10] sm:$0xff] %v781
        %794 = vst.msk [vmem:[%s790 + $0x18] sm:$0xff] %vm179, %v785
        %795 = vst [vmem:[%s790 + $0x20] sm:$0xff] %v773
        %796 = vst [vmem:[%s790 + $0x28] sm:$0xff] %v777
        %797 = vst [vmem:[%s790 + $0x30] sm:$0xff] %v781
        %798 = vst.msk [vmem:[%s790 + $0x38] sm:$0xff] %vm179, %v785
        %799 = vst [vmem:[%s790 + $0x40] sm:$0xff] %v773
        %800 = vst [vmem:[%s790 + $0x48] sm:$0xff] %v777
        %801 = vst [vmem:[%s790 + $0x50] sm:$0xff] %v781
        %802 = vst.msk [vmem:[%s790 + $0x58] sm:$0xff] %vm179, %v785
        %803 = vst [vmem:[%s790 + $0x60] sm:$0xff] %v773
        %804 = vst [vmem:[%s790 + $0x68] sm:$0xff] %v777
        %805 = vst [vmem:[%s790 + $0x70] sm:$0xff] %v781
        %806 = vst.msk [vmem:[%s790 + $0x78] sm:$0xff] %vm179, %v785
        %s807 = scalar_lea.vmem %s1, 12
        %v808 = vld [vmem:[%s807] sm:$0xf]
        %v810 = vlaneseq
        %v811 = vshrl.u32 %v810, 7
        %v812 = vsub.s32 0, %v811
        %v813 = vrot.slane %v808, %v812
        %v814 = vlaneseq
        %v815 = vshrl.u32 %v814, 7
        %v816 = vsub.s32 1, %v815
        %v817 = vrot.slane %v808, %v816
        %v818 = vlaneseq
        %v819 = vshrl.u32 %v818, 7
        %v820 = vsub.s32 2, %v819
        %v821 = vrot.slane %v808, %v820
        %v822 = vlaneseq
        %v823 = vshrl.u32 %v822, 7
        %v824 = vsub.s32 3, %v823
        %v825 = vrot.slane %v808, %v824
        %s830 = scalar_lea.vmem [#allocation3], 384
        %831 = vst [vmem:[%s830] sm:$0xff] %v813
        %832 = vst [vmem:[%s830 + $0x8] sm:$0xff] %v817
        %833 = vst [vmem:[%s830 + $0x10] sm:$0xff] %v821
        %834 = vst.msk [vmem:[%s830 + $0x18] sm:$0xff] %vm179, %v825
        %835 = vst [vmem:[%s830 + $0x20] sm:$0xff] %v813
        %836 = vst [vmem:[%s830 + $0x28] sm:$0xff] %v817
        %837 = vst [vmem:[%s830 + $0x30] sm:$0xff] %v821
        %838 = vst.msk [vmem:[%s830 + $0x38] sm:$0xff] %vm179, %v825
        %839 = vst [vmem:[%s830 + $0x40] sm:$0xff] %v813
        %840 = vst [vmem:[%s830 + $0x48] sm:$0xff] %v817
        %841 = vst [vmem:[%s830 + $0x50] sm:$0xff] %v821
        %842 = vst.msk [vmem:[%s830 + $0x58] sm:$0xff] %vm179, %v825
        %843 = vst [vmem:[%s830 + $0x60] sm:$0xff] %v813
        %844 = vst [vmem:[%s830 + $0x68] sm:$0xff] %v817
        %845 = vst [vmem:[%s830 + $0x70] sm:$0xff] %v821
        %846 = vst.msk [vmem:[%s830 + $0x78] sm:$0xff] %vm179, %v825
        %s847 = scalar_lea.vmem %s1, 16
        %v848 = vld [vmem:[%s847] sm:$0xf]
        %v850 = vlaneseq
        %v851 = vshrl.u32 %v850, 7
        %v852 = vsub.s32 0, %v851
        %v853 = vrot.slane %v848, %v852
        %v854 = vlaneseq
        %v855 = vshrl.u32 %v854, 7
        %v856 = vsub.s32 1, %v855
        %v857 = vrot.slane %v848, %v856
        %v858 = vlaneseq
        %v859 = vshrl.u32 %v858, 7
        %v860 = vsub.s32 2, %v859
        %v861 = vrot.slane %v848, %v860
        %v862 = vlaneseq
        %v863 = vshrl.u32 %v862, 7
        %v864 = vsub.s32 3, %v863
        %v865 = vrot.slane %v848, %v864
        %s870 = scalar_lea.vmem [#allocation3], 512
        %871 = vst [vmem:[%s870] sm:$0xff] %v853
        %872 = vst [vmem:[%s870 + $0x8] sm:$0xff] %v857
        %873 = vst [vmem:[%s870 + $0x10] sm:$0xff] %v861
        %874 = vst.msk [vmem:[%s870 + $0x18] sm:$0xff] %vm179, %v865
        %875 = vst [vmem:[%s870 + $0x20] sm:$0xff] %v853
        %876 = vst [vmem:[%s870 + $0x28] sm:$0xff] %v857
        %877 = vst [vmem:[%s870 + $0x30] sm:$0xff] %v861
        %878 = vst.msk [vmem:[%s870 + $0x38] sm:$0xff] %vm179, %v865
        %879 = vst [vmem:[%s870 + $0x40] sm:$0xff] %v853
        %880 = vst [vmem:[%s870 + $0x48] sm:$0xff] %v857
        %881 = vst [vmem:[%s870 + $0x50] sm:$0xff] %v861
        %882 = vst.msk [vmem:[%s870 + $0x58] sm:$0xff] %vm179, %v865
        %883 = vst [vmem:[%s870 + $0x60] sm:$0xff] %v853
        %884 = vst [vmem:[%s870 + $0x68] sm:$0xff] %v857
        %885 = vst [vmem:[%s870 + $0x70] sm:$0xff] %v861
        %886 = vst.msk [vmem:[%s870 + $0x78] sm:$0xff] %vm179, %v865
        %s887 = scalar_lea.vmem %s1, 20
        %v888 = vld [vmem:[%s887] sm:$0xf]
        %v890 = vlaneseq
        %v891 = vshrl.u32 %v890, 7
        %v892 = vsub.s32 0, %v891
        %v893 = vrot.slane %v888, %v892
        %v894 = vlaneseq
        %v895 = vshrl.u32 %v894, 7
        %v896 = vsub.s32 1, %v895
        %v897 = vrot.slane %v888, %v896
        %v898 = vlaneseq
        %v899 = vshrl.u32 %v898, 7
        %v900 = vsub.s32 2, %v899
        %v901 = vrot.slane %v888, %v900
        %v902 = vlaneseq
        %v903 = vshrl.u32 %v902, 7
        %v904 = vsub.s32 3, %v903
        %v905 = vrot.slane %v888, %v904
        %s910 = scalar_lea.vmem [#allocation3], 640
        %911 = vst [vmem:[%s910] sm:$0xff] %v893
        %912 = vst [vmem:[%s910 + $0x8] sm:$0xff] %v897
        %913 = vst [vmem:[%s910 + $0x10] sm:$0xff] %v901
        %914 = vst.msk [vmem:[%s910 + $0x18] sm:$0xff] %vm179, %v905
        %915 = vst [vmem:[%s910 + $0x20] sm:$0xff] %v893
        %916 = vst [vmem:[%s910 + $0x28] sm:$0xff] %v897
        %917 = vst [vmem:[%s910 + $0x30] sm:$0xff] %v901
        %918 = vst.msk [vmem:[%s910 + $0x38] sm:$0xff] %vm179, %v905
        %919 = vst [vmem:[%s910 + $0x40] sm:$0xff] %v893
        %920 = vst [vmem:[%s910 + $0x48] sm:$0xff] %v897
        %921 = vst [vmem:[%s910 + $0x50] sm:$0xff] %v901
        %922 = vst.msk [vmem:[%s910 + $0x58] sm:$0xff] %vm179, %v905
        %923 = vst [vmem:[%s910 + $0x60] sm:$0xff] %v893
        %924 = vst [vmem:[%s910 + $0x68] sm:$0xff] %v897
        %925 = vst [vmem:[%s910 + $0x70] sm:$0xff] %v901
        %926 = vst.msk [vmem:[%s910 + $0x78] sm:$0xff] %vm179, %v905
        %s927 = scalar_lea.vmem %s1, 24
        %v928 = vld [vmem:[%s927] sm:$0xf]
        %v930 = vlaneseq
        %v931 = vshrl.u32 %v930, 7
        %v932 = vsub.s32 0, %v931
        %v933 = vrot.slane %v928, %v932
        %v934 = vlaneseq
        %v935 = vshrl.u32 %v934, 7
        %v936 = vsub.s32 1, %v935
        %v937 = vrot.slane %v928, %v936
        %v938 = vlaneseq
        %v939 = vshrl.u32 %v938, 7
        %v940 = vsub.s32 2, %v939
        %v941 = vrot.slane %v928, %v940
        %v942 = vlaneseq
        %v943 = vshrl.u32 %v942, 7
        %v944 = vsub.s32 3, %v943
        %v945 = vrot.slane %v928, %v944
        %s950 = scalar_lea.vmem [#allocation3], 768
        %951 = vst [vmem:[%s950] sm:$0xff] %v933
        %952 = vst [vmem:[%s950 + $0x8] sm:$0xff] %v937
        %953 = vst [vmem:[%s950 + $0x10] sm:$0xff] %v941
        %954 = vst.msk [vmem:[%s950 + $0x18] sm:$0xff] %vm179, %v945
        %955 = vst [vmem:[%s950 + $0x20] sm:$0xff] %v933
        %956 = vst [vmem:[%s950 + $0x28] sm:$0xff] %v937
        %957 = vst [vmem:[%s950 + $0x30] sm:$0xff] %v941
        %958 = vst.msk [vmem:[%s950 + $0x38] sm:$0xff] %vm179, %v945
        %959 = vst [vmem:[%s950 + $0x40] sm:$0xff] %v933
        %960 = vst [vmem:[%s950 + $0x48] sm:$0xff] %v937
        %961 = vst [vmem:[%s950 + $0x50] sm:$0xff] %v941
        %962 = vst.msk [vmem:[%s950 + $0x58] sm:$0xff] %vm179, %v945
        %963 = vst [vmem:[%s950 + $0x60] sm:$0xff] %v933
        %964 = vst [vmem:[%s950 + $0x68] sm:$0xff] %v937
        %965 = vst [vmem:[%s950 + $0x70] sm:$0xff] %v941
        %966 = vst.msk [vmem:[%s950 + $0x78] sm:$0xff] %vm179, %v945
        %s967 = scalar_lea.vmem %s1, 28
        %v968 = vld [vmem:[%s967] sm:$0xf]
        %v970 = vlaneseq
        %v971 = vshrl.u32 %v970, 7
        %v972 = vsub.s32 0, %v971
        %v973 = vrot.slane %v968, %v972
        %v974 = vlaneseq
        %v975 = vshrl.u32 %v974, 7
        %v976 = vsub.s32 1, %v975
        %v977 = vrot.slane %v968, %v976
        %v978 = vlaneseq
        %v979 = vshrl.u32 %v978, 7
        %v980 = vsub.s32 2, %v979
        %v981 = vrot.slane %v968, %v980
        %v982 = vlaneseq
        %v983 = vshrl.u32 %v982, 7
        %v984 = vsub.s32 3, %v983
        %v985 = vrot.slane %v968, %v984
        %s990 = scalar_lea.vmem [#allocation3], 896
        %991 = vst [vmem:[%s990] sm:$0xff] %v973
        %992 = vst [vmem:[%s990 + $0x8] sm:$0xff] %v977
        %993 = vst [vmem:[%s990 + $0x10] sm:$0xff] %v981
        %994 = vst.msk [vmem:[%s990 + $0x18] sm:$0xff] %vm179, %v985
        %995 = vst [vmem:[%s990 + $0x20] sm:$0xff] %v973
        %996 = vst [vmem:[%s990 + $0x28] sm:$0xff] %v977
        %997 = vst [vmem:[%s990 + $0x30] sm:$0xff] %v981
        %998 = vst.msk [vmem:[%s990 + $0x38] sm:$0xff] %vm179, %v985
        %999 = vst [vmem:[%s990 + $0x40] sm:$0xff] %v973
        %1000 = vst [vmem:[%s990 + $0x48] sm:$0xff] %v977
        %1001 = vst [vmem:[%s990 + $0x50] sm:$0xff] %v981
        %1002 = vst.msk [vmem:[%s990 + $0x58] sm:$0xff] %vm179, %v985
        %1003 = vst [vmem:[%s990 + $0x60] sm:$0xff] %v973
        %1004 = vst [vmem:[%s990 + $0x68] sm:$0xff] %v977
        %1005 = vst [vmem:[%s990 + $0x70] sm:$0xff] %v981
        %1006 = vst.msk [vmem:[%s990 + $0x78] sm:$0xff] %vm179, %v985
        %s1007 = scalar_lea.vmem %s1, 32
        %v1008 = vld [vmem:[%s1007] sm:$0xf]
        %v1010 = vlaneseq
        %v1011 = vshrl.u32 %v1010, 7
        %v1012 = vsub.s32 0, %v1011
        %v1013 = vrot.slane %v1008, %v1012
        %v1014 = vlaneseq
        %v1015 = vshrl.u32 %v1014, 7
        %v1016 = vsub.s32 1, %v1015
        %v1017 = vrot.slane %v1008, %v1016
        %v1018 = vlaneseq
        %v1019 = vshrl.u32 %v1018, 7
        %v1020 = vsub.s32 2, %v1019
        %v1021 = vrot.slane %v1008, %v1020
        %v1022 = vlaneseq
        %v1023 = vshrl.u32 %v1022, 7
        %v1024 = vsub.s32 3, %v1023
        %v1025 = vrot.slane %v1008, %v1024
        %s1030 = scalar_lea.vmem [#allocation3], 1024
        %1031 = vst [vmem:[%s1030] sm:$0xff] %v1013
        %1032 = vst [vmem:[%s1030 + $0x8] sm:$0xff] %v1017
        %1033 = vst [vmem:[%s1030 + $0x10] sm:$0xff] %v1021
        %1034 = vst.msk [vmem:[%s1030 + $0x18] sm:$0xff] %vm179, %v1025
        %1035 = vst [vmem:[%s1030 + $0x20] sm:$0xff] %v1013
        %1036 = vst [vmem:[%s1030 + $0x28] sm:$0xff] %v1017
        %1037 = vst [vmem:[%s1030 + $0x30] sm:$0xff] %v1021
        %1038 = vst.msk [vmem:[%s1030 + $0x38] sm:$0xff] %vm179, %v1025
        %1039 = vst [vmem:[%s1030 + $0x40] sm:$0xff] %v1013
        %1040 = vst [vmem:[%s1030 + $0x48] sm:$0xff] %v1017
        %1041 = vst [vmem:[%s1030 + $0x50] sm:$0xff] %v1021
        %1042 = vst.msk [vmem:[%s1030 + $0x58] sm:$0xff] %vm179, %v1025
        %1043 = vst [vmem:[%s1030 + $0x60] sm:$0xff] %v1013
        %1044 = vst [vmem:[%s1030 + $0x68] sm:$0xff] %v1017
        %1045 = vst [vmem:[%s1030 + $0x70] sm:$0xff] %v1021
        %1046 = vst.msk [vmem:[%s1030 + $0x78] sm:$0xff] %vm179, %v1025
        %s1047 = scalar_lea.vmem %s1, 36
        %v1048 = vld [vmem:[%s1047] sm:$0xf]
        %v1050 = vlaneseq
        %v1051 = vshrl.u32 %v1050, 7
        %v1052 = vsub.s32 0, %v1051
        %v1053 = vrot.slane %v1048, %v1052
        %v1054 = vlaneseq
        %v1055 = vshrl.u32 %v1054, 7
        %v1056 = vsub.s32 1, %v1055
        %v1057 = vrot.slane %v1048, %v1056
        %v1058 = vlaneseq
        %v1059 = vshrl.u32 %v1058, 7
        %v1060 = vsub.s32 2, %v1059
        %v1061 = vrot.slane %v1048, %v1060
        %v1062 = vlaneseq
        %v1063 = vshrl.u32 %v1062, 7
        %v1064 = vsub.s32 3, %v1063
        %v1065 = vrot.slane %v1048, %v1064
        %s1070 = scalar_lea.vmem [#allocation3], 1152
        %1071 = vst [vmem:[%s1070] sm:$0xff] %v1053
        %1072 = vst [vmem:[%s1070 + $0x8] sm:$0xff] %v1057
        %1073 = vst [vmem:[%s1070 + $0x10] sm:$0xff] %v1061
        %1074 = vst.msk [vmem:[%s1070 + $0x18] sm:$0xff] %vm179, %v1065
        %1075 = vst [vmem:[%s1070 + $0x20] sm:$0xff] %v1053
        %1076 = vst [vmem:[%s1070 + $0x28] sm:$0xff] %v1057
        %1077 = vst [vmem:[%s1070 + $0x30] sm:$0xff] %v1061
        %1078 = vst.msk [vmem:[%s1070 + $0x38] sm:$0xff] %vm179, %v1065
        %1079 = vst [vmem:[%s1070 + $0x40] sm:$0xff] %v1053
        %1080 = vst [vmem:[%s1070 + $0x48] sm:$0xff] %v1057
        %1081 = vst [vmem:[%s1070 + $0x50] sm:$0xff] %v1061
        %1082 = vst.msk [vmem:[%s1070 + $0x58] sm:$0xff] %vm179, %v1065
        %1083 = vst [vmem:[%s1070 + $0x60] sm:$0xff] %v1053
        %1084 = vst [vmem:[%s1070 + $0x68] sm:$0xff] %v1057
        %1085 = vst [vmem:[%s1070 + $0x70] sm:$0xff] %v1061
        %1086 = vst.msk [vmem:[%s1070 + $0x78] sm:$0xff] %vm179, %v1065
        %s1087 = scalar_lea.vmem %s1, 40
        %v1088 = vld [vmem:[%s1087] sm:$0xf]
        %v1090 = vlaneseq
        %v1091 = vshrl.u32 %v1090, 7
        %v1092 = vsub.s32 0, %v1091
        %v1093 = vrot.slane %v1088, %v1092
        %v1094 = vlaneseq
        %v1095 = vshrl.u32 %v1094, 7
        %v1096 = vsub.s32 1, %v1095
        %v1097 = vrot.slane %v1088, %v1096
        %v1098 = vlaneseq
        %v1099 = vshrl.u32 %v1098, 7
        %v1100 = vsub.s32 2, %v1099
        %v1101 = vrot.slane %v1088, %v1100
        %v1102 = vlaneseq
        %v1103 = vshrl.u32 %v1102, 7
        %v1104 = vsub.s32 3, %v1103
        %v1105 = vrot.slane %v1088, %v1104
        %s1110 = scalar_lea.vmem [#allocation3], 1280
        %1111 = vst [vmem:[%s1110] sm:$0xff] %v1093
        %1112 = vst [vmem:[%s1110 + $0x8] sm:$0xff] %v1097
        %1113 = vst [vmem:[%s1110 + $0x10] sm:$0xff] %v1101
        %1114 = vst.msk [vmem:[%s1110 + $0x18] sm:$0xff] %vm179, %v1105
        %1115 = vst [vmem:[%s1110 + $0x20] sm:$0xff] %v1093
        %1116 = vst [vmem:[%s1110 + $0x28] sm:$0xff] %v1097
        %1117 = vst [vmem:[%s1110 + $0x30] sm:$0xff] %v1101
        %1118 = vst.msk [vmem:[%s1110 + $0x38] sm:$0xff] %vm179, %v1105
        %1119 = vst [vmem:[%s1110 + $0x40] sm:$0xff] %v1093
        %1120 = vst [vmem:[%s1110 + $0x48] sm:$0xff] %v1097
        %1121 = vst [vmem:[%s1110 + $0x50] sm:$0xff] %v1101
        %1122 = vst.msk [vmem:[%s1110 + $0x58] sm:$0xff] %vm179, %v1105
        %1123 = vst [vmem:[%s1110 + $0x60] sm:$0xff] %v1093
        %1124 = vst [vmem:[%s1110 + $0x68] sm:$0xff] %v1097
        %1125 = vst [vmem:[%s1110 + $0x70] sm:$0xff] %v1101
        %1126 = vst.msk [vmem:[%s1110 + $0x78] sm:$0xff] %vm179, %v1105
        %s1127 = scalar_lea.vmem %s1, 44
        %v1128 = vld [vmem:[%s1127] sm:$0xf]
        %v1130 = vlaneseq
        %v1131 = vshrl.u32 %v1130, 7
        %v1132 = vsub.s32 0, %v1131
        %v1133 = vrot.slane %v1128, %v1132
        %v1134 = vlaneseq
        %v1135 = vshrl.u32 %v1134, 7
        %v1136 = vsub.s32 1, %v1135
        %v1137 = vrot.slane %v1128, %v1136
        %v1138 = vlaneseq
        %v1139 = vshrl.u32 %v1138, 7
        %v1140 = vsub.s32 2, %v1139
        %v1141 = vrot.slane %v1128, %v1140
        %v1142 = vlaneseq
        %v1143 = vshrl.u32 %v1142, 7
        %v1144 = vsub.s32 3, %v1143
        %v1145 = vrot.slane %v1128, %v1144
        %s1150 = scalar_lea.vmem [#allocation3], 1408
        %1151 = vst [vmem:[%s1150] sm:$0xff] %v1133
        %1152 = vst [vmem:[%s1150 + $0x8] sm:$0xff] %v1137
        %1153 = vst [vmem:[%s1150 + $0x10] sm:$0xff] %v1141
        %1154 = vst.msk [vmem:[%s1150 + $0x18] sm:$0xff] %vm179, %v1145
        %1155 = vst [vmem:[%s1150 + $0x20] sm:$0xff] %v1133
        %1156 = vst [vmem:[%s1150 + $0x28] sm:$0xff] %v1137
        %1157 = vst [vmem:[%s1150 + $0x30] sm:$0xff] %v1141
        %1158 = vst.msk [vmem:[%s1150 + $0x38] sm:$0xff] %vm179, %v1145
        %1159 = vst [vmem:[%s1150 + $0x40] sm:$0xff] %v1133
        %1160 = vst [vmem:[%s1150 + $0x48] sm:$0xff] %v1137
        %1161 = vst [vmem:[%s1150 + $0x50] sm:$0xff] %v1141
        %1162 = vst.msk [vmem:[%s1150 + $0x58] sm:$0xff] %vm179, %v1145
        %1163 = vst [vmem:[%s1150 + $0x60] sm:$0xff] %v1133
        %1164 = vst [vmem:[%s1150 + $0x68] sm:$0xff] %v1137
        %1165 = vst [vmem:[%s1150 + $0x70] sm:$0xff] %v1141
        %1166 = vst.msk [vmem:[%s1150 + $0x78] sm:$0xff] %vm179, %v1145
        %s1167 = scalar_lea.vmem %s1, 48
        %v1168 = vld [vmem:[%s1167] sm:$0xf]
        %v1170 = vlaneseq
        %v1171 = vshrl.u32 %v1170, 7
        %v1172 = vsub.s32 0, %v1171
        %v1173 = vrot.slane %v1168, %v1172
        %v1174 = vlaneseq
        %v1175 = vshrl.u32 %v1174, 7
        %v1176 = vsub.s32 1, %v1175
        %v1177 = vrot.slane %v1168, %v1176
        %v1178 = vlaneseq
        %v1179 = vshrl.u32 %v1178, 7
        %v1180 = vsub.s32 2, %v1179
        %v1181 = vrot.slane %v1168, %v1180
        %v1182 = vlaneseq
        %v1183 = vshrl.u32 %v1182, 7
        %v1184 = vsub.s32 3, %v1183
        %v1185 = vrot.slane %v1168, %v1184
        %s1190 = scalar_lea.vmem [#allocation3], 1536
        %1191 = vst [vmem:[%s1190] sm:$0xff] %v1173
        %1192 = vst [vmem:[%s1190 + $0x8] sm:$0xff] %v1177
        %1193 = vst [vmem:[%s1190 + $0x10] sm:$0xff] %v1181
        %1194 = vst.msk [vmem:[%s1190 + $0x18] sm:$0xff] %vm179, %v1185
        %1195 = vst [vmem:[%s1190 + $0x20] sm:$0xff] %v1173
        %1196 = vst [vmem:[%s1190 + $0x28] sm:$0xff] %v1177
        %1197 = vst [vmem:[%s1190 + $0x30] sm:$0xff] %v1181
        %1198 = vst.msk [vmem:[%s1190 + $0x38] sm:$0xff] %vm179, %v1185
        %1199 = vst [vmem:[%s1190 + $0x40] sm:$0xff] %v1173
        %1200 = vst [vmem:[%s1190 + $0x48] sm:$0xff] %v1177
        %1201 = vst [vmem:[%s1190 + $0x50] sm:$0xff] %v1181
        %1202 = vst.msk [vmem:[%s1190 + $0x58] sm:$0xff] %vm179, %v1185
        %1203 = vst [vmem:[%s1190 + $0x60] sm:$0xff] %v1173
        %1204 = vst [vmem:[%s1190 + $0x68] sm:$0xff] %v1177
        %1205 = vst [vmem:[%s1190 + $0x70] sm:$0xff] %v1181
        %1206 = vst.msk [vmem:[%s1190 + $0x78] sm:$0xff] %vm179, %v1185
        %s1207 = scalar_lea.vmem %s1, 52
        %v1208 = vld [vmem:[%s1207] sm:$0xf]
        %v1210 = vlaneseq
        %v1211 = vshrl.u32 %v1210, 7
        %v1212 = vsub.s32 0, %v1211
        %v1213 = vrot.slane %v1208, %v1212
        %v1214 = vlaneseq
        %v1215 = vshrl.u32 %v1214, 7
        %v1216 = vsub.s32 1, %v1215
        %v1217 = vrot.slane %v1208, %v1216
        %v1218 = vlaneseq
        %v1219 = vshrl.u32 %v1218, 7
        %v1220 = vsub.s32 2, %v1219
        %v1221 = vrot.slane %v1208, %v1220
        %v1222 = vlaneseq
        %v1223 = vshrl.u32 %v1222, 7
        %v1224 = vsub.s32 3, %v1223
        %v1225 = vrot.slane %v1208, %v1224
        %s1230 = scalar_lea.vmem [#allocation3], 1664
        %1231 = vst [vmem:[%s1230] sm:$0xff] %v1213
        %1232 = vst [vmem:[%s1230 + $0x8] sm:$0xff] %v1217
        %1233 = vst [vmem:[%s1230 + $0x10] sm:$0xff] %v1221
        %1234 = vst.msk [vmem:[%s1230 + $0x18] sm:$0xff] %vm179, %v1225
        %1235 = vst [vmem:[%s1230 + $0x20] sm:$0xff] %v1213
        %1236 = vst [vmem:[%s1230 + $0x28] sm:$0xff] %v1217
        %1237 = vst [vmem:[%s1230 + $0x30] sm:$0xff] %v1221
        %1238 = vst.msk [vmem:[%s1230 + $0x38] sm:$0xff] %vm179, %v1225
        %1239 = vst [vmem:[%s1230 + $0x40] sm:$0xff] %v1213
        %1240 = vst [vmem:[%s1230 + $0x48] sm:$0xff] %v1217
        %1241 = vst [vmem:[%s1230 + $0x50] sm:$0xff] %v1221
        %1242 = vst.msk [vmem:[%s1230 + $0x58] sm:$0xff] %vm179, %v1225
        %1243 = vst [vmem:[%s1230 + $0x60] sm:$0xff] %v1213
        %1244 = vst [vmem:[%s1230 + $0x68] sm:$0xff] %v1217
        %1245 = vst [vmem:[%s1230 + $0x70] sm:$0xff] %v1221
        %1246 = vst.msk [vmem:[%s1230 + $0x78] sm:$0xff] %vm179, %v1225
        %s1247 = scalar_lea.vmem %s1, 56
        %v1248 = vld [vmem:[%s1247] sm:$0xf]
        %v1250 = vlaneseq
        %v1251 = vshrl.u32 %v1250, 7
        %v1252 = vsub.s32 0, %v1251
        %v1253 = vrot.slane %v1248, %v1252
        %v1254 = vlaneseq
        %v1255 = vshrl.u32 %v1254, 7
        %v1256 = vsub.s32 1, %v1255
        %v1257 = vrot.slane %v1248, %v1256
        %v1258 = vlaneseq
        %v1259 = vshrl.u32 %v1258, 7
        %v1260 = vsub.s32 2, %v1259
        %v1261 = vrot.slane %v1248, %v1260
        %v1262 = vlaneseq
        %v1263 = vshrl.u32 %v1262, 7
        %v1264 = vsub.s32 3, %v1263
        %v1265 = vrot.slane %v1248, %v1264
        %s1270 = scalar_lea.vmem [#allocation3], 1792
        %1271 = vst [vmem:[%s1270] sm:$0xff] %v1253
        %1272 = vst [vmem:[%s1270 + $0x8] sm:$0xff] %v1257
        %1273 = vst [vmem:[%s1270 + $0x10] sm:$0xff] %v1261
        %1274 = vst.msk [vmem:[%s1270 + $0x18] sm:$0xff] %vm179, %v1265
        %1275 = vst [vmem:[%s1270 + $0x20] sm:$0xff] %v1253
        %1276 = vst [vmem:[%s1270 + $0x28] sm:$0xff] %v1257
        %1277 = vst [vmem:[%s1270 + $0x30] sm:$0xff] %v1261
        %1278 = vst.msk [vmem:[%s1270 + $0x38] sm:$0xff] %vm179, %v1265
        %1279 = vst [vmem:[%s1270 + $0x40] sm:$0xff] %v1253
        %1280 = vst [vmem:[%s1270 + $0x48] sm:$0xff] %v1257
        %1281 = vst [vmem:[%s1270 + $0x50] sm:$0xff] %v1261
        %1282 = vst.msk [vmem:[%s1270 + $0x58] sm:$0xff] %vm179, %v1265
        %1283 = vst [vmem:[%s1270 + $0x60] sm:$0xff] %v1253
        %1284 = vst [vmem:[%s1270 + $0x68] sm:$0xff] %v1257
        %1285 = vst [vmem:[%s1270 + $0x70] sm:$0xff] %v1261
        %1286 = vst.msk [vmem:[%s1270 + $0x78] sm:$0xff] %vm179, %v1265
        %s1287 = scalar_lea.vmem %s1, 60
        %v1288 = vld [vmem:[%s1287] sm:$0xf]
        %v1290 = vlaneseq
        %v1291 = vshrl.u32 %v1290, 7
        %v1292 = vsub.s32 0, %v1291
        %v1293 = vrot.slane %v1288, %v1292
        %v1294 = vlaneseq
        %v1295 = vshrl.u32 %v1294, 7
        %v1296 = vsub.s32 1, %v1295
        %v1297 = vrot.slane %v1288, %v1296
        %v1298 = vlaneseq
        %v1299 = vshrl.u32 %v1298, 7
        %v1300 = vsub.s32 2, %v1299
        %v1301 = vrot.slane %v1288, %v1300
        %v1302 = vlaneseq
        %v1303 = vshrl.u32 %v1302, 7
        %v1304 = vsub.s32 3, %v1303
        %v1305 = vrot.slane %v1288, %v1304
        %s1310 = scalar_lea.vmem [#allocation3], 1920
        %1311 = vst [vmem:[%s1310] sm:$0xff] %v1293
        %1312 = vst [vmem:[%s1310 + $0x8] sm:$0xff] %v1297
        %1313 = vst [vmem:[%s1310 + $0x10] sm:$0xff] %v1301
        %1314 = vst.msk [vmem:[%s1310 + $0x18] sm:$0xff] %vm179, %v1305
        %1315 = vst [vmem:[%s1310 + $0x20] sm:$0xff] %v1293
        %1316 = vst [vmem:[%s1310 + $0x28] sm:$0xff] %v1297
        %1317 = vst [vmem:[%s1310 + $0x30] sm:$0xff] %v1301
        %1318 = vst.msk [vmem:[%s1310 + $0x38] sm:$0xff] %vm179, %v1305
        %1319 = vst [vmem:[%s1310 + $0x40] sm:$0xff] %v1293
        %1320 = vst [vmem:[%s1310 + $0x48] sm:$0xff] %v1297
        %1321 = vst [vmem:[%s1310 + $0x50] sm:$0xff] %v1301
        %1322 = vst.msk [vmem:[%s1310 + $0x58] sm:$0xff] %vm179, %v1305
        %1323 = vst [vmem:[%s1310 + $0x60] sm:$0xff] %v1293
        %1324 = vst [vmem:[%s1310 + $0x68] sm:$0xff] %v1297
        %1325 = vst [vmem:[%s1310 + $0x70] sm:$0xff] %v1301
        %1326 = vst.msk [vmem:[%s1310 + $0x78] sm:$0xff] %vm179, %v1305
        %s1327 = scalar_lea.vmem %s1, 64
        %v1328 = vld [vmem:[%s1327] sm:$0xf]
        %v1330 = vlaneseq
        %v1331 = vshrl.u32 %v1330, 7
        %v1332 = vsub.s32 0, %v1331
        %v1333 = vrot.slane %v1328, %v1332
        %v1334 = vlaneseq
        %v1335 = vshrl.u32 %v1334, 7
        %v1336 = vsub.s32 1, %v1335
        %v1337 = vrot.slane %v1328, %v1336
        %v1338 = vlaneseq
        %v1339 = vshrl.u32 %v1338, 7
        %v1340 = vsub.s32 2, %v1339
        %v1341 = vrot.slane %v1328, %v1340
        %v1342 = vlaneseq
        %v1343 = vshrl.u32 %v1342, 7
        %v1344 = vsub.s32 3, %v1343
        %v1345 = vrot.slane %v1328, %v1344
        %s1350 = scalar_lea.vmem [#allocation3], 2048
        %1351 = vst [vmem:[%s1350] sm:$0xff] %v1333
        %1352 = vst [vmem:[%s1350 + $0x8] sm:$0xff] %v1337
        %1353 = vst [vmem:[%s1350 + $0x10] sm:$0xff] %v1341
        %1354 = vst.msk [vmem:[%s1350 + $0x18] sm:$0xff] %vm179, %v1345
        %1355 = vst [vmem:[%s1350 + $0x20] sm:$0xff] %v1333
        %1356 = vst [vmem:[%s1350 + $0x28] sm:$0xff] %v1337
        %1357 = vst [vmem:[%s1350 + $0x30] sm:$0xff] %v1341
        %1358 = vst.msk [vmem:[%s1350 + $0x38] sm:$0xff] %vm179, %v1345
        %1359 = vst [vmem:[%s1350 + $0x40] sm:$0xff] %v1333
        %1360 = vst [vmem:[%s1350 + $0x48] sm:$0xff] %v1337
        %1361 = vst [vmem:[%s1350 + $0x50] sm:$0xff] %v1341
        %1362 = vst.msk [vmem:[%s1350 + $0x58] sm:$0xff] %vm179, %v1345
        %1363 = vst [vmem:[%s1350 + $0x60] sm:$0xff] %v1333
        %1364 = vst [vmem:[%s1350 + $0x68] sm:$0xff] %v1337
        %1365 = vst [vmem:[%s1350 + $0x70] sm:$0xff] %v1341
        %1366 = vst.msk [vmem:[%s1350 + $0x78] sm:$0xff] %vm179, %v1345
        %s1367 = scalar_lea.vmem %s1, 68
        %v1368 = vld [vmem:[%s1367] sm:$0xf]
        %v1370 = vlaneseq
        %v1371 = vshrl.u32 %v1370, 7
        %v1372 = vsub.s32 0, %v1371
        %v1373 = vrot.slane %v1368, %v1372
        %v1374 = vlaneseq
        %v1375 = vshrl.u32 %v1374, 7
        %v1376 = vsub.s32 1, %v1375
        %v1377 = vrot.slane %v1368, %v1376
        %v1378 = vlaneseq
        %v1379 = vshrl.u32 %v1378, 7
        %v1380 = vsub.s32 2, %v1379
        %v1381 = vrot.slane %v1368, %v1380
        %v1382 = vlaneseq
        %v1383 = vshrl.u32 %v1382, 7
        %v1384 = vsub.s32 3, %v1383
        %v1385 = vrot.slane %v1368, %v1384
        %s1390 = scalar_lea.vmem [#allocation3], 2176
        %1391 = vst [vmem:[%s1390] sm:$0xff] %v1373
        %1392 = vst [vmem:[%s1390 + $0x8] sm:$0xff] %v1377
        %1393 = vst [vmem:[%s1390 + $0x10] sm:$0xff] %v1381
        %1394 = vst.msk [vmem:[%s1390 + $0x18] sm:$0xff] %vm179, %v1385
        %1395 = vst [vmem:[%s1390 + $0x20] sm:$0xff] %v1373
        %1396 = vst [vmem:[%s1390 + $0x28] sm:$0xff] %v1377
        %1397 = vst [vmem:[%s1390 + $0x30] sm:$0xff] %v1381
        %1398 = vst.msk [vmem:[%s1390 + $0x38] sm:$0xff] %vm179, %v1385
        %1399 = vst [vmem:[%s1390 + $0x40] sm:$0xff] %v1373
        %1400 = vst [vmem:[%s1390 + $0x48] sm:$0xff] %v1377
        %1401 = vst [vmem:[%s1390 + $0x50] sm:$0xff] %v1381
        %1402 = vst.msk [vmem:[%s1390 + $0x58] sm:$0xff] %vm179, %v1385
        %1403 = vst [vmem:[%s1390 + $0x60] sm:$0xff] %v1373
        %1404 = vst [vmem:[%s1390 + $0x68] sm:$0xff] %v1377
        %1405 = vst [vmem:[%s1390 + $0x70] sm:$0xff] %v1381
        %1406 = vst.msk [vmem:[%s1390 + $0x78] sm:$0xff] %vm179, %v1385
        %s1407 = scalar_lea.vmem %s1, 72
        %v1408 = vld [vmem:[%s1407] sm:$0xf]
        %v1410 = vlaneseq
        %v1411 = vshrl.u32 %v1410, 7
        %v1412 = vsub.s32 0, %v1411
        %v1413 = vrot.slane %v1408, %v1412
        %v1414 = vlaneseq
        %v1415 = vshrl.u32 %v1414, 7
        %v1416 = vsub.s32 1, %v1415
        %v1417 = vrot.slane %v1408, %v1416
        %v1418 = vlaneseq
        %v1419 = vshrl.u32 %v1418, 7
        %v1420 = vsub.s32 2, %v1419
        %v1421 = vrot.slane %v1408, %v1420
        %v1422 = vlaneseq
        %v1423 = vshrl.u32 %v1422, 7
        %v1424 = vsub.s32 3, %v1423
        %v1425 = vrot.slane %v1408, %v1424
        %s1430 = scalar_lea.vmem [#allocation3], 2304
        %1431 = vst [vmem:[%s1430] sm:$0xff] %v1413
        %1432 = vst [vmem:[%s1430 + $0x8] sm:$0xff] %v1417
        %1433 = vst [vmem:[%s1430 + $0x10] sm:$0xff] %v1421
        %1434 = vst.msk [vmem:[%s1430 + $0x18] sm:$0xff] %vm179, %v1425
        %1435 = vst [vmem:[%s1430 + $0x20] sm:$0xff] %v1413
        %1436 = vst [vmem:[%s1430 + $0x28] sm:$0xff] %v1417
        %1437 = vst [vmem:[%s1430 + $0x30] sm:$0xff] %v1421
        %1438 = vst.msk [vmem:[%s1430 + $0x38] sm:$0xff] %vm179, %v1425
        %1439 = vst [vmem:[%s1430 + $0x40] sm:$0xff] %v1413
        %1440 = vst [vmem:[%s1430 + $0x48] sm:$0xff] %v1417
        %1441 = vst [vmem:[%s1430 + $0x50] sm:$0xff] %v1421
        %1442 = vst.msk [vmem:[%s1430 + $0x58] sm:$0xff] %vm179, %v1425
        %1443 = vst [vmem:[%s1430 + $0x60] sm:$0xff] %v1413
        %1444 = vst [vmem:[%s1430 + $0x68] sm:$0xff] %v1417
        %1445 = vst [vmem:[%s1430 + $0x70] sm:$0xff] %v1421
        %1446 = vst.msk [vmem:[%s1430 + $0x78] sm:$0xff] %vm179, %v1425
        %s1447 = scalar_lea.vmem %s1, 76
        %v1448 = vld [vmem:[%s1447] sm:$0xf]
        %v1450 = vlaneseq
        %v1451 = vshrl.u32 %v1450, 7
        %v1452 = vsub.s32 0, %v1451
        %v1453 = vrot.slane %v1448, %v1452
        %v1454 = vlaneseq
        %v1455 = vshrl.u32 %v1454, 7
        %v1456 = vsub.s32 1, %v1455
        %v1457 = vrot.slane %v1448, %v1456
        %v1458 = vlaneseq
        %v1459 = vshrl.u32 %v1458, 7
        %v1460 = vsub.s32 2, %v1459
        %v1461 = vrot.slane %v1448, %v1460
        %v1462 = vlaneseq
        %v1463 = vshrl.u32 %v1462, 7
        %v1464 = vsub.s32 3, %v1463
        %v1465 = vrot.slane %v1448, %v1464
        %s1470 = scalar_lea.vmem [#allocation3], 2432
        %1471 = vst [vmem:[%s1470] sm:$0xff] %v1453
        %1472 = vst [vmem:[%s1470 + $0x8] sm:$0xff] %v1457
        %1473 = vst [vmem:[%s1470 + $0x10] sm:$0xff] %v1461
        %1474 = vst.msk [vmem:[%s1470 + $0x18] sm:$0xff] %vm179, %v1465
        %1475 = vst [vmem:[%s1470 + $0x20] sm:$0xff] %v1453
        %1476 = vst [vmem:[%s1470 + $0x28] sm:$0xff] %v1457
        %1477 = vst [vmem:[%s1470 + $0x30] sm:$0xff] %v1461
        %1478 = vst.msk [vmem:[%s1470 + $0x38] sm:$0xff] %vm179, %v1465
        %1479 = vst [vmem:[%s1470 + $0x40] sm:$0xff] %v1453
        %1480 = vst [vmem:[%s1470 + $0x48] sm:$0xff] %v1457
        %1481 = vst [vmem:[%s1470 + $0x50] sm:$0xff] %v1461
        %1482 = vst.msk [vmem:[%s1470 + $0x58] sm:$0xff] %vm179, %v1465
        %1483 = vst [vmem:[%s1470 + $0x60] sm:$0xff] %v1453
        %1484 = vst [vmem:[%s1470 + $0x68] sm:$0xff] %v1457
        %1485 = vst [vmem:[%s1470 + $0x70] sm:$0xff] %v1461
        %1486 = vst.msk [vmem:[%s1470 + $0x78] sm:$0xff] %vm179, %v1465
        %s1487 = scalar_lea.vmem %s1, 80
        %v1488 = vld [vmem:[%s1487] sm:$0xf]
        %v1490 = vlaneseq
        %v1491 = vshrl.u32 %v1490, 7
        %v1492 = vsub.s32 0, %v1491
        %v1493 = vrot.slane %v1488, %v1492
        %v1494 = vlaneseq
        %v1495 = vshrl.u32 %v1494, 7
        %v1496 = vsub.s32 1, %v1495
        %v1497 = vrot.slane %v1488, %v1496
        %v1498 = vlaneseq
        %v1499 = vshrl.u32 %v1498, 7
        %v1500 = vsub.s32 2, %v1499
        %v1501 = vrot.slane %v1488, %v1500
        %v1502 = vlaneseq
        %v1503 = vshrl.u32 %v1502, 7
        %v1504 = vsub.s32 3, %v1503
        %v1505 = vrot.slane %v1488, %v1504
        %s1510 = scalar_lea.vmem [#allocation3], 2560
        %1511 = vst [vmem:[%s1510] sm:$0xff] %v1493
        %1512 = vst [vmem:[%s1510 + $0x8] sm:$0xff] %v1497
        %1513 = vst [vmem:[%s1510 + $0x10] sm:$0xff] %v1501
        %1514 = vst.msk [vmem:[%s1510 + $0x18] sm:$0xff] %vm179, %v1505
        %1515 = vst [vmem:[%s1510 + $0x20] sm:$0xff] %v1493
        %1516 = vst [vmem:[%s1510 + $0x28] sm:$0xff] %v1497
        %1517 = vst [vmem:[%s1510 + $0x30] sm:$0xff] %v1501
        %1518 = vst.msk [vmem:[%s1510 + $0x38] sm:$0xff] %vm179, %v1505
        %1519 = vst [vmem:[%s1510 + $0x40] sm:$0xff] %v1493
        %1520 = vst [vmem:[%s1510 + $0x48] sm:$0xff] %v1497
        %1521 = vst [vmem:[%s1510 + $0x50] sm:$0xff] %v1501
        %1522 = vst.msk [vmem:[%s1510 + $0x58] sm:$0xff] %vm179, %v1505
        %1523 = vst [vmem:[%s1510 + $0x60] sm:$0xff] %v1493
        %1524 = vst [vmem:[%s1510 + $0x68] sm:$0xff] %v1497
        %1525 = vst [vmem:[%s1510 + $0x70] sm:$0xff] %v1501
        %1526 = vst.msk [vmem:[%s1510 + $0x78] sm:$0xff] %vm179, %v1505
        %s1527 = scalar_lea.vmem %s1, 84
        %v1528 = vld [vmem:[%s1527] sm:$0xf]
        %v1530 = vlaneseq
        %v1531 = vshrl.u32 %v1530, 7
        %v1532 = vsub.s32 0, %v1531
        %v1533 = vrot.slane %v1528, %v1532
        %v1534 = vlaneseq
        %v1535 = vshrl.u32 %v1534, 7
        %v1536 = vsub.s32 1, %v1535
        %v1537 = vrot.slane %v1528, %v1536
        %v1538 = vlaneseq
        %v1539 = vshrl.u32 %v1538, 7
        %v1540 = vsub.s32 2, %v1539
        %v1541 = vrot.slane %v1528, %v1540
        %v1542 = vlaneseq
        %v1543 = vshrl.u32 %v1542, 7
        %v1544 = vsub.s32 3, %v1543
        %v1545 = vrot.slane %v1528, %v1544
        %s1550 = scalar_lea.vmem [#allocation3], 2688
        %1551 = vst [vmem:[%s1550] sm:$0xff] %v1533
        %1552 = vst [vmem:[%s1550 + $0x8] sm:$0xff] %v1537
        %1553 = vst [vmem:[%s1550 + $0x10] sm:$0xff] %v1541
        %1554 = vst.msk [vmem:[%s1550 + $0x18] sm:$0xff] %vm179, %v1545
        %1555 = vst [vmem:[%s1550 + $0x20] sm:$0xff] %v1533
        %1556 = vst [vmem:[%s1550 + $0x28] sm:$0xff] %v1537
        %1557 = vst [vmem:[%s1550 + $0x30] sm:$0xff] %v1541
        %1558 = vst.msk [vmem:[%s1550 + $0x38] sm:$0xff] %vm179, %v1545
        %1559 = vst [vmem:[%s1550 + $0x40] sm:$0xff] %v1533
        %1560 = vst [vmem:[%s1550 + $0x48] sm:$0xff] %v1537
        %1561 = vst [vmem:[%s1550 + $0x50] sm:$0xff] %v1541
        %1562 = vst.msk [vmem:[%s1550 + $0x58] sm:$0xff] %vm179, %v1545
        %1563 = vst [vmem:[%s1550 + $0x60] sm:$0xff] %v1533
        %1564 = vst [vmem:[%s1550 + $0x68] sm:$0xff] %v1537
        %1565 = vst [vmem:[%s1550 + $0x70] sm:$0xff] %v1541
        %1566 = vst.msk [vmem:[%s1550 + $0x78] sm:$0xff] %vm179, %v1545
        %s1567 = scalar_lea.vmem %s1, 88
        %v1568 = vld [vmem:[%s1567] sm:$0xf]
        %v1570 = vlaneseq
        %v1571 = vshrl.u32 %v1570, 7
        %v1572 = vsub.s32 0, %v1571
        %v1573 = vrot.slane %v1568, %v1572
        %v1574 = vlaneseq
        %v1575 = vshrl.u32 %v1574, 7
        %v1576 = vsub.s32 1, %v1575
        %v1577 = vrot.slane %v1568, %v1576
        %v1578 = vlaneseq
        %v1579 = vshrl.u32 %v1578, 7
        %v1580 = vsub.s32 2, %v1579
        %v1581 = vrot.slane %v1568, %v1580
        %v1582 = vlaneseq
        %v1583 = vshrl.u32 %v1582, 7
        %v1584 = vsub.s32 3, %v1583
        %v1585 = vrot.slane %v1568, %v1584
        %s1590 = scalar_lea.vmem [#allocation3], 2816
        %1591 = vst [vmem:[%s1590] sm:$0xff] %v1573
        %1592 = vst [vmem:[%s1590 + $0x8] sm:$0xff] %v1577
        %1593 = vst [vmem:[%s1590 + $0x10] sm:$0xff] %v1581
        %1594 = vst.msk [vmem:[%s1590 + $0x18] sm:$0xff] %vm179, %v1585
        %1595 = vst [vmem:[%s1590 + $0x20] sm:$0xff] %v1573
        %1596 = vst [vmem:[%s1590 + $0x28] sm:$0xff] %v1577
        %1597 = vst [vmem:[%s1590 + $0x30] sm:$0xff] %v1581
        %1598 = vst.msk [vmem:[%s1590 + $0x38] sm:$0xff] %vm179, %v1585
        %1599 = vst [vmem:[%s1590 + $0x40] sm:$0xff] %v1573
        %1600 = vst [vmem:[%s1590 + $0x48] sm:$0xff] %v1577
        %1601 = vst [vmem:[%s1590 + $0x50] sm:$0xff] %v1581
        %1602 = vst.msk [vmem:[%s1590 + $0x58] sm:$0xff] %vm179, %v1585
        %1603 = vst [vmem:[%s1590 + $0x60] sm:$0xff] %v1573
        %1604 = vst [vmem:[%s1590 + $0x68] sm:$0xff] %v1577
        %1605 = vst [vmem:[%s1590 + $0x70] sm:$0xff] %v1581
        %1606 = vst.msk [vmem:[%s1590 + $0x78] sm:$0xff] %vm179, %v1585
        %s1607 = scalar_lea.vmem %s1, 92
        %v1608 = vld [vmem:[%s1607] sm:$0xf]
        %v1610 = vlaneseq
        %v1611 = vshrl.u32 %v1610, 7
        %v1612 = vsub.s32 0, %v1611
        %v1613 = vrot.slane %v1608, %v1612
        %v1614 = vlaneseq
        %v1615 = vshrl.u32 %v1614, 7
        %v1616 = vsub.s32 1, %v1615
        %v1617 = vrot.slane %v1608, %v1616
        %v1618 = vlaneseq
        %v1619 = vshrl.u32 %v1618, 7
        %v1620 = vsub.s32 2, %v1619
        %v1621 = vrot.slane %v1608, %v1620
        %v1622 = vlaneseq
        %v1623 = vshrl.u32 %v1622, 7
        %v1624 = vsub.s32 3, %v1623
        %v1625 = vrot.slane %v1608, %v1624
        %s1630 = scalar_lea.vmem [#allocation3], 2944
        %1631 = vst [vmem:[%s1630] sm:$0xff] %v1613
        %1632 = vst [vmem:[%s1630 + $0x8] sm:$0xff] %v1617
        %1633 = vst [vmem:[%s1630 + $0x10] sm:$0xff] %v1621
        %1634 = vst.msk [vmem:[%s1630 + $0x18] sm:$0xff] %vm179, %v1625
        %1635 = vst [vmem:[%s1630 + $0x20] sm:$0xff] %v1613
        %1636 = vst [vmem:[%s1630 + $0x28] sm:$0xff] %v1617
        %1637 = vst [vmem:[%s1630 + $0x30] sm:$0xff] %v1621
        %1638 = vst.msk [vmem:[%s1630 + $0x38] sm:$0xff] %vm179, %v1625
        %1639 = vst [vmem:[%s1630 + $0x40] sm:$0xff] %v1613
        %1640 = vst [vmem:[%s1630 + $0x48] sm:$0xff] %v1617
        %1641 = vst [vmem:[%s1630 + $0x50] sm:$0xff] %v1621
        %1642 = vst.msk [vmem:[%s1630 + $0x58] sm:$0xff] %vm179, %v1625
        %1643 = vst [vmem:[%s1630 + $0x60] sm:$0xff] %v1613
        %1644 = vst [vmem:[%s1630 + $0x68] sm:$0xff] %v1617
        %1645 = vst [vmem:[%s1630 + $0x70] sm:$0xff] %v1621
        %1646 = vst.msk [vmem:[%s1630 + $0x78] sm:$0xff] %vm179, %v1625
        %s1647 = scalar_lea.vmem %s1, 96
        %v1648 = vld [vmem:[%s1647] sm:$0xf]
        %v1650 = vlaneseq
        %v1651 = vshrl.u32 %v1650, 7
        %v1652 = vsub.s32 0, %v1651
        %v1653 = vrot.slane %v1648, %v1652
        %v1654 = vlaneseq
        %v1655 = vshrl.u32 %v1654, 7
        %v1656 = vsub.s32 1, %v1655
        %v1657 = vrot.slane %v1648, %v1656
        %v1658 = vlaneseq
        %v1659 = vshrl.u32 %v1658, 7
        %v1660 = vsub.s32 2, %v1659
        %v1661 = vrot.slane %v1648, %v1660
        %v1662 = vlaneseq
        %v1663 = vshrl.u32 %v1662, 7
        %v1664 = vsub.s32 3, %v1663
        %v1665 = vrot.slane %v1648, %v1664
        %s1670 = scalar_lea.vmem [#allocation3], 3072
        %1671 = vst [vmem:[%s1670] sm:$0xff] %v1653
        %1672 = vst [vmem:[%s1670 + $0x8] sm:$0xff] %v1657
        %1673 = vst [vmem:[%s1670 + $0x10] sm:$0xff] %v1661
        %1674 = vst.msk [vmem:[%s1670 + $0x18] sm:$0xff] %vm179, %v1665
        %1675 = vst [vmem:[%s1670 + $0x20] sm:$0xff] %v1653
        %1676 = vst [vmem:[%s1670 + $0x28] sm:$0xff] %v1657
        %1677 = vst [vmem:[%s1670 + $0x30] sm:$0xff] %v1661
        %1678 = vst.msk [vmem:[%s1670 + $0x38] sm:$0xff] %vm179, %v1665
        %1679 = vst [vmem:[%s1670 + $0x40] sm:$0xff] %v1653
        %1680 = vst [vmem:[%s1670 + $0x48] sm:$0xff] %v1657
        %1681 = vst [vmem:[%s1670 + $0x50] sm:$0xff] %v1661
        %1682 = vst.msk [vmem:[%s1670 + $0x58] sm:$0xff] %vm179, %v1665
        %1683 = vst [vmem:[%s1670 + $0x60] sm:$0xff] %v1653
        %1684 = vst [vmem:[%s1670 + $0x68] sm:$0xff] %v1657
        %1685 = vst [vmem:[%s1670 + $0x70] sm:$0xff] %v1661
        %1686 = vst.msk [vmem:[%s1670 + $0x78] sm:$0xff] %vm179, %v1665
      $region32: #{tpu_custom_call.1} parent=27 // pred_fallthru
        _
      // Predicated region
      $region33: #{tpu_custom_call.1} parent=27 // pred_check
        %p1687 = pneg %p171
      $region34: #{tpu_custom_call.1} parent=27 // pred_check_branch
        %1689 = sbr.rel (%p1687) target = $region36
      $region35: #{tpu_custom_call.1} parent=27 // pred_region
        loop: start=0, step=1, limit=28
        $region37: #{tpu_custom_call.1} parent=35 // loop_pre_header
          _
        $region38: #{tpu_custom_call.1} parent=35 // loop_header
          %s1691 = sphi 0, %s1695
          %p1692 = scmp.ge.s32.totalorder %s1691, 28
        $region39: #{tpu_custom_call.1} parent=35 // loop_header_branch
          %1694 = sbr.rel (%p1692) target = $region43
        $region40: #{tpu_custom_call.1} parent=35 // loop_body
          %s1696 = smul.u32 %s1691, 16
          %s1697 = smul.addr %s1696, 8
          %s1698 = scalar_lea.vmem %s157, %s1697
          %v1699 = vld [vmem:[%s1698] sm:$0xff]
          %v1700 = vld [vmem:[%s1698 + $0x8] sm:$0xff]
          %v1701 = vld [vmem:[%s1698 + $0x10] sm:$0xff]
          %v1702 = vld [vmem:[%s1698 + $0x18] sm:$0xff]
          %v1703 = vld [vmem:[%s1698 + $0x20] sm:$0xff]
          %v1704 = vld [vmem:[%s1698 + $0x28] sm:$0xff]
          %v1705 = vld [vmem:[%s1698 + $0x30] sm:$0xff]
          %v1706 = vld [vmem:[%s1698 + $0x38] sm:$0xff]
          %v1707 = vld [vmem:[%s1698 + $0x40] sm:$0xff]
          %v1708 = vld [vmem:[%s1698 + $0x48] sm:$0xff]
          %v1709 = vld [vmem:[%s1698 + $0x50] sm:$0xff]
          %v1710 = vld [vmem:[%s1698 + $0x58] sm:$0xff]
          %v1711 = vld [vmem:[%s1698 + $0x60] sm:$0xf]
          %v1712 = vld [vmem:[%s1698 + $0x68] sm:$0xf]
          %v1713 = vld [vmem:[%s1698 + $0x70] sm:$0xf]
          %v1714 = vld [vmem:[%s1698 + $0x78] sm:$0xf]
          %s1715 = sadd.s32 %s1691, 2
          %s1716 = smul.u32 %s1715, 16
          %s1717 = smul.addr %s1716, 8
          %s1718 = scalar_lea.vmem [#allocation2], %s1717
          %1719 = vst [vmem:[%s1718] sm:$0xff] %v1699
          %1720 = vst [vmem:[%s1718 + $0x8] sm:$0xff] %v1700
          %1721 = vst [vmem:[%s1718 + $0x10] sm:$0xff] %v1701
          %vm1722 = vcmask 785408
          %1723 = vst.msk [vmem:[%s1718 + $0x18] sm:$0xff] %vm1722, %v1702
          %1724 = vst [vmem:[%s1718 + $0x20] sm:$0xff] %v1703
          %1725 = vst [vmem:[%s1718 + $0x28] sm:$0xff] %v1704
          %1726 = vst [vmem:[%s1718 + $0x30] sm:$0xff] %v1705
          %1727 = vst.msk [vmem:[%s1718 + $0x38] sm:$0xff] %vm1722, %v1706
          %1728 = vst [vmem:[%s1718 + $0x40] sm:$0xff] %v1707
          %1729 = vst [vmem:[%s1718 + $0x48] sm:$0xff] %v1708
          %1730 = vst [vmem:[%s1718 + $0x50] sm:$0xff] %v1709
          %1731 = vst.msk [vmem:[%s1718 + $0x58] sm:$0xff] %vm1722, %v1710
          %1732 = vst [vmem:[%s1718 + $0x60] sm:$0xf] %v1711
          %1733 = vst [vmem:[%s1718 + $0x68] sm:$0xf] %v1712
          %1734 = vst [vmem:[%s1718 + $0x70] sm:$0xf] %v1713
          %vm1735 = vcmask 781312
          %1736 = vst.msk [vmem:[%s1718 + $0x78] sm:$0xf] %vm1735, %v1714
        $region41: #{tpu_custom_call.1} parent=35 // loop_footer
          %s1695 = sadd.s32 1, %s1691
        $region42: #{tpu_custom_call.1} parent=35 // loop_footer_branch
          %1690 = sbr.rel target = $region38
        $region43: #{tpu_custom_call.1} parent=35 // loop_exit
          _
      $region36: #{tpu_custom_call.1} parent=27 // pred_fallthru
        _
      loop: start=0, step=1, limit=7
      $region44: #{tpu_custom_call.1} parent=27 // loop_pre_header
        _
      $region45: #{tpu_custom_call.1} parent=27 // loop_header
        %s1738 = sphi 0, %s1742
        %p1739 = scmp.ge.s32.totalorder %s1738, 7
      $region46: #{tpu_custom_call.1} parent=27 // loop_header_branch
        %1741 = sbr.rel (%p1739) target = $region50
      $region47: #{tpu_custom_call.1} parent=27 // loop_body
        %s1743 = smul.u32 %s1738, 2
        %s1744 = sadd.s32 %s169, %s1743
        %s1745 = smul.u32 %s1744, 16
        %s1746 = smul.addr %s1745, 8
        %s1747 = scalar_lea.vmem [#allocation2], %s1746
        %v1748 = vld [vmem:[%s1747] sm:$0xff]
        %v1749 = vld [vmem:[%s1747 + $0x8] sm:$0xff]
        %v1750 = vld [vmem:[%s1747 + $0x10] sm:$0xff]
        %v1751 = vld [vmem:[%s1747 + $0x18] sm:$0xff]
        %v1752 = vld [vmem:[%s1747 + $0x20] sm:$0xff]
        %v1753 = vld [vmem:[%s1747 + $0x28] sm:$0xff]
        %v1754 = vld [vmem:[%s1747 + $0x30] sm:$0xff]
        %v1755 = vld [vmem:[%s1747 + $0x38] sm:$0xff]
        %v1756 = vld [vmem:[%s1747 + $0x40] sm:$0xff]
        %v1757 = vld [vmem:[%s1747 + $0x48] sm:$0xff]
        %v1758 = vld [vmem:[%s1747 + $0x50] sm:$0xff]
        %v1759 = vld [vmem:[%s1747 + $0x58] sm:$0xff]
        %v1760 = vld [vmem:[%s1747 + $0x60] sm:$0xff]
        %v1761 = vld [vmem:[%s1747 + $0x68] sm:$0xff]
        %v1762 = vld [vmem:[%s1747 + $0x70] sm:$0xff]
        %v1763 = vld [vmem:[%s1747 + $0x78] sm:$0xff]
        %v1764 = vrot.slane %v1748, 6
        %v1765 = vrot.slane %v1749, 6
        %v1766 = vrot.slane %v1750, 6
        %v1767 = vrot.slane %v1751, 6
        %v1768 = vrot.slane %v1752, 6
        %v1769 = vrot.slane %v1753, 6
        %v1770 = vrot.slane %v1754, 6
        %v1771 = vrot.slane %v1755, 6
        %v1772 = vrot.slane %v1756, 6
        %v1773 = vrot.slane %v1757, 6
        %v1774 = vrot.slane %v1758, 6
        %v1775 = vrot.slane %v1759, 6
        %v1776 = vrot.slane %v1760, 6
        %v1777 = vrot.slane %v1761, 6
        %v1778 = vrot.slane %v1762, 6
        %v1779 = vrot.slane %v1763, 6
        %v1780 = vlaneseq
        %v1781 = vshrl.u32 %v1780, 7
        %vm1782 = vcmp.lt.s32.totalorder %v1781, 2
        %v1783 = vsel %vm1782, %v1772, %v1776
        %v1784 = vsel %vm1782, %v1773, %v1777
        %v1785 = vsel %vm1782, %v1774, %v1778
        %v1786 = vsel %vm1782, %v1775, %v1779
        %v1787 = vsel %vm1782, %v1768, %v1772
        %v1788 = vsel %vm1782, %v1769, %v1773
        %v1789 = vsel %vm1782, %v1770, %v1774
        %v1790 = vsel %vm1782, %v1771, %v1775
        %v1791 = vsel %vm1782, %v1764, %v1768
        %v1792 = vsel %vm1782, %v1765, %v1769
        %v1793 = vsel %vm1782, %v1766, %v1770
        %v1794 = vsel %vm1782, %v1767, %v1771
        %v1795 = vsel %vm1782, %v1776, %v1764
        %v1796 = vsel %vm1782, %v1777, %v1765
        %v1797 = vsel %vm1782, %v1778, %v1766
        %v1798 = vsel %vm1782, %v1779, %v1767
        %v1799 = vld [vmem:[#allocation3] sm:$0xff]
        %v1800 = vld [vmem:[#allocation3 + $0x8] sm:$0xff]
        %v1801 = vld [vmem:[#allocation3 + $0x10] sm:$0xff]
        %v1802 = vld [vmem:[#allocation3 + $0x18] sm:$0xff]
        %v1803 = vld [vmem:[#allocation3 + $0x20] sm:$0xff]
        %v1804 = vld [vmem:[#allocation3 + $0x28] sm:$0xff]
        %v1805 = vld [vmem:[#allocation3 + $0x30] sm:$0xff]
        %v1806 = vld [vmem:[#allocation3 + $0x38] sm:$0xff]
        %v1807 = vld [vmem:[#allocation3 + $0x40] sm:$0xff]
        %v1808 = vld [vmem:[#allocation3 + $0x48] sm:$0xff]
        %v1809 = vld [vmem:[#allocation3 + $0x50] sm:$0xff]
        %v1810 = vld [vmem:[#allocation3 + $0x58] sm:$0xff]
        %v1811 = vld [vmem:[#allocation3 + $0x60] sm:$0xff]
        %v1812 = vld [vmem:[#allocation3 + $0x68] sm:$0xff]
        %v1813 = vld [vmem:[#allocation3 + $0x70] sm:$0xff]
        %v1814 = vld [vmem:[#allocation3 + $0x78] sm:$0xff]
        %v1815 = vmul.f32 %v1795, %v1799
        %v1816 = vmul.f32 %v1796, %v1800
        %v1817 = vmul.f32 %v1797, %v1801
        %v1818 = vmul.f32 %v1798, %v1802
        %v1819 = vmul.f32 %v1791, %v1803
        %v1820 = vmul.f32 %v1792, %v1804
        %v1821 = vmul.f32 %v1793, %v1805
        %v1822 = vmul.f32 %v1794, %v1806
        %v1823 = vmul.f32 %v1787, %v1807
        %v1824 = vmul.f32 %v1788, %v1808
        %v1825 = vmul.f32 %v1789, %v1809
        %v1826 = vmul.f32 %v1790, %v1810
        %v1827 = vmul.f32 %v1783, %v1811
        %v1828 = vmul.f32 %v1784, %v1812
        %v1829 = vmul.f32 %v1785, %v1813
        %v1830 = vmul.f32 %v1786, %v1814
        %v1831 = vrot.slane %v1748, 7
        %v1832 = vrot.slane %v1749, 7
        %v1833 = vrot.slane %v1750, 7
        %v1834 = vrot.slane %v1751, 7
        %v1835 = vrot.slane %v1752, 7
        %v1836 = vrot.slane %v1753, 7
        %v1837 = vrot.slane %v1754, 7
        %v1838 = vrot.slane %v1755, 7
        %v1839 = vrot.slane %v1756, 7
        %v1840 = vrot.slane %v1757, 7
        %v1841 = vrot.slane %v1758, 7
        %v1842 = vrot.slane %v1759, 7
        %v1843 = vrot.slane %v1760, 7
        %v1844 = vrot.slane %v1761, 7
        %v1845 = vrot.slane %v1762, 7
        %v1846 = vrot.slane %v1763, 7
        %vm1847 = vcmp.lt.s32.totalorder %v1781, 1
        %v1848 = vsel %vm1847, %v1839, %v1843
        %v1849 = vsel %vm1847, %v1840, %v1844
        %v1850 = vsel %vm1847, %v1841, %v1845
        %v1851 = vsel %vm1847, %v1842, %v1846
        %v1852 = vsel %vm1847, %v1835, %v1839
        %v1853 = vsel %vm1847, %v1836, %v1840
        %v1854 = vsel %vm1847, %v1837, %v1841
        %v1855 = vsel %vm1847, %v1838, %v1842
        %v1856 = vsel %vm1847, %v1831, %v1835
        %v1857 = vsel %vm1847, %v1832, %v1836
        %v1858 = vsel %vm1847, %v1833, %v1837
        %v1859 = vsel %vm1847, %v1834, %v1838
        %v1860 = vsel %vm1847, %v1843, %v1831
        %v1861 = vsel %vm1847, %v1844, %v1832
        %v1862 = vsel %vm1847, %v1845, %v1833
        %v1863 = vsel %vm1847, %v1846, %v1834
        %s1864 = scalar_lea.vmem [#allocation3], 128
        %v1865 = vld [vmem:[%s1864] sm:$0xff]
        %v1866 = vld [vmem:[%s1864 + $0x8] sm:$0xff]
        %v1867 = vld [vmem:[%s1864 + $0x10] sm:$0xff]
        %v1868 = vld [vmem:[%s1864 + $0x18] sm:$0xff]
        %v1869 = vld [vmem:[%s1864 + $0x20] sm:$0xff]
        %v1870 = vld [vmem:[%s1864 + $0x28] sm:$0xff]
        %v1871 = vld [vmem:[%s1864 + $0x30] sm:$0xff]
        %v1872 = vld [vmem:[%s1864 + $0x38] sm:$0xff]
        %v1873 = vld [vmem:[%s1864 + $0x40] sm:$0xff]
        %v1874 = vld [vmem:[%s1864 + $0x48] sm:$0xff]
        %v1875 = vld [vmem:[%s1864 + $0x50] sm:$0xff]
        %v1876 = vld [vmem:[%s1864 + $0x58] sm:$0xff]
        %v1877 = vld [vmem:[%s1864 + $0x60] sm:$0xff]
        %v1878 = vld [vmem:[%s1864 + $0x68] sm:$0xff]
        %v1879 = vld [vmem:[%s1864 + $0x70] sm:$0xff]
        %v1880 = vld [vmem:[%s1864 + $0x78] sm:$0xff]
        %v1881 = vmul.f32 %v1860, %v1865
        %v1882 = vmul.f32 %v1861, %v1866
        %v1883 = vmul.f32 %v1862, %v1867
        %v1884 = vmul.f32 %v1863, %v1868
        %v1885 = vmul.f32 %v1856, %v1869
        %v1886 = vmul.f32 %v1857, %v1870
        %v1887 = vmul.f32 %v1858, %v1871
        %v1888 = vmul.f32 %v1859, %v1872
        %v1889 = vmul.f32 %v1852, %v1873
        %v1890 = vmul.f32 %v1853, %v1874
        %v1891 = vmul.f32 %v1854, %v1875
        %v1892 = vmul.f32 %v1855, %v1876
        %v1893 = vmul.f32 %v1848, %v1877
        %v1894 = vmul.f32 %v1849, %v1878
        %v1895 = vmul.f32 %v1850, %v1879
        %v1896 = vmul.f32 %v1851, %v1880
        %v1897 = vadd.f32 %v1815, %v1881
        %v1898 = vadd.f32 %v1816, %v1882
        %v1899 = vadd.f32 %v1817, %v1883
        %v1900 = vadd.f32 %v1818, %v1884
        %v1901 = vadd.f32 %v1819, %v1885
        %v1902 = vadd.f32 %v1820, %v1886
        %v1903 = vadd.f32 %v1821, %v1887
        %v1904 = vadd.f32 %v1822, %v1888
        %v1905 = vadd.f32 %v1823, %v1889
        %v1906 = vadd.f32 %v1824, %v1890
        %v1907 = vadd.f32 %v1825, %v1891
        %v1908 = vadd.f32 %v1826, %v1892
        %v1909 = vadd.f32 %v1827, %v1893
        %v1910 = vadd.f32 %v1828, %v1894
        %v1911 = vadd.f32 %v1829, %v1895
        %v1912 = vadd.f32 %v1830, %v1896
        %s1913 = scalar_lea.vmem [#allocation3], 256
        %v1914 = vld [vmem:[%s1913] sm:$0xff]
        %v1915 = vld [vmem:[%s1913 + $0x8] sm:$0xff]
        %v1916 = vld [vmem:[%s1913 + $0x10] sm:$0xff]
        %v1917 = vld [vmem:[%s1913 + $0x18] sm:$0xff]
        %v1918 = vld [vmem:[%s1913 + $0x20] sm:$0xff]
        %v1919 = vld [vmem:[%s1913 + $0x28] sm:$0xff]
        %v1920 = vld [vmem:[%s1913 + $0x30] sm:$0xff]
        %v1921 = vld [vmem:[%s1913 + $0x38] sm:$0xff]
        %v1922 = vld [vmem:[%s1913 + $0x40] sm:$0xff]
        %v1923 = vld [vmem:[%s1913 + $0x48] sm:$0xff]
        %v1924 = vld [vmem:[%s1913 + $0x50] sm:$0xff]
        %v1925 = vld [vmem:[%s1913 + $0x58] sm:$0xff]
        %v1926 = vld [vmem:[%s1913 + $0x60] sm:$0xff]
        %v1927 = vld [vmem:[%s1913 + $0x68] sm:$0xff]
        %v1928 = vld [vmem:[%s1913 + $0x70] sm:$0xff]
        %v1929 = vld [vmem:[%s1913 + $0x78] sm:$0xff]
        %v1930 = vmul.f32 %v1748, %v1914
        %v1931 = vmul.f32 %v1749, %v1915
        %v1932 = vmul.f32 %v1750, %v1916
        %v1933 = vmul.f32 %v1751, %v1917
        %v1934 = vmul.f32 %v1752, %v1918
        %v1935 = vmul.f32 %v1753, %v1919
        %v1936 = vmul.f32 %v1754, %v1920
        %v1937 = vmul.f32 %v1755, %v1921
        %v1938 = vmul.f32 %v1756, %v1922
        %v1939 = vmul.f32 %v1757, %v1923
        %v1940 = vmul.f32 %v1758, %v1924
        %v1941 = vmul.f32 %v1759, %v1925
        %v1942 = vmul.f32 %v1760, %v1926
        %v1943 = vmul.f32 %v1761, %v1927
        %v1944 = vmul.f32 %v1762, %v1928
        %v1945 = vmul.f32 %v1763, %v1929
        %v1946 = vadd.f32 %v1897, %v1930
        %v1947 = vadd.f32 %v1898, %v1931
        %v1948 = vadd.f32 %v1899, %v1932
        %v1949 = vadd.f32 %v1900, %v1933
        %v1950 = vadd.f32 %v1901, %v1934
        %v1951 = vadd.f32 %v1902, %v1935
        %v1952 = vadd.f32 %v1903, %v1936
        %v1953 = vadd.f32 %v1904, %v1937
        %v1954 = vadd.f32 %v1905, %v1938
        %v1955 = vadd.f32 %v1906, %v1939
        %v1956 = vadd.f32 %v1907, %v1940
        %v1957 = vadd.f32 %v1908, %v1941
        %v1958 = vadd.f32 %v1909, %v1942
        %v1959 = vadd.f32 %v1910, %v1943
        %v1960 = vadd.f32 %v1911, %v1944
        %v1961 = vadd.f32 %v1912, %v1945
        %v1962 = vrot.slane %v1748, 1
        %v1963 = vrot.slane %v1749, 1
        %v1964 = vrot.slane %v1750, 1
        %v1965 = vrot.slane %v1751, 1
        %v1966 = vrot.slane %v1752, 1
        %v1967 = vrot.slane %v1753, 1
        %v1968 = vrot.slane %v1754, 1
        %v1969 = vrot.slane %v1755, 1
        %v1970 = vrot.slane %v1756, 1
        %v1971 = vrot.slane %v1757, 1
        %v1972 = vrot.slane %v1758, 1
        %v1973 = vrot.slane %v1759, 1
        %v1974 = vrot.slane %v1760, 1
        %v1975 = vrot.slane %v1761, 1
        %v1976 = vrot.slane %v1762, 1
        %v1977 = vrot.slane %v1763, 1
        %vm1978 = vcmp.lt.s32.totalorder %v1781, 7
        %v1979 = vsel %vm1978, %v1970, %v1974
        %v1980 = vsel %vm1978, %v1971, %v1975
        %v1981 = vsel %vm1978, %v1972, %v1976
        %v1982 = vsel %vm1978, %v1973, %v1977
        %v1983 = vsel %vm1978, %v1966, %v1970
        %v1984 = vsel %vm1978, %v1967, %v1971
        %v1985 = vsel %vm1978, %v1968, %v1972
        %v1986 = vsel %vm1978, %v1969, %v1973
        %v1987 = vsel %vm1978, %v1962, %v1966
        %v1988 = vsel %vm1978, %v1963, %v1967
        %v1989 = vsel %vm1978, %v1964, %v1968
        %v1990 = vsel %vm1978, %v1965, %v1969
        %v1991 = vsel %vm1978, %v1974, %v1962
        %v1992 = vsel %vm1978, %v1975, %v1963
        %v1993 = vsel %vm1978, %v1976, %v1964
        %v1994 = vsel %vm1978, %v1977, %v1965
        %s1995 = scalar_lea.vmem [#allocation3], 384
        %v1996 = vld [vmem:[%s1995] sm:$0xff]
        %v1997 = vld [vmem:[%s1995 + $0x8] sm:$0xff]
        %v1998 = vld [vmem:[%s1995 + $0x10] sm:$0xff]
        %v1999 = vld [vmem:[%s1995 + $0x18] sm:$0xff]
        %v2000 = vld [vmem:[%s1995 + $0x20] sm:$0xff]
        %v2001 = vld [vmem:[%s1995 + $0x28] sm:$0xff]
        %v2002 = vld [vmem:[%s1995 + $0x30] sm:$0xff]
        %v2003 = vld [vmem:[%s1995 + $0x38] sm:$0xff]
        %v2004 = vld [vmem:[%s1995 + $0x40] sm:$0xff]
        %v2005 = vld [vmem:[%s1995 + $0x48] sm:$0xff]
        %v2006 = vld [vmem:[%s1995 + $0x50] sm:$0xff]
        %v2007 = vld [vmem:[%s1995 + $0x58] sm:$0xff]
        %v2008 = vld [vmem:[%s1995 + $0x60] sm:$0xff]
        %v2009 = vld [vmem:[%s1995 + $0x68] sm:$0xff]
        %v2010 = vld [vmem:[%s1995 + $0x70] sm:$0xff]
        %v2011 = vld [vmem:[%s1995 + $0x78] sm:$0xff]
        %v2012 = vmul.f32 %v1987, %v1996
        %v2013 = vmul.f32 %v1988, %v1997
        %v2014 = vmul.f32 %v1989, %v1998
        %v2015 = vmul.f32 %v1990, %v1999
        %v2016 = vmul.f32 %v1983, %v2000
        %v2017 = vmul.f32 %v1984, %v2001
        %v2018 = vmul.f32 %v1985, %v2002
        %v2019 = vmul.f32 %v1986, %v2003
        %v2020 = vmul.f32 %v1979, %v2004
        %v2021 = vmul.f32 %v1980, %v2005
        %v2022 = vmul.f32 %v1981, %v2006
        %v2023 = vmul.f32 %v1982, %v2007
        %v2024 = vmul.f32 %v1991, %v2008
        %v2025 = vmul.f32 %v1992, %v2009
        %v2026 = vmul.f32 %v1993, %v2010
        %v2027 = vmul.f32 %v1994, %v2011
        %v2028 = vadd.f32 %v1946, %v2012
        %v2029 = vadd.f32 %v1947, %v2013
        %v2030 = vadd.f32 %v1948, %v2014
        %v2031 = vadd.f32 %v1949, %v2015
        %v2032 = vadd.f32 %v1950, %v2016
        %v2033 = vadd.f32 %v1951, %v2017
        %v2034 = vadd.f32 %v1952, %v2018
        %v2035 = vadd.f32 %v1953, %v2019
        %v2036 = vadd.f32 %v1954, %v2020
        %v2037 = vadd.f32 %v1955, %v2021
        %v2038 = vadd.f32 %v1956, %v2022
        %v2039 = vadd.f32 %v1957, %v2023
        %v2040 = vadd.f32 %v1958, %v2024
        %v2041 = vadd.f32 %v1959, %v2025
        %v2042 = vadd.f32 %v1960, %v2026
        %v2043 = vadd.f32 %v1961, %v2027
        %v2044 = vrot.slane %v1748, 2
        %v2045 = vrot.slane %v1749, 2
        %v2046 = vrot.slane %v1750, 2
        %v2047 = vrot.slane %v1751, 2
        %v2048 = vrot.slane %v1752, 2
        %v2049 = vrot.slane %v1753, 2
        %v2050 = vrot.slane %v1754, 2
        %v2051 = vrot.slane %v1755, 2
        %v2052 = vrot.slane %v1756, 2
        %v2053 = vrot.slane %v1757, 2
        %v2054 = vrot.slane %v1758, 2
        %v2055 = vrot.slane %v1759, 2
        %v2056 = vrot.slane %v1760, 2
        %v2057 = vrot.slane %v1761, 2
        %v2058 = vrot.slane %v1762, 2
        %v2059 = vrot.slane %v1763, 2
        %vm2060 = vcmp.lt.s32.totalorder %v1781, 6
        %v2061 = vsel %vm2060, %v2052, %v2056
        %v2062 = vsel %vm2060, %v2053, %v2057
        %v2063 = vsel %vm2060, %v2054, %v2058
        %v2064 = vsel %vm2060, %v2055, %v2059
        %v2065 = vsel %vm2060, %v2048, %v2052
        %v2066 = vsel %vm2060, %v2049, %v2053
        %v2067 = vsel %vm2060, %v2050, %v2054
        %v2068 = vsel %vm2060, %v2051, %v2055
        %v2069 = vsel %vm2060, %v2044, %v2048
        %v2070 = vsel %vm2060, %v2045, %v2049
        %v2071 = vsel %vm2060, %v2046, %v2050
        %v2072 = vsel %vm2060, %v2047, %v2051
        %v2073 = vsel %vm2060, %v2056, %v2044
        %v2074 = vsel %vm2060, %v2057, %v2045
        %v2075 = vsel %vm2060, %v2058, %v2046
        %v2076 = vsel %vm2060, %v2059, %v2047
        %s2077 = scalar_lea.vmem [#allocation3], 512
        %v2078 = vld [vmem:[%s2077] sm:$0xff]
        %v2079 = vld [vmem:[%s2077 + $0x8] sm:$0xff]
        %v2080 = vld [vmem:[%s2077 + $0x10] sm:$0xff]
        %v2081 = vld [vmem:[%s2077 + $0x18] sm:$0xff]
        %v2082 = vld [vmem:[%s2077 + $0x20] sm:$0xff]
        %v2083 = vld [vmem:[%s2077 + $0x28] sm:$0xff]
        %v2084 = vld [vmem:[%s2077 + $0x30] sm:$0xff]
        %v2085 = vld [vmem:[%s2077 + $0x38] sm:$0xff]
        %v2086 = vld [vmem:[%s2077 + $0x40] sm:$0xff]
        %v2087 = vld [vmem:[%s2077 + $0x48] sm:$0xff]
        %v2088 = vld [vmem:[%s2077 + $0x50] sm:$0xff]
        %v2089 = vld [vmem:[%s2077 + $0x58] sm:$0xff]
        %v2090 = vld [vmem:[%s2077 + $0x60] sm:$0xff]
        %v2091 = vld [vmem:[%s2077 + $0x68] sm:$0xff]
        %v2092 = vld [vmem:[%s2077 + $0x70] sm:$0xff]
        %v2093 = vld [vmem:[%s2077 + $0x78] sm:$0xff]
        %v2094 = vmul.f32 %v2069, %v2078
        %v2095 = vmul.f32 %v2070, %v2079
        %v2096 = vmul.f32 %v2071, %v2080
        %v2097 = vmul.f32 %v2072, %v2081
        %v2098 = vmul.f32 %v2065, %v2082
        %v2099 = vmul.f32 %v2066, %v2083
        %v2100 = vmul.f32 %v2067, %v2084
        %v2101 = vmul.f32 %v2068, %v2085
        %v2102 = vmul.f32 %v2061, %v2086
        %v2103 = vmul.f32 %v2062, %v2087
        %v2104 = vmul.f32 %v2063, %v2088
        %v2105 = vmul.f32 %v2064, %v2089
        %v2106 = vmul.f32 %v2073, %v2090
        %v2107 = vmul.f32 %v2074, %v2091
        %v2108 = vmul.f32 %v2075, %v2092
        %v2109 = vmul.f32 %v2076, %v2093
        %v2110 = vadd.f32 %v2028, %v2094
        %v2111 = vadd.f32 %v2029, %v2095
        %v2112 = vadd.f32 %v2030, %v2096
        %v2113 = vadd.f32 %v2031, %v2097
        %v2114 = vadd.f32 %v2032, %v2098
        %v2115 = vadd.f32 %v2033, %v2099
        %v2116 = vadd.f32 %v2034, %v2100
        %v2117 = vadd.f32 %v2035, %v2101
        %v2118 = vadd.f32 %v2036, %v2102
        %v2119 = vadd.f32 %v2037, %v2103
        %v2120 = vadd.f32 %v2038, %v2104
        %v2121 = vadd.f32 %v2039, %v2105
        %v2122 = vadd.f32 %v2040, %v2106
        %v2123 = vadd.f32 %v2041, %v2107
        %v2124 = vadd.f32 %v2042, %v2108
        %v2125 = vadd.f32 %v2043, %v2109
        %s2126 = sadd.s32 %s1744, 1
        %s2127 = smul.u32 %s2126, 16
        %s2128 = smul.addr %s2127, 8
        %s2129 = scalar_lea.vmem [#allocation2], %s2128
        %v2130 = vld [vmem:[%s2129] sm:$0xff]
        %v2131 = vld [vmem:[%s2129 + $0x8] sm:$0xff]
        %v2132 = vld [vmem:[%s2129 + $0x10] sm:$0xff]
        %v2133 = vld [vmem:[%s2129 + $0x18] sm:$0xff]
        %v2134 = vld [vmem:[%s2129 + $0x20] sm:$0xff]
        %v2135 = vld [vmem:[%s2129 + $0x28] sm:$0xff]
        %v2136 = vld [vmem:[%s2129 + $0x30] sm:$0xff]
        %v2137 = vld [vmem:[%s2129 + $0x38] sm:$0xff]
        %v2138 = vld [vmem:[%s2129 + $0x40] sm:$0xff]
        %v2139 = vld [vmem:[%s2129 + $0x48] sm:$0xff]
        %v2140 = vld [vmem:[%s2129 + $0x50] sm:$0xff]
        %v2141 = vld [vmem:[%s2129 + $0x58] sm:$0xff]
        %v2142 = vld [vmem:[%s2129 + $0x60] sm:$0xff]
        %v2143 = vld [vmem:[%s2129 + $0x68] sm:$0xff]
        %v2144 = vld [vmem:[%s2129 + $0x70] sm:$0xff]
        %v2145 = vld [vmem:[%s2129 + $0x78] sm:$0xff]
        %v2146 = vrot.slane %v2130, 6
        %v2147 = vrot.slane %v2131, 6
        %v2148 = vrot.slane %v2132, 6
        %v2149 = vrot.slane %v2133, 6
        %v2150 = vrot.slane %v2134, 6
        %v2151 = vrot.slane %v2135, 6
        %v2152 = vrot.slane %v2136, 6
        %v2153 = vrot.slane %v2137, 6
        %v2154 = vrot.slane %v2138, 6
        %v2155 = vrot.slane %v2139, 6
        %v2156 = vrot.slane %v2140, 6
        %v2157 = vrot.slane %v2141, 6
        %v2158 = vrot.slane %v2142, 6
        %v2159 = vrot.slane %v2143, 6
        %v2160 = vrot.slane %v2144, 6
        %v2161 = vrot.slane %v2145, 6
        %v2162 = vsel %vm1782, %v2154, %v2158
        %v2163 = vsel %vm1782, %v2155, %v2159
        %v2164 = vsel %vm1782, %v2156, %v2160
        %v2165 = vsel %vm1782, %v2157, %v2161
        %v2166 = vsel %vm1782, %v2150, %v2154
        %v2167 = vsel %vm1782, %v2151, %v2155
        %v2168 = vsel %vm1782, %v2152, %v2156
        %v2169 = vsel %vm1782, %v2153, %v2157
        %v2170 = vsel %vm1782, %v2146, %v2150
        %v2171 = vsel %vm1782, %v2147, %v2151
        %v2172 = vsel %vm1782, %v2148, %v2152
        %v2173 = vsel %vm1782, %v2149, %v2153
        %v2174 = vsel %vm1782, %v2158, %v2146
        %v2175 = vsel %vm1782, %v2159, %v2147
        %v2176 = vsel %vm1782, %v2160, %v2148
        %v2177 = vsel %vm1782, %v2161, %v2149
        %s2178 = scalar_lea.vmem [#allocation3], 640
        %v2179 = vld [vmem:[%s2178] sm:$0xff]
        %v2180 = vld [vmem:[%s2178 + $0x8] sm:$0xff]
        %v2181 = vld [vmem:[%s2178 + $0x10] sm:$0xff]
        %v2182 = vld [vmem:[%s2178 + $0x18] sm:$0xff]
        %v2183 = vld [vmem:[%s2178 + $0x20] sm:$0xff]
        %v2184 = vld [vmem:[%s2178 + $0x28] sm:$0xff]
        %v2185 = vld [vmem:[%s2178 + $0x30] sm:$0xff]
        %v2186 = vld [vmem:[%s2178 + $0x38] sm:$0xff]
        %v2187 = vld [vmem:[%s2178 + $0x40] sm:$0xff]
        %v2188 = vld [vmem:[%s2178 + $0x48] sm:$0xff]
        %v2189 = vld [vmem:[%s2178 + $0x50] sm:$0xff]
        %v2190 = vld [vmem:[%s2178 + $0x58] sm:$0xff]
        %v2191 = vld [vmem:[%s2178 + $0x60] sm:$0xff]
        %v2192 = vld [vmem:[%s2178 + $0x68] sm:$0xff]
        %v2193 = vld [vmem:[%s2178 + $0x70] sm:$0xff]
        %v2194 = vld [vmem:[%s2178 + $0x78] sm:$0xff]
        %v2195 = vmul.f32 %v2174, %v2179
        %v2196 = vmul.f32 %v2175, %v2180
        %v2197 = vmul.f32 %v2176, %v2181
        %v2198 = vmul.f32 %v2177, %v2182
        %v2199 = vmul.f32 %v2170, %v2183
        %v2200 = vmul.f32 %v2171, %v2184
        %v2201 = vmul.f32 %v2172, %v2185
        %v2202 = vmul.f32 %v2173, %v2186
        %v2203 = vmul.f32 %v2166, %v2187
        %v2204 = vmul.f32 %v2167, %v2188
        %v2205 = vmul.f32 %v2168, %v2189
        %v2206 = vmul.f32 %v2169, %v2190
        %v2207 = vmul.f32 %v2162, %v2191
        %v2208 = vmul.f32 %v2163, %v2192
        %v2209 = vmul.f32 %v2164, %v2193
        %v2210 = vmul.f32 %v2165, %v2194
        %v2211 = vadd.f32 %v2110, %v2195
        %v2212 = vadd.f32 %v2111, %v2196
        %v2213 = vadd.f32 %v2112, %v2197
        %v2214 = vadd.f32 %v2113, %v2198
        %v2215 = vadd.f32 %v2114, %v2199
        %v2216 = vadd.f32 %v2115, %v2200
        %v2217 = vadd.f32 %v2116, %v2201
        %v2218 = vadd.f32 %v2117, %v2202
        %v2219 = vadd.f32 %v2118, %v2203
        %v2220 = vadd.f32 %v2119, %v2204
        %v2221 = vadd.f32 %v2120, %v2205
        %v2222 = vadd.f32 %v2121, %v2206
        %v2223 = vadd.f32 %v2122, %v2207
        %v2224 = vadd.f32 %v2123, %v2208
        %v2225 = vadd.f32 %v2124, %v2209
        %v2226 = vadd.f32 %v2125, %v2210
        %v2227 = vmul.f32 %v2174, %v1799
        %v2228 = vmul.f32 %v2175, %v1800
        %v2229 = vmul.f32 %v2176, %v1801
        %v2230 = vmul.f32 %v2177, %v1802
        %v2231 = vmul.f32 %v2170, %v1803
        %v2232 = vmul.f32 %v2171, %v1804
        %v2233 = vmul.f32 %v2172, %v1805
        %v2234 = vmul.f32 %v2173, %v1806
        %v2235 = vmul.f32 %v2166, %v1807
        %v2236 = vmul.f32 %v2167, %v1808
        %v2237 = vmul.f32 %v2168, %v1809
        %v2238 = vmul.f32 %v2169, %v1810
        %v2239 = vmul.f32 %v2162, %v1811
        %v2240 = vmul.f32 %v2163, %v1812
        %v2241 = vmul.f32 %v2164, %v1813
        %v2242 = vmul.f32 %v2165, %v1814
        %v2243 = vrot.slane %v2130, 7
        %v2244 = vrot.slane %v2131, 7
        %v2245 = vrot.slane %v2132, 7
        %v2246 = vrot.slane %v2133, 7
        %v2247 = vrot.slane %v2134, 7
        %v2248 = vrot.slane %v2135, 7
        %v2249 = vrot.slane %v2136, 7
        %v2250 = vrot.slane %v2137, 7
        %v2251 = vrot.slane %v2138, 7
        %v2252 = vrot.slane %v2139, 7
        %v2253 = vrot.slane %v2140, 7
        %v2254 = vrot.slane %v2141, 7
        %v2255 = vrot.slane %v2142, 7
        %v2256 = vrot.slane %v2143, 7
        %v2257 = vrot.slane %v2144, 7
        %v2258 = vrot.slane %v2145, 7
        %v2259 = vsel %vm1847, %v2251, %v2255
        %v2260 = vsel %vm1847, %v2252, %v2256
        %v2261 = vsel %vm1847, %v2253, %v2257
        %v2262 = vsel %vm1847, %v2254, %v2258
        %v2263 = vsel %vm1847, %v2247, %v2251
        %v2264 = vsel %vm1847, %v2248, %v2252
        %v2265 = vsel %vm1847, %v2249, %v2253
        %v2266 = vsel %vm1847, %v2250, %v2254
        %v2267 = vsel %vm1847, %v2243, %v2247
        %v2268 = vsel %vm1847, %v2244, %v2248
        %v2269 = vsel %vm1847, %v2245, %v2249
        %v2270 = vsel %vm1847, %v2246, %v2250
        %v2271 = vsel %vm1847, %v2255, %v2243
        %v2272 = vsel %vm1847, %v2256, %v2244
        %v2273 = vsel %vm1847, %v2257, %v2245
        %v2274 = vsel %vm1847, %v2258, %v2246
        %s2275 = scalar_lea.vmem [#allocation3], 768
        %v2276 = vld [vmem:[%s2275] sm:$0xff]
        %v2277 = vld [vmem:[%s2275 + $0x8] sm:$0xff]
        %v2278 = vld [vmem:[%s2275 + $0x10] sm:$0xff]
        %v2279 = vld [vmem:[%s2275 + $0x18] sm:$0xff]
        %v2280 = vld [vmem:[%s2275 + $0x20] sm:$0xff]
        %v2281 = vld [vmem:[%s2275 + $0x28] sm:$0xff]
        %v2282 = vld [vmem:[%s2275 + $0x30] sm:$0xff]
        %v2283 = vld [vmem:[%s2275 + $0x38] sm:$0xff]
        %v2284 = vld [vmem:[%s2275 + $0x40] sm:$0xff]
        %v2285 = vld [vmem:[%s2275 + $0x48] sm:$0xff]
        %v2286 = vld [vmem:[%s2275 + $0x50] sm:$0xff]
        %v2287 = vld [vmem:[%s2275 + $0x58] sm:$0xff]
        %v2288 = vld [vmem:[%s2275 + $0x60] sm:$0xff]
        %v2289 = vld [vmem:[%s2275 + $0x68] sm:$0xff]
        %v2290 = vld [vmem:[%s2275 + $0x70] sm:$0xff]
        %v2291 = vld [vmem:[%s2275 + $0x78] sm:$0xff]
        %v2292 = vmul.f32 %v2271, %v2276
        %v2293 = vmul.f32 %v2272, %v2277
        %v2294 = vmul.f32 %v2273, %v2278
        %v2295 = vmul.f32 %v2274, %v2279
        %v2296 = vmul.f32 %v2267, %v2280
        %v2297 = vmul.f32 %v2268, %v2281
        %v2298 = vmul.f32 %v2269, %v2282
        %v2299 = vmul.f32 %v2270, %v2283
        %v2300 = vmul.f32 %v2263, %v2284
        %v2301 = vmul.f32 %v2264, %v2285
        %v2302 = vmul.f32 %v2265, %v2286
        %v2303 = vmul.f32 %v2266, %v2287
        %v2304 = vmul.f32 %v2259, %v2288
        %v2305 = vmul.f32 %v2260, %v2289
        %v2306 = vmul.f32 %v2261, %v2290
        %v2307 = vmul.f32 %v2262, %v2291
        %v2308 = vadd.f32 %v2211, %v2292
        %v2309 = vadd.f32 %v2212, %v2293
        %v2310 = vadd.f32 %v2213, %v2294
        %v2311 = vadd.f32 %v2214, %v2295
        %v2312 = vadd.f32 %v2215, %v2296
        %v2313 = vadd.f32 %v2216, %v2297
        %v2314 = vadd.f32 %v2217, %v2298
        %v2315 = vadd.f32 %v2218, %v2299
        %v2316 = vadd.f32 %v2219, %v2300
        %v2317 = vadd.f32 %v2220, %v2301
        %v2318 = vadd.f32 %v2221, %v2302
        %v2319 = vadd.f32 %v2222, %v2303
        %v2320 = vadd.f32 %v2223, %v2304
        %v2321 = vadd.f32 %v2224, %v2305
        %v2322 = vadd.f32 %v2225, %v2306
        %v2323 = vadd.f32 %v2226, %v2307
        %v2324 = vmul.f32 %v2271, %v1865
        %v2325 = vmul.f32 %v2272, %v1866
        %v2326 = vmul.f32 %v2273, %v1867
        %v2327 = vmul.f32 %v2274, %v1868
        %v2328 = vmul.f32 %v2267, %v1869
        %v2329 = vmul.f32 %v2268, %v1870
        %v2330 = vmul.f32 %v2269, %v1871
        %v2331 = vmul.f32 %v2270, %v1872
        %v2332 = vmul.f32 %v2263, %v1873
        %v2333 = vmul.f32 %v2264, %v1874
        %v2334 = vmul.f32 %v2265, %v1875
        %v2335 = vmul.f32 %v2266, %v1876
        %v2336 = vmul.f32 %v2259, %v1877
        %v2337 = vmul.f32 %v2260, %v1878
        %v2338 = vmul.f32 %v2261, %v1879
        %v2339 = vmul.f32 %v2262, %v1880
        %v2340 = vadd.f32 %v2227, %v2324
        %v2341 = vadd.f32 %v2228, %v2325
        %v2342 = vadd.f32 %v2229, %v2326
        %v2343 = vadd.f32 %v2230, %v2327
        %v2344 = vadd.f32 %v2231, %v2328
        %v2345 = vadd.f32 %v2232, %v2329
        %v2346 = vadd.f32 %v2233, %v2330
        %v2347 = vadd.f32 %v2234, %v2331
        %v2348 = vadd.f32 %v2235, %v2332
        %v2349 = vadd.f32 %v2236, %v2333
        %v2350 = vadd.f32 %v2237, %v2334
        %v2351 = vadd.f32 %v2238, %v2335
        %v2352 = vadd.f32 %v2239, %v2336
        %v2353 = vadd.f32 %v2240, %v2337
        %v2354 = vadd.f32 %v2241, %v2338
        %v2355 = vadd.f32 %v2242, %v2339
        %s2356 = scalar_lea.vmem [#allocation3], 896
        %v2357 = vld [vmem:[%s2356] sm:$0xff]
        %v2358 = vld [vmem:[%s2356 + $0x8] sm:$0xff]
        %v2359 = vld [vmem:[%s2356 + $0x10] sm:$0xff]
        %v2360 = vld [vmem:[%s2356 + $0x18] sm:$0xff]
        %v2361 = vld [vmem:[%s2356 + $0x20] sm:$0xff]
        %v2362 = vld [vmem:[%s2356 + $0x28] sm:$0xff]
        %v2363 = vld [vmem:[%s2356 + $0x30] sm:$0xff]
        %v2364 = vld [vmem:[%s2356 + $0x38] sm:$0xff]
        %v2365 = vld [vmem:[%s2356 + $0x40] sm:$0xff]
        %v2366 = vld [vmem:[%s2356 + $0x48] sm:$0xff]
        %v2367 = vld [vmem:[%s2356 + $0x50] sm:$0xff]
        %v2368 = vld [vmem:[%s2356 + $0x58] sm:$0xff]
        %v2369 = vld [vmem:[%s2356 + $0x60] sm:$0xff]
        %v2370 = vld [vmem:[%s2356 + $0x68] sm:$0xff]
        %v2371 = vld [vmem:[%s2356 + $0x70] sm:$0xff]
        %v2372 = vld [vmem:[%s2356 + $0x78] sm:$0xff]
        %v2373 = vmul.f32 %v2130, %v2357
        %v2374 = vmul.f32 %v2131, %v2358
        %v2375 = vmul.f32 %v2132, %v2359
        %v2376 = vmul.f32 %v2133, %v2360
        %v2377 = vmul.f32 %v2134, %v2361
        %v2378 = vmul.f32 %v2135, %v2362
        %v2379 = vmul.f32 %v2136, %v2363
        %v2380 = vmul.f32 %v2137, %v2364
        %v2381 = vmul.f32 %v2138, %v2365
        %v2382 = vmul.f32 %v2139, %v2366
        %v2383 = vmul.f32 %v2140, %v2367
        %v2384 = vmul.f32 %v2141, %v2368
        %v2385 = vmul.f32 %v2142, %v2369
        %v2386 = vmul.f32 %v2143, %v2370
        %v2387 = vmul.f32 %v2144, %v2371
        %v2388 = vmul.f32 %v2145, %v2372
        %v2389 = vadd.f32 %v2308, %v2373
        %v2390 = vadd.f32 %v2309, %v2374
        %v2391 = vadd.f32 %v2310, %v2375
        %v2392 = vadd.f32 %v2311, %v2376
        %v2393 = vadd.f32 %v2312, %v2377
        %v2394 = vadd.f32 %v2313, %v2378
        %v2395 = vadd.f32 %v2314, %v2379
        %v2396 = vadd.f32 %v2315, %v2380
        %v2397 = vadd.f32 %v2316, %v2381
        %v2398 = vadd.f32 %v2317, %v2382
        %v2399 = vadd.f32 %v2318, %v2383
        %v2400 = vadd.f32 %v2319, %v2384
        %v2401 = vadd.f32 %v2320, %v2385
        %v2402 = vadd.f32 %v2321, %v2386
        %v2403 = vadd.f32 %v2322, %v2387
        %v2404 = vadd.f32 %v2323, %v2388
        %v2405 = vmul.f32 %v2130, %v1914
        %v2406 = vmul.f32 %v2131, %v1915
        %v2407 = vmul.f32 %v2132, %v1916
        %v2408 = vmul.f32 %v2133, %v1917
        %v2409 = vmul.f32 %v2134, %v1918
        %v2410 = vmul.f32 %v2135, %v1919
        %v2411 = vmul.f32 %v2136, %v1920
        %v2412 = vmul.f32 %v2137, %v1921
        %v2413 = vmul.f32 %v2138, %v1922
        %v2414 = vmul.f32 %v2139, %v1923
        %v2415 = vmul.f32 %v2140, %v1924
        %v2416 = vmul.f32 %v2141, %v1925
        %v2417 = vmul.f32 %v2142, %v1926
        %v2418 = vmul.f32 %v2143, %v1927
        %v2419 = vmul.f32 %v2144, %v1928
        %v2420 = vmul.f32 %v2145, %v1929
        %v2421 = vadd.f32 %v2340, %v2405
        %v2422 = vadd.f32 %v2341, %v2406
        %v2423 = vadd.f32 %v2342, %v2407
        %v2424 = vadd.f32 %v2343, %v2408
        %v2425 = vadd.f32 %v2344, %v2409
        %v2426 = vadd.f32 %v2345, %v2410
        %v2427 = vadd.f32 %v2346, %v2411
        %v2428 = vadd.f32 %v2347, %v2412
        %v2429 = vadd.f32 %v2348, %v2413
        %v2430 = vadd.f32 %v2349, %v2414
        %v2431 = vadd.f32 %v2350, %v2415
        %v2432 = vadd.f32 %v2351, %v2416
        %v2433 = vadd.f32 %v2352, %v2417
        %v2434 = vadd.f32 %v2353, %v2418
        %v2435 = vadd.f32 %v2354, %v2419
        %v2436 = vadd.f32 %v2355, %v2420
        %v2437 = vrot.slane %v2130, 1
        %v2438 = vrot.slane %v2131, 1
        %v2439 = vrot.slane %v2132, 1
        %v2440 = vrot.slane %v2133, 1
        %v2441 = vrot.slane %v2134, 1
        %v2442 = vrot.slane %v2135, 1
        %v2443 = vrot.slane %v2136, 1
        %v2444 = vrot.slane %v2137, 1
        %v2445 = vrot.slane %v2138, 1
        %v2446 = vrot.slane %v2139, 1
        %v2447 = vrot.slane %v2140, 1
        %v2448 = vrot.slane %v2141, 1
        %v2449 = vrot.slane %v2142, 1
        %v2450 = vrot.slane %v2143, 1
        %v2451 = vrot.slane %v2144, 1
        %v2452 = vrot.slane %v2145, 1
        %v2453 = vsel %vm1978, %v2445, %v2449
        %v2454 = vsel %vm1978, %v2446, %v2450
        %v2455 = vsel %vm1978, %v2447, %v2451
        %v2456 = vsel %vm1978, %v2448, %v2452
        %v2457 = vsel %vm1978, %v2441, %v2445
        %v2458 = vsel %vm1978, %v2442, %v2446
        %v2459 = vsel %vm1978, %v2443, %v2447
        %v2460 = vsel %vm1978, %v2444, %v2448
        %v2461 = vsel %vm1978, %v2437, %v2441
        %v2462 = vsel %vm1978, %v2438, %v2442
        %v2463 = vsel %vm1978, %v2439, %v2443
        %v2464 = vsel %vm1978, %v2440, %v2444
        %v2465 = vsel %vm1978, %v2449, %v2437
        %v2466 = vsel %vm1978, %v2450, %v2438
        %v2467 = vsel %vm1978, %v2451, %v2439
        %v2468 = vsel %vm1978, %v2452, %v2440
        %s2469 = scalar_lea.vmem [#allocation3], 1024
        %v2470 = vld [vmem:[%s2469] sm:$0xff]
        %v2471 = vld [vmem:[%s2469 + $0x8] sm:$0xff]
        %v2472 = vld [vmem:[%s2469 + $0x10] sm:$0xff]
        %v2473 = vld [vmem:[%s2469 + $0x18] sm:$0xff]
        %v2474 = vld [vmem:[%s2469 + $0x20] sm:$0xff]
        %v2475 = vld [vmem:[%s2469 + $0x28] sm:$0xff]
        %v2476 = vld [vmem:[%s2469 + $0x30] sm:$0xff]
        %v2477 = vld [vmem:[%s2469 + $0x38] sm:$0xff]
        %v2478 = vld [vmem:[%s2469 + $0x40] sm:$0xff]
        %v2479 = vld [vmem:[%s2469 + $0x48] sm:$0xff]
        %v2480 = vld [vmem:[%s2469 + $0x50] sm:$0xff]
        %v2481 = vld [vmem:[%s2469 + $0x58] sm:$0xff]
        %v2482 = vld [vmem:[%s2469 + $0x60] sm:$0xff]
        %v2483 = vld [vmem:[%s2469 + $0x68] sm:$0xff]
        %v2484 = vld [vmem:[%s2469 + $0x70] sm:$0xff]
        %v2485 = vld [vmem:[%s2469 + $0x78] sm:$0xff]
        %v2486 = vmul.f32 %v2461, %v2470
        %v2487 = vmul.f32 %v2462, %v2471
        %v2488 = vmul.f32 %v2463, %v2472
        %v2489 = vmul.f32 %v2464, %v2473
        %v2490 = vmul.f32 %v2457, %v2474
        %v2491 = vmul.f32 %v2458, %v2475
        %v2492 = vmul.f32 %v2459, %v2476
        %v2493 = vmul.f32 %v2460, %v2477
        %v2494 = vmul.f32 %v2453, %v2478
        %v2495 = vmul.f32 %v2454, %v2479
        %v2496 = vmul.f32 %v2455, %v2480
        %v2497 = vmul.f32 %v2456, %v2481
        %v2498 = vmul.f32 %v2465, %v2482
        %v2499 = vmul.f32 %v2466, %v2483
        %v2500 = vmul.f32 %v2467, %v2484
        %v2501 = vmul.f32 %v2468, %v2485
        %v2502 = vadd.f32 %v2389, %v2486
        %v2503 = vadd.f32 %v2390, %v2487
        %v2504 = vadd.f32 %v2391, %v2488
        %v2505 = vadd.f32 %v2392, %v2489
        %v2506 = vadd.f32 %v2393, %v2490
        %v2507 = vadd.f32 %v2394, %v2491
        %v2508 = vadd.f32 %v2395, %v2492
        %v2509 = vadd.f32 %v2396, %v2493
        %v2510 = vadd.f32 %v2397, %v2494
        %v2511 = vadd.f32 %v2398, %v2495
        %v2512 = vadd.f32 %v2399, %v2496
        %v2513 = vadd.f32 %v2400, %v2497
        %v2514 = vadd.f32 %v2401, %v2498
        %v2515 = vadd.f32 %v2402, %v2499
        %v2516 = vadd.f32 %v2403, %v2500
        %v2517 = vadd.f32 %v2404, %v2501
        %v2518 = vmul.f32 %v2461, %v1996
        %v2519 = vmul.f32 %v2462, %v1997
        %v2520 = vmul.f32 %v2463, %v1998
        %v2521 = vmul.f32 %v2464, %v1999
        %v2522 = vmul.f32 %v2457, %v2000
        %v2523 = vmul.f32 %v2458, %v2001
        %v2524 = vmul.f32 %v2459, %v2002
        %v2525 = vmul.f32 %v2460, %v2003
        %v2526 = vmul.f32 %v2453, %v2004
        %v2527 = vmul.f32 %v2454, %v2005
        %v2528 = vmul.f32 %v2455, %v2006
        %v2529 = vmul.f32 %v2456, %v2007
        %v2530 = vmul.f32 %v2465, %v2008
        %v2531 = vmul.f32 %v2466, %v2009
        %v2532 = vmul.f32 %v2467, %v2010
        %v2533 = vmul.f32 %v2468, %v2011
        %v2534 = vadd.f32 %v2421, %v2518
        %v2535 = vadd.f32 %v2422, %v2519
        %v2536 = vadd.f32 %v2423, %v2520
        %v2537 = vadd.f32 %v2424, %v2521
        %v2538 = vadd.f32 %v2425, %v2522
        %v2539 = vadd.f32 %v2426, %v2523
        %v2540 = vadd.f32 %v2427, %v2524
        %v2541 = vadd.f32 %v2428, %v2525
        %v2542 = vadd.f32 %v2429, %v2526
        %v2543 = vadd.f32 %v2430, %v2527
        %v2544 = vadd.f32 %v2431, %v2528
        %v2545 = vadd.f32 %v2432, %v2529
        %v2546 = vadd.f32 %v2433, %v2530
        %v2547 = vadd.f32 %v2434, %v2531
        %v2548 = vadd.f32 %v2435, %v2532
        %v2549 = vadd.f32 %v2436, %v2533
        %v2550 = vrot.slane %v2130, 2
        %v2551 = vrot.slane %v2131, 2
        %v2552 = vrot.slane %v2132, 2
        %v2553 = vrot.slane %v2133, 2
        %v2554 = vrot.slane %v2134, 2
        %v2555 = vrot.slane %v2135, 2
        %v2556 = vrot.slane %v2136, 2
        %v2557 = vrot.slane %v2137, 2
        %v2558 = vrot.slane %v2138, 2
        %v2559 = vrot.slane %v2139, 2
        %v2560 = vrot.slane %v2140, 2
        %v2561 = vrot.slane %v2141, 2
        %v2562 = vrot.slane %v2142, 2
        %v2563 = vrot.slane %v2143, 2
        %v2564 = vrot.slane %v2144, 2
        %v2565 = vrot.slane %v2145, 2
        %v2566 = vsel %vm2060, %v2558, %v2562
        %v2567 = vsel %vm2060, %v2559, %v2563
        %v2568 = vsel %vm2060, %v2560, %v2564
        %v2569 = vsel %vm2060, %v2561, %v2565
        %v2570 = vsel %vm2060, %v2554, %v2558
        %v2571 = vsel %vm2060, %v2555, %v2559
        %v2572 = vsel %vm2060, %v2556, %v2560
        %v2573 = vsel %vm2060, %v2557, %v2561
        %v2574 = vsel %vm2060, %v2550, %v2554
        %v2575 = vsel %vm2060, %v2551, %v2555
        %v2576 = vsel %vm2060, %v2552, %v2556
        %v2577 = vsel %vm2060, %v2553, %v2557
        %v2578 = vsel %vm2060, %v2562, %v2550
        %v2579 = vsel %vm2060, %v2563, %v2551
        %v2580 = vsel %vm2060, %v2564, %v2552
        %v2581 = vsel %vm2060, %v2565, %v2553
        %s2582 = scalar_lea.vmem [#allocation3], 1152
        %v2583 = vld [vmem:[%s2582] sm:$0xff]
        %v2584 = vld [vmem:[%s2582 + $0x8] sm:$0xff]
        %v2585 = vld [vmem:[%s2582 + $0x10] sm:$0xff]
        %v2586 = vld [vmem:[%s2582 + $0x18] sm:$0xff]
        %v2587 = vld [vmem:[%s2582 + $0x20] sm:$0xff]
        %v2588 = vld [vmem:[%s2582 + $0x28] sm:$0xff]
        %v2589 = vld [vmem:[%s2582 + $0x30] sm:$0xff]
        %v2590 = vld [vmem:[%s2582 + $0x38] sm:$0xff]
        %v2591 = vld [vmem:[%s2582 + $0x40] sm:$0xff]
        %v2592 = vld [vmem:[%s2582 + $0x48] sm:$0xff]
        %v2593 = vld [vmem:[%s2582 + $0x50] sm:$0xff]
        %v2594 = vld [vmem:[%s2582 + $0x58] sm:$0xff]
        %v2595 = vld [vmem:[%s2582 + $0x60] sm:$0xff]
        %v2596 = vld [vmem:[%s2582 + $0x68] sm:$0xff]
        %v2597 = vld [vmem:[%s2582 + $0x70] sm:$0xff]
        %v2598 = vld [vmem:[%s2582 + $0x78] sm:$0xff]
        %v2599 = vmul.f32 %v2574, %v2583
        %v2600 = vmul.f32 %v2575, %v2584
        %v2601 = vmul.f32 %v2576, %v2585
        %v2602 = vmul.f32 %v2577, %v2586
        %v2603 = vmul.f32 %v2570, %v2587
        %v2604 = vmul.f32 %v2571, %v2588
        %v2605 = vmul.f32 %v2572, %v2589
        %v2606 = vmul.f32 %v2573, %v2590
        %v2607 = vmul.f32 %v2566, %v2591
        %v2608 = vmul.f32 %v2567, %v2592
        %v2609 = vmul.f32 %v2568, %v2593
        %v2610 = vmul.f32 %v2569, %v2594
        %v2611 = vmul.f32 %v2578, %v2595
        %v2612 = vmul.f32 %v2579, %v2596
        %v2613 = vmul.f32 %v2580, %v2597
        %v2614 = vmul.f32 %v2581, %v2598
        %v2615 = vadd.f32 %v2502, %v2599
        %v2616 = vadd.f32 %v2503, %v2600
        %v2617 = vadd.f32 %v2504, %v2601
        %v2618 = vadd.f32 %v2505, %v2602
        %v2619 = vadd.f32 %v2506, %v2603
        %v2620 = vadd.f32 %v2507, %v2604
        %v2621 = vadd.f32 %v2508, %v2605
        %v2622 = vadd.f32 %v2509, %v2606
        %v2623 = vadd.f32 %v2510, %v2607
        %v2624 = vadd.f32 %v2511, %v2608
        %v2625 = vadd.f32 %v2512, %v2609
        %v2626 = vadd.f32 %v2513, %v2610
        %v2627 = vadd.f32 %v2514, %v2611
        %v2628 = vadd.f32 %v2515, %v2612
        %v2629 = vadd.f32 %v2516, %v2613
        %v2630 = vadd.f32 %v2517, %v2614
        %v2631 = vmul.f32 %v2574, %v2078
        %v2632 = vmul.f32 %v2575, %v2079
        %v2633 = vmul.f32 %v2576, %v2080
        %v2634 = vmul.f32 %v2577, %v2081
        %v2635 = vmul.f32 %v2570, %v2082
        %v2636 = vmul.f32 %v2571, %v2083
        %v2637 = vmul.f32 %v2572, %v2084
        %v2638 = vmul.f32 %v2573, %v2085
        %v2639 = vmul.f32 %v2566, %v2086
        %v2640 = vmul.f32 %v2567, %v2087
        %v2641 = vmul.f32 %v2568, %v2088
        %v2642 = vmul.f32 %v2569, %v2089
        %v2643 = vmul.f32 %v2578, %v2090
        %v2644 = vmul.f32 %v2579, %v2091
        %v2645 = vmul.f32 %v2580, %v2092
        %v2646 = vmul.f32 %v2581, %v2093
        %v2647 = vadd.f32 %v2534, %v2631
        %v2648 = vadd.f32 %v2535, %v2632
        %v2649 = vadd.f32 %v2536, %v2633
        %v2650 = vadd.f32 %v2537, %v2634
        %v2651 = vadd.f32 %v2538, %v2635
        %v2652 = vadd.f32 %v2539, %v2636
        %v2653 = vadd.f32 %v2540, %v2637
        %v2654 = vadd.f32 %v2541, %v2638
        %v2655 = vadd.f32 %v2542, %v2639
        %v2656 = vadd.f32 %v2543, %v2640
        %v2657 = vadd.f32 %v2544, %v2641
        %v2658 = vadd.f32 %v2545, %v2642
        %v2659 = vadd.f32 %v2546, %v2643
        %v2660 = vadd.f32 %v2547, %v2644
        %v2661 = vadd.f32 %v2548, %v2645
        %v2662 = vadd.f32 %v2549, %v2646
        %s2663 = sadd.s32 %s1744, 2
        %s2664 = smul.u32 %s2663, 16
        %s2665 = smul.addr %s2664, 8
        %s2666 = scalar_lea.vmem [#allocation2], %s2665
        %v2667 = vld [vmem:[%s2666] sm:$0xff]
        %v2668 = vld [vmem:[%s2666 + $0x8] sm:$0xff]
        %v2669 = vld [vmem:[%s2666 + $0x10] sm:$0xff]
        %v2670 = vld [vmem:[%s2666 + $0x18] sm:$0xff]
        %v2671 = vld [vmem:[%s2666 + $0x20] sm:$0xff]
        %v2672 = vld [vmem:[%s2666 + $0x28] sm:$0xff]
        %v2673 = vld [vmem:[%s2666 + $0x30] sm:$0xff]
        %v2674 = vld [vmem:[%s2666 + $0x38] sm:$0xff]
        %v2675 = vld [vmem:[%s2666 + $0x40] sm:$0xff]
        %v2676 = vld [vmem:[%s2666 + $0x48] sm:$0xff]
        %v2677 = vld [vmem:[%s2666 + $0x50] sm:$0xff]
        %v2678 = vld [vmem:[%s2666 + $0x58] sm:$0xff]
        %v2679 = vld [vmem:[%s2666 + $0x60] sm:$0xff]
        %v2680 = vld [vmem:[%s2666 + $0x68] sm:$0xff]
        %v2681 = vld [vmem:[%s2666 + $0x70] sm:$0xff]
        %v2682 = vld [vmem:[%s2666 + $0x78] sm:$0xff]
        %v2683 = vrot.slane %v2667, 6
        %v2684 = vrot.slane %v2668, 6
        %v2685 = vrot.slane %v2669, 6
        %v2686 = vrot.slane %v2670, 6
        %v2687 = vrot.slane %v2671, 6
        %v2688 = vrot.slane %v2672, 6
        %v2689 = vrot.slane %v2673, 6
        %v2690 = vrot.slane %v2674, 6
        %v2691 = vrot.slane %v2675, 6
        %v2692 = vrot.slane %v2676, 6
        %v2693 = vrot.slane %v2677, 6
        %v2694 = vrot.slane %v2678, 6
        %v2695 = vrot.slane %v2679, 6
        %v2696 = vrot.slane %v2680, 6
        %v2697 = vrot.slane %v2681, 6
        %v2698 = vrot.slane %v2682, 6
        %v2699 = vsel %vm1782, %v2691, %v2695
        %v2700 = vsel %vm1782, %v2692, %v2696
        %v2701 = vsel %vm1782, %v2693, %v2697
        %v2702 = vsel %vm1782, %v2694, %v2698
        %v2703 = vsel %vm1782, %v2687, %v2691
        %v2704 = vsel %vm1782, %v2688, %v2692
        %v2705 = vsel %vm1782, %v2689, %v2693
        %v2706 = vsel %vm1782, %v2690, %v2694
        %v2707 = vsel %vm1782, %v2683, %v2687
        %v2708 = vsel %vm1782, %v2684, %v2688
        %v2709 = vsel %vm1782, %v2685, %v2689
        %v2710 = vsel %vm1782, %v2686, %v2690
        %v2711 = vsel %vm1782, %v2695, %v2683
        %v2712 = vsel %vm1782, %v2696, %v2684
        %v2713 = vsel %vm1782, %v2697, %v2685
        %v2714 = vsel %vm1782, %v2698, %v2686
        %s2715 = scalar_lea.vmem [#allocation3], 1280
        %v2716 = vld [vmem:[%s2715] sm:$0xff]
        %v2717 = vld [vmem:[%s2715 + $0x8] sm:$0xff]
        %v2718 = vld [vmem:[%s2715 + $0x10] sm:$0xff]
        %v2719 = vld [vmem:[%s2715 + $0x18] sm:$0xff]
        %v2720 = vld [vmem:[%s2715 + $0x20] sm:$0xff]
        %v2721 = vld [vmem:[%s2715 + $0x28] sm:$0xff]
        %v2722 = vld [vmem:[%s2715 + $0x30] sm:$0xff]
        %v2723 = vld [vmem:[%s2715 + $0x38] sm:$0xff]
        %v2724 = vld [vmem:[%s2715 + $0x40] sm:$0xff]
        %v2725 = vld [vmem:[%s2715 + $0x48] sm:$0xff]
        %v2726 = vld [vmem:[%s2715 + $0x50] sm:$0xff]
        %v2727 = vld [vmem:[%s2715 + $0x58] sm:$0xff]
        %v2728 = vld [vmem:[%s2715 + $0x60] sm:$0xff]
        %v2729 = vld [vmem:[%s2715 + $0x68] sm:$0xff]
        %v2730 = vld [vmem:[%s2715 + $0x70] sm:$0xff]
        %v2731 = vld [vmem:[%s2715 + $0x78] sm:$0xff]
        %v2732 = vmul.f32 %v2711, %v2716
        %v2733 = vmul.f32 %v2712, %v2717
        %v2734 = vmul.f32 %v2713, %v2718
        %v2735 = vmul.f32 %v2714, %v2719
        %v2736 = vmul.f32 %v2707, %v2720
        %v2737 = vmul.f32 %v2708, %v2721
        %v2738 = vmul.f32 %v2709, %v2722
        %v2739 = vmul.f32 %v2710, %v2723
        %v2740 = vmul.f32 %v2703, %v2724
        %v2741 = vmul.f32 %v2704, %v2725
        %v2742 = vmul.f32 %v2705, %v2726
        %v2743 = vmul.f32 %v2706, %v2727
        %v2744 = vmul.f32 %v2699, %v2728
        %v2745 = vmul.f32 %v2700, %v2729
        %v2746 = vmul.f32 %v2701, %v2730
        %v2747 = vmul.f32 %v2702, %v2731
        %v2748 = vadd.f32 %v2615, %v2732
        %v2749 = vadd.f32 %v2616, %v2733
        %v2750 = vadd.f32 %v2617, %v2734
        %v2751 = vadd.f32 %v2618, %v2735
        %v2752 = vadd.f32 %v2619, %v2736
        %v2753 = vadd.f32 %v2620, %v2737
        %v2754 = vadd.f32 %v2621, %v2738
        %v2755 = vadd.f32 %v2622, %v2739
        %v2756 = vadd.f32 %v2623, %v2740
        %v2757 = vadd.f32 %v2624, %v2741
        %v2758 = vadd.f32 %v2625, %v2742
        %v2759 = vadd.f32 %v2626, %v2743
        %v2760 = vadd.f32 %v2627, %v2744
        %v2761 = vadd.f32 %v2628, %v2745
        %v2762 = vadd.f32 %v2629, %v2746
        %v2763 = vadd.f32 %v2630, %v2747
        %v2764 = vmul.f32 %v2711, %v2179
        %v2765 = vmul.f32 %v2712, %v2180
        %v2766 = vmul.f32 %v2713, %v2181
        %v2767 = vmul.f32 %v2714, %v2182
        %v2768 = vmul.f32 %v2707, %v2183
        %v2769 = vmul.f32 %v2708, %v2184
        %v2770 = vmul.f32 %v2709, %v2185
        %v2771 = vmul.f32 %v2710, %v2186
        %v2772 = vmul.f32 %v2703, %v2187
        %v2773 = vmul.f32 %v2704, %v2188
        %v2774 = vmul.f32 %v2705, %v2189
        %v2775 = vmul.f32 %v2706, %v2190
        %v2776 = vmul.f32 %v2699, %v2191
        %v2777 = vmul.f32 %v2700, %v2192
        %v2778 = vmul.f32 %v2701, %v2193
        %v2779 = vmul.f32 %v2702, %v2194
        %v2780 = vadd.f32 %v2647, %v2764
        %v2781 = vadd.f32 %v2648, %v2765
        %v2782 = vadd.f32 %v2649, %v2766
        %v2783 = vadd.f32 %v2650, %v2767
        %v2784 = vadd.f32 %v2651, %v2768
        %v2785 = vadd.f32 %v2652, %v2769
        %v2786 = vadd.f32 %v2653, %v2770
        %v2787 = vadd.f32 %v2654, %v2771
        %v2788 = vadd.f32 %v2655, %v2772
        %v2789 = vadd.f32 %v2656, %v2773
        %v2790 = vadd.f32 %v2657, %v2774
        %v2791 = vadd.f32 %v2658, %v2775
        %v2792 = vadd.f32 %v2659, %v2776
        %v2793 = vadd.f32 %v2660, %v2777
        %v2794 = vadd.f32 %v2661, %v2778
        %v2795 = vadd.f32 %v2662, %v2779
        %v2796 = vrot.slane %v2667, 7
        %v2797 = vrot.slane %v2668, 7
        %v2798 = vrot.slane %v2669, 7
        %v2799 = vrot.slane %v2670, 7
        %v2800 = vrot.slane %v2671, 7
        %v2801 = vrot.slane %v2672, 7
        %v2802 = vrot.slane %v2673, 7
        %v2803 = vrot.slane %v2674, 7
        %v2804 = vrot.slane %v2675, 7
        %v2805 = vrot.slane %v2676, 7
        %v2806 = vrot.slane %v2677, 7
        %v2807 = vrot.slane %v2678, 7
        %v2808 = vrot.slane %v2679, 7
        %v2809 = vrot.slane %v2680, 7
        %v2810 = vrot.slane %v2681, 7
        %v2811 = vrot.slane %v2682, 7
        %v2812 = vsel %vm1847, %v2804, %v2808
        %v2813 = vsel %vm1847, %v2805, %v2809
        %v2814 = vsel %vm1847, %v2806, %v2810
        %v2815 = vsel %vm1847, %v2807, %v2811
        %v2816 = vsel %vm1847, %v2800, %v2804
        %v2817 = vsel %vm1847, %v2801, %v2805
        %v2818 = vsel %vm1847, %v2802, %v2806
        %v2819 = vsel %vm1847, %v2803, %v2807
        %v2820 = vsel %vm1847, %v2796, %v2800
        %v2821 = vsel %vm1847, %v2797, %v2801
        %v2822 = vsel %vm1847, %v2798, %v2802
        %v2823 = vsel %vm1847, %v2799, %v2803
        %v2824 = vsel %vm1847, %v2808, %v2796
        %v2825 = vsel %vm1847, %v2809, %v2797
        %v2826 = vsel %vm1847, %v2810, %v2798
        %v2827 = vsel %vm1847, %v2811, %v2799
        %s2828 = scalar_lea.vmem [#allocation3], 1408
        %v2829 = vld [vmem:[%s2828] sm:$0xff]
        %v2830 = vld [vmem:[%s2828 + $0x8] sm:$0xff]
        %v2831 = vld [vmem:[%s2828 + $0x10] sm:$0xff]
        %v2832 = vld [vmem:[%s2828 + $0x18] sm:$0xff]
        %v2833 = vld [vmem:[%s2828 + $0x20] sm:$0xff]
        %v2834 = vld [vmem:[%s2828 + $0x28] sm:$0xff]
        %v2835 = vld [vmem:[%s2828 + $0x30] sm:$0xff]
        %v2836 = vld [vmem:[%s2828 + $0x38] sm:$0xff]
        %v2837 = vld [vmem:[%s2828 + $0x40] sm:$0xff]
        %v2838 = vld [vmem:[%s2828 + $0x48] sm:$0xff]
        %v2839 = vld [vmem:[%s2828 + $0x50] sm:$0xff]
        %v2840 = vld [vmem:[%s2828 + $0x58] sm:$0xff]
        %v2841 = vld [vmem:[%s2828 + $0x60] sm:$0xff]
        %v2842 = vld [vmem:[%s2828 + $0x68] sm:$0xff]
        %v2843 = vld [vmem:[%s2828 + $0x70] sm:$0xff]
        %v2844 = vld [vmem:[%s2828 + $0x78] sm:$0xff]
        %v2845 = vmul.f32 %v2824, %v2829
        %v2846 = vmul.f32 %v2825, %v2830
        %v2847 = vmul.f32 %v2826, %v2831
        %v2848 = vmul.f32 %v2827, %v2832
        %v2849 = vmul.f32 %v2820, %v2833
        %v2850 = vmul.f32 %v2821, %v2834
        %v2851 = vmul.f32 %v2822, %v2835
        %v2852 = vmul.f32 %v2823, %v2836
        %v2853 = vmul.f32 %v2816, %v2837
        %v2854 = vmul.f32 %v2817, %v2838
        %v2855 = vmul.f32 %v2818, %v2839
        %v2856 = vmul.f32 %v2819, %v2840
        %v2857 = vmul.f32 %v2812, %v2841
        %v2858 = vmul.f32 %v2813, %v2842
        %v2859 = vmul.f32 %v2814, %v2843
        %v2860 = vmul.f32 %v2815, %v2844
        %v2861 = vadd.f32 %v2748, %v2845
        %v2862 = vadd.f32 %v2749, %v2846
        %v2863 = vadd.f32 %v2750, %v2847
        %v2864 = vadd.f32 %v2751, %v2848
        %v2865 = vadd.f32 %v2752, %v2849
        %v2866 = vadd.f32 %v2753, %v2850
        %v2867 = vadd.f32 %v2754, %v2851
        %v2868 = vadd.f32 %v2755, %v2852
        %v2869 = vadd.f32 %v2756, %v2853
        %v2870 = vadd.f32 %v2757, %v2854
        %v2871 = vadd.f32 %v2758, %v2855
        %v2872 = vadd.f32 %v2759, %v2856
        %v2873 = vadd.f32 %v2760, %v2857
        %v2874 = vadd.f32 %v2761, %v2858
        %v2875 = vadd.f32 %v2762, %v2859
        %v2876 = vadd.f32 %v2763, %v2860
        %v2877 = vmul.f32 %v2824, %v2276
        %v2878 = vmul.f32 %v2825, %v2277
        %v2879 = vmul.f32 %v2826, %v2278
        %v2880 = vmul.f32 %v2827, %v2279
        %v2881 = vmul.f32 %v2820, %v2280
        %v2882 = vmul.f32 %v2821, %v2281
        %v2883 = vmul.f32 %v2822, %v2282
        %v2884 = vmul.f32 %v2823, %v2283
        %v2885 = vmul.f32 %v2816, %v2284
        %v2886 = vmul.f32 %v2817, %v2285
        %v2887 = vmul.f32 %v2818, %v2286
        %v2888 = vmul.f32 %v2819, %v2287
        %v2889 = vmul.f32 %v2812, %v2288
        %v2890 = vmul.f32 %v2813, %v2289
        %v2891 = vmul.f32 %v2814, %v2290
        %v2892 = vmul.f32 %v2815, %v2291
        %v2893 = vadd.f32 %v2780, %v2877
        %v2894 = vadd.f32 %v2781, %v2878
        %v2895 = vadd.f32 %v2782, %v2879
        %v2896 = vadd.f32 %v2783, %v2880
        %v2897 = vadd.f32 %v2784, %v2881
        %v2898 = vadd.f32 %v2785, %v2882
        %v2899 = vadd.f32 %v2786, %v2883
        %v2900 = vadd.f32 %v2787, %v2884
        %v2901 = vadd.f32 %v2788, %v2885
        %v2902 = vadd.f32 %v2789, %v2886
        %v2903 = vadd.f32 %v2790, %v2887
        %v2904 = vadd.f32 %v2791, %v2888
        %v2905 = vadd.f32 %v2792, %v2889
        %v2906 = vadd.f32 %v2793, %v2890
        %v2907 = vadd.f32 %v2794, %v2891
        %v2908 = vadd.f32 %v2795, %v2892
        %s2909 = scalar_lea.vmem [#allocation3], 1536
        %v2910 = vld [vmem:[%s2909] sm:$0xff]
        %v2911 = vld [vmem:[%s2909 + $0x8] sm:$0xff]
        %v2912 = vld [vmem:[%s2909 + $0x10] sm:$0xff]
        %v2913 = vld [vmem:[%s2909 + $0x18] sm:$0xff]
        %v2914 = vld [vmem:[%s2909 + $0x20] sm:$0xff]
        %v2915 = vld [vmem:[%s2909 + $0x28] sm:$0xff]
        %v2916 = vld [vmem:[%s2909 + $0x30] sm:$0xff]
        %v2917 = vld [vmem:[%s2909 + $0x38] sm:$0xff]
        %v2918 = vld [vmem:[%s2909 + $0x40] sm:$0xff]
        %v2919 = vld [vmem:[%s2909 + $0x48] sm:$0xff]
        %v2920 = vld [vmem:[%s2909 + $0x50] sm:$0xff]
        %v2921 = vld [vmem:[%s2909 + $0x58] sm:$0xff]
        %v2922 = vld [vmem:[%s2909 + $0x60] sm:$0xff]
        %v2923 = vld [vmem:[%s2909 + $0x68] sm:$0xff]
        %v2924 = vld [vmem:[%s2909 + $0x70] sm:$0xff]
        %v2925 = vld [vmem:[%s2909 + $0x78] sm:$0xff]
        %v2926 = vmul.f32 %v2667, %v2910
        %v2927 = vmul.f32 %v2668, %v2911
        %v2928 = vmul.f32 %v2669, %v2912
        %v2929 = vmul.f32 %v2670, %v2913
        %v2930 = vmul.f32 %v2671, %v2914
        %v2931 = vmul.f32 %v2672, %v2915
        %v2932 = vmul.f32 %v2673, %v2916
        %v2933 = vmul.f32 %v2674, %v2917
        %v2934 = vmul.f32 %v2675, %v2918
        %v2935 = vmul.f32 %v2676, %v2919
        %v2936 = vmul.f32 %v2677, %v2920
        %v2937 = vmul.f32 %v2678, %v2921
        %v2938 = vmul.f32 %v2679, %v2922
        %v2939 = vmul.f32 %v2680, %v2923
        %v2940 = vmul.f32 %v2681, %v2924
        %v2941 = vmul.f32 %v2682, %v2925
        %v2942 = vadd.f32 %v2861, %v2926
        %v2943 = vadd.f32 %v2862, %v2927
        %v2944 = vadd.f32 %v2863, %v2928
        %v2945 = vadd.f32 %v2864, %v2929
        %v2946 = vadd.f32 %v2865, %v2930
        %v2947 = vadd.f32 %v2866, %v2931
        %v2948 = vadd.f32 %v2867, %v2932
        %v2949 = vadd.f32 %v2868, %v2933
        %v2950 = vadd.f32 %v2869, %v2934
        %v2951 = vadd.f32 %v2870, %v2935
        %v2952 = vadd.f32 %v2871, %v2936
        %v2953 = vadd.f32 %v2872, %v2937
        %v2954 = vadd.f32 %v2873, %v2938
        %v2955 = vadd.f32 %v2874, %v2939
        %v2956 = vadd.f32 %v2875, %v2940
        %v2957 = vadd.f32 %v2876, %v2941
        %v2958 = vmul.f32 %v2667, %v2357
        %v2959 = vmul.f32 %v2668, %v2358
        %v2960 = vmul.f32 %v2669, %v2359
        %v2961 = vmul.f32 %v2670, %v2360
        %v2962 = vmul.f32 %v2671, %v2361
        %v2963 = vmul.f32 %v2672, %v2362
        %v2964 = vmul.f32 %v2673, %v2363
        %v2965 = vmul.f32 %v2674, %v2364
        %v2966 = vmul.f32 %v2675, %v2365
        %v2967 = vmul.f32 %v2676, %v2366
        %v2968 = vmul.f32 %v2677, %v2367
        %v2969 = vmul.f32 %v2678, %v2368
        %v2970 = vmul.f32 %v2679, %v2369
        %v2971 = vmul.f32 %v2680, %v2370
        %v2972 = vmul.f32 %v2681, %v2371
        %v2973 = vmul.f32 %v2682, %v2372
        %v2974 = vadd.f32 %v2893, %v2958
        %v2975 = vadd.f32 %v2894, %v2959
        %v2976 = vadd.f32 %v2895, %v2960
        %v2977 = vadd.f32 %v2896, %v2961
        %v2978 = vadd.f32 %v2897, %v2962
        %v2979 = vadd.f32 %v2898, %v2963
        %v2980 = vadd.f32 %v2899, %v2964
        %v2981 = vadd.f32 %v2900, %v2965
        %v2982 = vadd.f32 %v2901, %v2966
        %v2983 = vadd.f32 %v2902, %v2967
        %v2984 = vadd.f32 %v2903, %v2968
        %v2985 = vadd.f32 %v2904, %v2969
        %v2986 = vadd.f32 %v2905, %v2970
        %v2987 = vadd.f32 %v2906, %v2971
        %v2988 = vadd.f32 %v2907, %v2972
        %v2989 = vadd.f32 %v2908, %v2973
        %v2990 = vrot.slane %v2667, 1
        %v2991 = vrot.slane %v2668, 1
        %v2992 = vrot.slane %v2669, 1
        %v2993 = vrot.slane %v2670, 1
        %v2994 = vrot.slane %v2671, 1
        %v2995 = vrot.slane %v2672, 1
        %v2996 = vrot.slane %v2673, 1
        %v2997 = vrot.slane %v2674, 1
        %v2998 = vrot.slane %v2675, 1
        %v2999 = vrot.slane %v2676, 1
        %v3000 = vrot.slane %v2677, 1
        %v3001 = vrot.slane %v2678, 1
        %v3002 = vrot.slane %v2679, 1
        %v3003 = vrot.slane %v2680, 1
        %v3004 = vrot.slane %v2681, 1
        %v3005 = vrot.slane %v2682, 1
        %v3006 = vsel %vm1978, %v2998, %v3002
        %v3007 = vsel %vm1978, %v2999, %v3003
        %v3008 = vsel %vm1978, %v3000, %v3004
        %v3009 = vsel %vm1978, %v3001, %v3005
        %v3010 = vsel %vm1978, %v2994, %v2998
        %v3011 = vsel %vm1978, %v2995, %v2999
        %v3012 = vsel %vm1978, %v2996, %v3000
        %v3013 = vsel %vm1978, %v2997, %v3001
        %v3014 = vsel %vm1978, %v2990, %v2994
        %v3015 = vsel %vm1978, %v2991, %v2995
        %v3016 = vsel %vm1978, %v2992, %v2996
        %v3017 = vsel %vm1978, %v2993, %v2997
        %v3018 = vsel %vm1978, %v3002, %v2990
        %v3019 = vsel %vm1978, %v3003, %v2991
        %v3020 = vsel %vm1978, %v3004, %v2992
        %v3021 = vsel %vm1978, %v3005, %v2993
        %s3022 = scalar_lea.vmem [#allocation3], 1664
        %v3023 = vld [vmem:[%s3022] sm:$0xff]
        %v3024 = vld [vmem:[%s3022 + $0x8] sm:$0xff]
        %v3025 = vld [vmem:[%s3022 + $0x10] sm:$0xff]
        %v3026 = vld [vmem:[%s3022 + $0x18] sm:$0xff]
        %v3027 = vld [vmem:[%s3022 + $0x20] sm:$0xff]
        %v3028 = vld [vmem:[%s3022 + $0x28] sm:$0xff]
        %v3029 = vld [vmem:[%s3022 + $0x30] sm:$0xff]
        %v3030 = vld [vmem:[%s3022 + $0x38] sm:$0xff]
        %v3031 = vld [vmem:[%s3022 + $0x40] sm:$0xff]
        %v3032 = vld [vmem:[%s3022 + $0x48] sm:$0xff]
        %v3033 = vld [vmem:[%s3022 + $0x50] sm:$0xff]
        %v3034 = vld [vmem:[%s3022 + $0x58] sm:$0xff]
        %v3035 = vld [vmem:[%s3022 + $0x60] sm:$0xff]
        %v3036 = vld [vmem:[%s3022 + $0x68] sm:$0xff]
        %v3037 = vld [vmem:[%s3022 + $0x70] sm:$0xff]
        %v3038 = vld [vmem:[%s3022 + $0x78] sm:$0xff]
        %v3039 = vmul.f32 %v3014, %v3023
        %v3040 = vmul.f32 %v3015, %v3024
        %v3041 = vmul.f32 %v3016, %v3025
        %v3042 = vmul.f32 %v3017, %v3026
        %v3043 = vmul.f32 %v3010, %v3027
        %v3044 = vmul.f32 %v3011, %v3028
        %v3045 = vmul.f32 %v3012, %v3029
        %v3046 = vmul.f32 %v3013, %v3030
        %v3047 = vmul.f32 %v3006, %v3031
        %v3048 = vmul.f32 %v3007, %v3032
        %v3049 = vmul.f32 %v3008, %v3033
        %v3050 = vmul.f32 %v3009, %v3034
        %v3051 = vmul.f32 %v3018, %v3035
        %v3052 = vmul.f32 %v3019, %v3036
        %v3053 = vmul.f32 %v3020, %v3037
        %v3054 = vmul.f32 %v3021, %v3038
        %v3055 = vadd.f32 %v2942, %v3039
        %v3056 = vadd.f32 %v2943, %v3040
        %v3057 = vadd.f32 %v2944, %v3041
        %v3058 = vadd.f32 %v2945, %v3042
        %v3059 = vadd.f32 %v2946, %v3043
        %v3060 = vadd.f32 %v2947, %v3044
        %v3061 = vadd.f32 %v2948, %v3045
        %v3062 = vadd.f32 %v2949, %v3046
        %v3063 = vadd.f32 %v2950, %v3047
        %v3064 = vadd.f32 %v2951, %v3048
        %v3065 = vadd.f32 %v2952, %v3049
        %v3066 = vadd.f32 %v2953, %v3050
        %v3067 = vadd.f32 %v2954, %v3051
        %v3068 = vadd.f32 %v2955, %v3052
        %v3069 = vadd.f32 %v2956, %v3053
        %v3070 = vadd.f32 %v2957, %v3054
        %v3071 = vmul.f32 %v3014, %v2470
        %v3072 = vmul.f32 %v3015, %v2471
        %v3073 = vmul.f32 %v3016, %v2472
        %v3074 = vmul.f32 %v3017, %v2473
        %v3075 = vmul.f32 %v3010, %v2474
        %v3076 = vmul.f32 %v3011, %v2475
        %v3077 = vmul.f32 %v3012, %v2476
        %v3078 = vmul.f32 %v3013, %v2477
        %v3079 = vmul.f32 %v3006, %v2478
        %v3080 = vmul.f32 %v3007, %v2479
        %v3081 = vmul.f32 %v3008, %v2480
        %v3082 = vmul.f32 %v3009, %v2481
        %v3083 = vmul.f32 %v3018, %v2482
        %v3084 = vmul.f32 %v3019, %v2483
        %v3085 = vmul.f32 %v3020, %v2484
        %v3086 = vmul.f32 %v3021, %v2485
        %v3087 = vadd.f32 %v2974, %v3071
        %v3088 = vadd.f32 %v2975, %v3072
        %v3089 = vadd.f32 %v2976, %v3073
        %v3090 = vadd.f32 %v2977, %v3074
        %v3091 = vadd.f32 %v2978, %v3075
        %v3092 = vadd.f32 %v2979, %v3076
        %v3093 = vadd.f32 %v2980, %v3077
        %v3094 = vadd.f32 %v2981, %v3078
        %v3095 = vadd.f32 %v2982, %v3079
        %v3096 = vadd.f32 %v2983, %v3080
        %v3097 = vadd.f32 %v2984, %v3081
        %v3098 = vadd.f32 %v2985, %v3082
        %v3099 = vadd.f32 %v2986, %v3083
        %v3100 = vadd.f32 %v2987, %v3084
        %v3101 = vadd.f32 %v2988, %v3085
        %v3102 = vadd.f32 %v2989, %v3086
        %v3103 = vrot.slane %v2667, 2
        %v3104 = vrot.slane %v2668, 2
        %v3105 = vrot.slane %v2669, 2
        %v3106 = vrot.slane %v2670, 2
        %v3107 = vrot.slane %v2671, 2
        %v3108 = vrot.slane %v2672, 2
        %v3109 = vrot.slane %v2673, 2
        %v3110 = vrot.slane %v2674, 2
        %v3111 = vrot.slane %v2675, 2
        %v3112 = vrot.slane %v2676, 2
        %v3113 = vrot.slane %v2677, 2
        %v3114 = vrot.slane %v2678, 2
        %v3115 = vrot.slane %v2679, 2
        %v3116 = vrot.slane %v2680, 2
        %v3117 = vrot.slane %v2681, 2
        %v3118 = vrot.slane %v2682, 2
        %v3119 = vsel %vm2060, %v3111, %v3115
        %v3120 = vsel %vm2060, %v3112, %v3116
        %v3121 = vsel %vm2060, %v3113, %v3117
        %v3122 = vsel %vm2060, %v3114, %v3118
        %v3123 = vsel %vm2060, %v3107, %v3111
        %v3124 = vsel %vm2060, %v3108, %v3112
        %v3125 = vsel %vm2060, %v3109, %v3113
        %v3126 = vsel %vm2060, %v3110, %v3114
        %v3127 = vsel %vm2060, %v3103, %v3107
        %v3128 = vsel %vm2060, %v3104, %v3108
        %v3129 = vsel %vm2060, %v3105, %v3109
        %v3130 = vsel %vm2060, %v3106, %v3110
        %v3131 = vsel %vm2060, %v3115, %v3103
        %v3132 = vsel %vm2060, %v3116, %v3104
        %v3133 = vsel %vm2060, %v3117, %v3105
        %v3134 = vsel %vm2060, %v3118, %v3106
        %s3135 = scalar_lea.vmem [#allocation3], 1792
        %v3136 = vld [vmem:[%s3135] sm:$0xff]
        %v3137 = vld [vmem:[%s3135 + $0x8] sm:$0xff]
        %v3138 = vld [vmem:[%s3135 + $0x10] sm:$0xff]
        %v3139 = vld [vmem:[%s3135 + $0x18] sm:$0xff]
        %v3140 = vld [vmem:[%s3135 + $0x20] sm:$0xff]
        %v3141 = vld [vmem:[%s3135 + $0x28] sm:$0xff]
        %v3142 = vld [vmem:[%s3135 + $0x30] sm:$0xff]
        %v3143 = vld [vmem:[%s3135 + $0x38] sm:$0xff]
        %v3144 = vld [vmem:[%s3135 + $0x40] sm:$0xff]
        %v3145 = vld [vmem:[%s3135 + $0x48] sm:$0xff]
        %v3146 = vld [vmem:[%s3135 + $0x50] sm:$0xff]
        %v3147 = vld [vmem:[%s3135 + $0x58] sm:$0xff]
        %v3148 = vld [vmem:[%s3135 + $0x60] sm:$0xff]
        %v3149 = vld [vmem:[%s3135 + $0x68] sm:$0xff]
        %v3150 = vld [vmem:[%s3135 + $0x70] sm:$0xff]
        %v3151 = vld [vmem:[%s3135 + $0x78] sm:$0xff]
        %v3152 = vmul.f32 %v3127, %v3136
        %v3153 = vmul.f32 %v3128, %v3137
        %v3154 = vmul.f32 %v3129, %v3138
        %v3155 = vmul.f32 %v3130, %v3139
        %v3156 = vmul.f32 %v3123, %v3140
        %v3157 = vmul.f32 %v3124, %v3141
        %v3158 = vmul.f32 %v3125, %v3142
        %v3159 = vmul.f32 %v3126, %v3143
        %v3160 = vmul.f32 %v3119, %v3144
        %v3161 = vmul.f32 %v3120, %v3145
        %v3162 = vmul.f32 %v3121, %v3146
        %v3163 = vmul.f32 %v3122, %v3147
        %v3164 = vmul.f32 %v3131, %v3148
        %v3165 = vmul.f32 %v3132, %v3149
        %v3166 = vmul.f32 %v3133, %v3150
        %v3167 = vmul.f32 %v3134, %v3151
        %v3168 = vadd.f32 %v3055, %v3152
        %v3169 = vadd.f32 %v3056, %v3153
        %v3170 = vadd.f32 %v3057, %v3154
        %v3171 = vadd.f32 %v3058, %v3155
        %v3172 = vadd.f32 %v3059, %v3156
        %v3173 = vadd.f32 %v3060, %v3157
        %v3174 = vadd.f32 %v3061, %v3158
        %v3175 = vadd.f32 %v3062, %v3159
        %v3176 = vadd.f32 %v3063, %v3160
        %v3177 = vadd.f32 %v3064, %v3161
        %v3178 = vadd.f32 %v3065, %v3162
        %v3179 = vadd.f32 %v3066, %v3163
        %v3180 = vadd.f32 %v3067, %v3164
        %v3181 = vadd.f32 %v3068, %v3165
        %v3182 = vadd.f32 %v3069, %v3166
        %v3183 = vadd.f32 %v3070, %v3167
        %v3184 = vmul.f32 %v3127, %v2583
        %v3185 = vmul.f32 %v3128, %v2584
        %v3186 = vmul.f32 %v3129, %v2585
        %v3187 = vmul.f32 %v3130, %v2586
        %v3188 = vmul.f32 %v3123, %v2587
        %v3189 = vmul.f32 %v3124, %v2588
        %v3190 = vmul.f32 %v3125, %v2589
        %v3191 = vmul.f32 %v3126, %v2590
        %v3192 = vmul.f32 %v3119, %v2591
        %v3193 = vmul.f32 %v3120, %v2592
        %v3194 = vmul.f32 %v3121, %v2593
        %v3195 = vmul.f32 %v3122, %v2594
        %v3196 = vmul.f32 %v3131, %v2595
        %v3197 = vmul.f32 %v3132, %v2596
        %v3198 = vmul.f32 %v3133, %v2597
        %v3199 = vmul.f32 %v3134, %v2598
        %v3200 = vadd.f32 %v3087, %v3184
        %v3201 = vadd.f32 %v3088, %v3185
        %v3202 = vadd.f32 %v3089, %v3186
        %v3203 = vadd.f32 %v3090, %v3187
        %v3204 = vadd.f32 %v3091, %v3188
        %v3205 = vadd.f32 %v3092, %v3189
        %v3206 = vadd.f32 %v3093, %v3190
        %v3207 = vadd.f32 %v3094, %v3191
        %v3208 = vadd.f32 %v3095, %v3192
        %v3209 = vadd.f32 %v3096, %v3193
        %v3210 = vadd.f32 %v3097, %v3194
        %v3211 = vadd.f32 %v3098, %v3195
        %v3212 = vadd.f32 %v3099, %v3196
        %v3213 = vadd.f32 %v3100, %v3197
        %v3214 = vadd.f32 %v3101, %v3198
        %v3215 = vadd.f32 %v3102, %v3199
        %s3216 = sadd.s32 %s1744, 3
        %s3217 = smul.u32 %s3216, 16
        %s3218 = smul.addr %s3217, 8
        %s3219 = scalar_lea.vmem [#allocation2], %s3218
        %v3220 = vld [vmem:[%s3219] sm:$0xff]
        %v3221 = vld [vmem:[%s3219 + $0x8] sm:$0xff]
        %v3222 = vld [vmem:[%s3219 + $0x10] sm:$0xff]
        %v3223 = vld [vmem:[%s3219 + $0x18] sm:$0xff]
        %v3224 = vld [vmem:[%s3219 + $0x20] sm:$0xff]
        %v3225 = vld [vmem:[%s3219 + $0x28] sm:$0xff]
        %v3226 = vld [vmem:[%s3219 + $0x30] sm:$0xff]
        %v3227 = vld [vmem:[%s3219 + $0x38] sm:$0xff]
        %v3228 = vld [vmem:[%s3219 + $0x40] sm:$0xff]
        %v3229 = vld [vmem:[%s3219 + $0x48] sm:$0xff]
        %v3230 = vld [vmem:[%s3219 + $0x50] sm:$0xff]
        %v3231 = vld [vmem:[%s3219 + $0x58] sm:$0xff]
        %v3232 = vld [vmem:[%s3219 + $0x60] sm:$0xff]
        %v3233 = vld [vmem:[%s3219 + $0x68] sm:$0xff]
        %v3234 = vld [vmem:[%s3219 + $0x70] sm:$0xff]
        %v3235 = vld [vmem:[%s3219 + $0x78] sm:$0xff]
        %v3236 = vrot.slane %v3220, 6
        %v3237 = vrot.slane %v3221, 6
        %v3238 = vrot.slane %v3222, 6
        %v3239 = vrot.slane %v3223, 6
        %v3240 = vrot.slane %v3224, 6
        %v3241 = vrot.slane %v3225, 6
        %v3242 = vrot.slane %v3226, 6
        %v3243 = vrot.slane %v3227, 6
        %v3244 = vrot.slane %v3228, 6
        %v3245 = vrot.slane %v3229, 6
        %v3246 = vrot.slane %v3230, 6
        %v3247 = vrot.slane %v3231, 6
        %v3248 = vrot.slane %v3232, 6
        %v3249 = vrot.slane %v3233, 6
        %v3250 = vrot.slane %v3234, 6
        %v3251 = vrot.slane %v3235, 6
        %v3252 = vsel %vm1782, %v3244, %v3248
        %v3253 = vsel %vm1782, %v3245, %v3249
        %v3254 = vsel %vm1782, %v3246, %v3250
        %v3255 = vsel %vm1782, %v3247, %v3251
        %v3256 = vsel %vm1782, %v3240, %v3244
        %v3257 = vsel %vm1782, %v3241, %v3245
        %v3258 = vsel %vm1782, %v3242, %v3246
        %v3259 = vsel %vm1782, %v3243, %v3247
        %v3260 = vsel %vm1782, %v3236, %v3240
        %v3261 = vsel %vm1782, %v3237, %v3241
        %v3262 = vsel %vm1782, %v3238, %v3242
        %v3263 = vsel %vm1782, %v3239, %v3243
        %v3264 = vsel %vm1782, %v3248, %v3236
        %v3265 = vsel %vm1782, %v3249, %v3237
        %v3266 = vsel %vm1782, %v3250, %v3238
        %v3267 = vsel %vm1782, %v3251, %v3239
        %s3268 = scalar_lea.vmem [#allocation3], 1920
        %v3269 = vld [vmem:[%s3268] sm:$0xff]
        %v3270 = vld [vmem:[%s3268 + $0x8] sm:$0xff]
        %v3271 = vld [vmem:[%s3268 + $0x10] sm:$0xff]
        %v3272 = vld [vmem:[%s3268 + $0x18] sm:$0xff]
        %v3273 = vld [vmem:[%s3268 + $0x20] sm:$0xff]
        %v3274 = vld [vmem:[%s3268 + $0x28] sm:$0xff]
        %v3275 = vld [vmem:[%s3268 + $0x30] sm:$0xff]
        %v3276 = vld [vmem:[%s3268 + $0x38] sm:$0xff]
        %v3277 = vld [vmem:[%s3268 + $0x40] sm:$0xff]
        %v3278 = vld [vmem:[%s3268 + $0x48] sm:$0xff]
        %v3279 = vld [vmem:[%s3268 + $0x50] sm:$0xff]
        %v3280 = vld [vmem:[%s3268 + $0x58] sm:$0xff]
        %v3281 = vld [vmem:[%s3268 + $0x60] sm:$0xff]
        %v3282 = vld [vmem:[%s3268 + $0x68] sm:$0xff]
        %v3283 = vld [vmem:[%s3268 + $0x70] sm:$0xff]
        %v3284 = vld [vmem:[%s3268 + $0x78] sm:$0xff]
        %v3285 = vmul.f32 %v3264, %v3269
        %v3286 = vmul.f32 %v3265, %v3270
        %v3287 = vmul.f32 %v3266, %v3271
        %v3288 = vmul.f32 %v3267, %v3272
        %v3289 = vmul.f32 %v3260, %v3273
        %v3290 = vmul.f32 %v3261, %v3274
        %v3291 = vmul.f32 %v3262, %v3275
        %v3292 = vmul.f32 %v3263, %v3276
        %v3293 = vmul.f32 %v3256, %v3277
        %v3294 = vmul.f32 %v3257, %v3278
        %v3295 = vmul.f32 %v3258, %v3279
        %v3296 = vmul.f32 %v3259, %v3280
        %v3297 = vmul.f32 %v3252, %v3281
        %v3298 = vmul.f32 %v3253, %v3282
        %v3299 = vmul.f32 %v3254, %v3283
        %v3300 = vmul.f32 %v3255, %v3284
        %v3301 = vadd.f32 %v3168, %v3285
        %v3302 = vadd.f32 %v3169, %v3286
        %v3303 = vadd.f32 %v3170, %v3287
        %v3304 = vadd.f32 %v3171, %v3288
        %v3305 = vadd.f32 %v3172, %v3289
        %v3306 = vadd.f32 %v3173, %v3290
        %v3307 = vadd.f32 %v3174, %v3291
        %v3308 = vadd.f32 %v3175, %v3292
        %v3309 = vadd.f32 %v3176, %v3293
        %v3310 = vadd.f32 %v3177, %v3294
        %v3311 = vadd.f32 %v3178, %v3295
        %v3312 = vadd.f32 %v3179, %v3296
        %v3313 = vadd.f32 %v3180, %v3297
        %v3314 = vadd.f32 %v3181, %v3298
        %v3315 = vadd.f32 %v3182, %v3299
        %v3316 = vadd.f32 %v3183, %v3300
        %v3317 = vmul.f32 %v3264, %v2716
        %v3318 = vmul.f32 %v3265, %v2717
        %v3319 = vmul.f32 %v3266, %v2718
        %v3320 = vmul.f32 %v3267, %v2719
        %v3321 = vmul.f32 %v3260, %v2720
        %v3322 = vmul.f32 %v3261, %v2721
        %v3323 = vmul.f32 %v3262, %v2722
        %v3324 = vmul.f32 %v3263, %v2723
        %v3325 = vmul.f32 %v3256, %v2724
        %v3326 = vmul.f32 %v3257, %v2725
        %v3327 = vmul.f32 %v3258, %v2726
        %v3328 = vmul.f32 %v3259, %v2727
        %v3329 = vmul.f32 %v3252, %v2728
        %v3330 = vmul.f32 %v3253, %v2729
        %v3331 = vmul.f32 %v3254, %v2730
        %v3332 = vmul.f32 %v3255, %v2731
        %v3333 = vadd.f32 %v3200, %v3317
        %v3334 = vadd.f32 %v3201, %v3318
        %v3335 = vadd.f32 %v3202, %v3319
        %v3336 = vadd.f32 %v3203, %v3320
        %v3337 = vadd.f32 %v3204, %v3321
        %v3338 = vadd.f32 %v3205, %v3322
        %v3339 = vadd.f32 %v3206, %v3323
        %v3340 = vadd.f32 %v3207, %v3324
        %v3341 = vadd.f32 %v3208, %v3325
        %v3342 = vadd.f32 %v3209, %v3326
        %v3343 = vadd.f32 %v3210, %v3327
        %v3344 = vadd.f32 %v3211, %v3328
        %v3345 = vadd.f32 %v3212, %v3329
        %v3346 = vadd.f32 %v3213, %v3330
        %v3347 = vadd.f32 %v3214, %v3331
        %v3348 = vadd.f32 %v3215, %v3332
        %v3349 = vrot.slane %v3220, 7
        %v3350 = vrot.slane %v3221, 7
        %v3351 = vrot.slane %v3222, 7
        %v3352 = vrot.slane %v3223, 7
        %v3353 = vrot.slane %v3224, 7
        %v3354 = vrot.slane %v3225, 7
        %v3355 = vrot.slane %v3226, 7
        %v3356 = vrot.slane %v3227, 7
        %v3357 = vrot.slane %v3228, 7
        %v3358 = vrot.slane %v3229, 7
        %v3359 = vrot.slane %v3230, 7
        %v3360 = vrot.slane %v3231, 7
        %v3361 = vrot.slane %v3232, 7
        %v3362 = vrot.slane %v3233, 7
        %v3363 = vrot.slane %v3234, 7
        %v3364 = vrot.slane %v3235, 7
        %v3365 = vsel %vm1847, %v3357, %v3361
        %v3366 = vsel %vm1847, %v3358, %v3362
        %v3367 = vsel %vm1847, %v3359, %v3363
        %v3368 = vsel %vm1847, %v3360, %v3364
        %v3369 = vsel %vm1847, %v3353, %v3357
        %v3370 = vsel %vm1847, %v3354, %v3358
        %v3371 = vsel %vm1847, %v3355, %v3359
        %v3372 = vsel %vm1847, %v3356, %v3360
        %v3373 = vsel %vm1847, %v3349, %v3353
        %v3374 = vsel %vm1847, %v3350, %v3354
        %v3375 = vsel %vm1847, %v3351, %v3355
        %v3376 = vsel %vm1847, %v3352, %v3356
        %v3377 = vsel %vm1847, %v3361, %v3349
        %v3378 = vsel %vm1847, %v3362, %v3350
        %v3379 = vsel %vm1847, %v3363, %v3351
        %v3380 = vsel %vm1847, %v3364, %v3352
        %s3381 = scalar_lea.vmem [#allocation3], 2048
        %v3382 = vld [vmem:[%s3381] sm:$0xff]
        %v3383 = vld [vmem:[%s3381 + $0x8] sm:$0xff]
        %v3384 = vld [vmem:[%s3381 + $0x10] sm:$0xff]
        %v3385 = vld [vmem:[%s3381 + $0x18] sm:$0xff]
        %v3386 = vld [vmem:[%s3381 + $0x20] sm:$0xff]
        %v3387 = vld [vmem:[%s3381 + $0x28] sm:$0xff]
        %v3388 = vld [vmem:[%s3381 + $0x30] sm:$0xff]
        %v3389 = vld [vmem:[%s3381 + $0x38] sm:$0xff]
        %v3390 = vld [vmem:[%s3381 + $0x40] sm:$0xff]
        %v3391 = vld [vmem:[%s3381 + $0x48] sm:$0xff]
        %v3392 = vld [vmem:[%s3381 + $0x50] sm:$0xff]
        %v3393 = vld [vmem:[%s3381 + $0x58] sm:$0xff]
        %v3394 = vld [vmem:[%s3381 + $0x60] sm:$0xff]
        %v3395 = vld [vmem:[%s3381 + $0x68] sm:$0xff]
        %v3396 = vld [vmem:[%s3381 + $0x70] sm:$0xff]
        %v3397 = vld [vmem:[%s3381 + $0x78] sm:$0xff]
        %v3398 = vmul.f32 %v3377, %v3382
        %v3399 = vmul.f32 %v3378, %v3383
        %v3400 = vmul.f32 %v3379, %v3384
        %v3401 = vmul.f32 %v3380, %v3385
        %v3402 = vmul.f32 %v3373, %v3386
        %v3403 = vmul.f32 %v3374, %v3387
        %v3404 = vmul.f32 %v3375, %v3388
        %v3405 = vmul.f32 %v3376, %v3389
        %v3406 = vmul.f32 %v3369, %v3390
        %v3407 = vmul.f32 %v3370, %v3391
        %v3408 = vmul.f32 %v3371, %v3392
        %v3409 = vmul.f32 %v3372, %v3393
        %v3410 = vmul.f32 %v3365, %v3394
        %v3411 = vmul.f32 %v3366, %v3395
        %v3412 = vmul.f32 %v3367, %v3396
        %v3413 = vmul.f32 %v3368, %v3397
        %v3414 = vadd.f32 %v3301, %v3398
        %v3415 = vadd.f32 %v3302, %v3399
        %v3416 = vadd.f32 %v3303, %v3400
        %v3417 = vadd.f32 %v3304, %v3401
        %v3418 = vadd.f32 %v3305, %v3402
        %v3419 = vadd.f32 %v3306, %v3403
        %v3420 = vadd.f32 %v3307, %v3404
        %v3421 = vadd.f32 %v3308, %v3405
        %v3422 = vadd.f32 %v3309, %v3406
        %v3423 = vadd.f32 %v3310, %v3407
        %v3424 = vadd.f32 %v3311, %v3408
        %v3425 = vadd.f32 %v3312, %v3409
        %v3426 = vadd.f32 %v3313, %v3410
        %v3427 = vadd.f32 %v3314, %v3411
        %v3428 = vadd.f32 %v3315, %v3412
        %v3429 = vadd.f32 %v3316, %v3413
        %v3430 = vmul.f32 %v3377, %v2829
        %v3431 = vmul.f32 %v3378, %v2830
        %v3432 = vmul.f32 %v3379, %v2831
        %v3433 = vmul.f32 %v3380, %v2832
        %v3434 = vmul.f32 %v3373, %v2833
        %v3435 = vmul.f32 %v3374, %v2834
        %v3436 = vmul.f32 %v3375, %v2835
        %v3437 = vmul.f32 %v3376, %v2836
        %v3438 = vmul.f32 %v3369, %v2837
        %v3439 = vmul.f32 %v3370, %v2838
        %v3440 = vmul.f32 %v3371, %v2839
        %v3441 = vmul.f32 %v3372, %v2840
        %v3442 = vmul.f32 %v3365, %v2841
        %v3443 = vmul.f32 %v3366, %v2842
        %v3444 = vmul.f32 %v3367, %v2843
        %v3445 = vmul.f32 %v3368, %v2844
        %v3446 = vadd.f32 %v3333, %v3430
        %v3447 = vadd.f32 %v3334, %v3431
        %v3448 = vadd.f32 %v3335, %v3432
        %v3449 = vadd.f32 %v3336, %v3433
        %v3450 = vadd.f32 %v3337, %v3434
        %v3451 = vadd.f32 %v3338, %v3435
        %v3452 = vadd.f32 %v3339, %v3436
        %v3453 = vadd.f32 %v3340, %v3437
        %v3454 = vadd.f32 %v3341, %v3438
        %v3455 = vadd.f32 %v3342, %v3439
        %v3456 = vadd.f32 %v3343, %v3440
        %v3457 = vadd.f32 %v3344, %v3441
        %v3458 = vadd.f32 %v3345, %v3442
        %v3459 = vadd.f32 %v3346, %v3443
        %v3460 = vadd.f32 %v3347, %v3444
        %v3461 = vadd.f32 %v3348, %v3445
        %s3462 = scalar_lea.vmem [#allocation3], 2176
        %v3463 = vld [vmem:[%s3462] sm:$0xff]
        %v3464 = vld [vmem:[%s3462 + $0x8] sm:$0xff]
        %v3465 = vld [vmem:[%s3462 + $0x10] sm:$0xff]
        %v3466 = vld [vmem:[%s3462 + $0x18] sm:$0xff]
        %v3467 = vld [vmem:[%s3462 + $0x20] sm:$0xff]
        %v3468 = vld [vmem:[%s3462 + $0x28] sm:$0xff]
        %v3469 = vld [vmem:[%s3462 + $0x30] sm:$0xff]
        %v3470 = vld [vmem:[%s3462 + $0x38] sm:$0xff]
        %v3471 = vld [vmem:[%s3462 + $0x40] sm:$0xff]
        %v3472 = vld [vmem:[%s3462 + $0x48] sm:$0xff]
        %v3473 = vld [vmem:[%s3462 + $0x50] sm:$0xff]
        %v3474 = vld [vmem:[%s3462 + $0x58] sm:$0xff]
        %v3475 = vld [vmem:[%s3462 + $0x60] sm:$0xff]
        %v3476 = vld [vmem:[%s3462 + $0x68] sm:$0xff]
        %v3477 = vld [vmem:[%s3462 + $0x70] sm:$0xff]
        %v3478 = vld [vmem:[%s3462 + $0x78] sm:$0xff]
        %v3479 = vmul.f32 %v3220, %v3463
        %v3480 = vmul.f32 %v3221, %v3464
        %v3481 = vmul.f32 %v3222, %v3465
        %v3482 = vmul.f32 %v3223, %v3466
        %v3483 = vmul.f32 %v3224, %v3467
        %v3484 = vmul.f32 %v3225, %v3468
        %v3485 = vmul.f32 %v3226, %v3469
        %v3486 = vmul.f32 %v3227, %v3470
        %v3487 = vmul.f32 %v3228, %v3471
        %v3488 = vmul.f32 %v3229, %v3472
        %v3489 = vmul.f32 %v3230, %v3473
        %v3490 = vmul.f32 %v3231, %v3474
        %v3491 = vmul.f32 %v3232, %v3475
        %v3492 = vmul.f32 %v3233, %v3476
        %v3493 = vmul.f32 %v3234, %v3477
        %v3494 = vmul.f32 %v3235, %v3478
        %v3495 = vadd.f32 %v3414, %v3479
        %v3496 = vadd.f32 %v3415, %v3480
        %v3497 = vadd.f32 %v3416, %v3481
        %v3498 = vadd.f32 %v3417, %v3482
        %v3499 = vadd.f32 %v3418, %v3483
        %v3500 = vadd.f32 %v3419, %v3484
        %v3501 = vadd.f32 %v3420, %v3485
        %v3502 = vadd.f32 %v3421, %v3486
        %v3503 = vadd.f32 %v3422, %v3487
        %v3504 = vadd.f32 %v3423, %v3488
        %v3505 = vadd.f32 %v3424, %v3489
        %v3506 = vadd.f32 %v3425, %v3490
        %v3507 = vadd.f32 %v3426, %v3491
        %v3508 = vadd.f32 %v3427, %v3492
        %v3509 = vadd.f32 %v3428, %v3493
        %v3510 = vadd.f32 %v3429, %v3494
        %v3511 = vmul.f32 %v3220, %v2910
        %v3512 = vmul.f32 %v3221, %v2911
        %v3513 = vmul.f32 %v3222, %v2912
        %v3514 = vmul.f32 %v3223, %v2913
        %v3515 = vmul.f32 %v3224, %v2914
        %v3516 = vmul.f32 %v3225, %v2915
        %v3517 = vmul.f32 %v3226, %v2916
        %v3518 = vmul.f32 %v3227, %v2917
        %v3519 = vmul.f32 %v3228, %v2918
        %v3520 = vmul.f32 %v3229, %v2919
        %v3521 = vmul.f32 %v3230, %v2920
        %v3522 = vmul.f32 %v3231, %v2921
        %v3523 = vmul.f32 %v3232, %v2922
        %v3524 = vmul.f32 %v3233, %v2923
        %v3525 = vmul.f32 %v3234, %v2924
        %v3526 = vmul.f32 %v3235, %v2925
        %v3527 = vadd.f32 %v3446, %v3511
        %v3528 = vadd.f32 %v3447, %v3512
        %v3529 = vadd.f32 %v3448, %v3513
        %v3530 = vadd.f32 %v3449, %v3514
        %v3531 = vadd.f32 %v3450, %v3515
        %v3532 = vadd.f32 %v3451, %v3516
        %v3533 = vadd.f32 %v3452, %v3517
        %v3534 = vadd.f32 %v3453, %v3518
        %v3535 = vadd.f32 %v3454, %v3519
        %v3536 = vadd.f32 %v3455, %v3520
        %v3537 = vadd.f32 %v3456, %v3521
        %v3538 = vadd.f32 %v3457, %v3522
        %v3539 = vadd.f32 %v3458, %v3523
        %v3540 = vadd.f32 %v3459, %v3524
        %v3541 = vadd.f32 %v3460, %v3525
        %v3542 = vadd.f32 %v3461, %v3526
        %v3543 = vrot.slane %v3220, 1
        %v3544 = vrot.slane %v3221, 1
        %v3545 = vrot.slane %v3222, 1
        %v3546 = vrot.slane %v3223, 1
        %v3547 = vrot.slane %v3224, 1
        %v3548 = vrot.slane %v3225, 1
        %v3549 = vrot.slane %v3226, 1
        %v3550 = vrot.slane %v3227, 1
        %v3551 = vrot.slane %v3228, 1
        %v3552 = vrot.slane %v3229, 1
        %v3553 = vrot.slane %v3230, 1
        %v3554 = vrot.slane %v3231, 1
        %v3555 = vrot.slane %v3232, 1
        %v3556 = vrot.slane %v3233, 1
        %v3557 = vrot.slane %v3234, 1
        %v3558 = vrot.slane %v3235, 1
        %v3559 = vsel %vm1978, %v3551, %v3555
        %v3560 = vsel %vm1978, %v3552, %v3556
        %v3561 = vsel %vm1978, %v3553, %v3557
        %v3562 = vsel %vm1978, %v3554, %v3558
        %v3563 = vsel %vm1978, %v3547, %v3551
        %v3564 = vsel %vm1978, %v3548, %v3552
        %v3565 = vsel %vm1978, %v3549, %v3553
        %v3566 = vsel %vm1978, %v3550, %v3554
        %v3567 = vsel %vm1978, %v3543, %v3547
        %v3568 = vsel %vm1978, %v3544, %v3548
        %v3569 = vsel %vm1978, %v3545, %v3549
        %v3570 = vsel %vm1978, %v3546, %v3550
        %v3571 = vsel %vm1978, %v3555, %v3543
        %v3572 = vsel %vm1978, %v3556, %v3544
        %v3573 = vsel %vm1978, %v3557, %v3545
        %v3574 = vsel %vm1978, %v3558, %v3546
        %s3575 = scalar_lea.vmem [#allocation3], 2304
        %v3576 = vld [vmem:[%s3575] sm:$0xff]
        %v3577 = vld [vmem:[%s3575 + $0x8] sm:$0xff]
        %v3578 = vld [vmem:[%s3575 + $0x10] sm:$0xff]
        %v3579 = vld [vmem:[%s3575 + $0x18] sm:$0xff]
        %v3580 = vld [vmem:[%s3575 + $0x20] sm:$0xff]
        %v3581 = vld [vmem:[%s3575 + $0x28] sm:$0xff]
        %v3582 = vld [vmem:[%s3575 + $0x30] sm:$0xff]
        %v3583 = vld [vmem:[%s3575 + $0x38] sm:$0xff]
        %v3584 = vld [vmem:[%s3575 + $0x40] sm:$0xff]
        %v3585 = vld [vmem:[%s3575 + $0x48] sm:$0xff]
        %v3586 = vld [vmem:[%s3575 + $0x50] sm:$0xff]
        %v3587 = vld [vmem:[%s3575 + $0x58] sm:$0xff]
        %v3588 = vld [vmem:[%s3575 + $0x60] sm:$0xff]
        %v3589 = vld [vmem:[%s3575 + $0x68] sm:$0xff]
        %v3590 = vld [vmem:[%s3575 + $0x70] sm:$0xff]
        %v3591 = vld [vmem:[%s3575 + $0x78] sm:$0xff]
        %v3592 = vmul.f32 %v3567, %v3576
        %v3593 = vmul.f32 %v3568, %v3577
        %v3594 = vmul.f32 %v3569, %v3578
        %v3595 = vmul.f32 %v3570, %v3579
        %v3596 = vmul.f32 %v3563, %v3580
        %v3597 = vmul.f32 %v3564, %v3581
        %v3598 = vmul.f32 %v3565, %v3582
        %v3599 = vmul.f32 %v3566, %v3583
        %v3600 = vmul.f32 %v3559, %v3584
        %v3601 = vmul.f32 %v3560, %v3585
        %v3602 = vmul.f32 %v3561, %v3586
        %v3603 = vmul.f32 %v3562, %v3587
        %v3604 = vmul.f32 %v3571, %v3588
        %v3605 = vmul.f32 %v3572, %v3589
        %v3606 = vmul.f32 %v3573, %v3590
        %v3607 = vmul.f32 %v3574, %v3591
        %v3608 = vadd.f32 %v3495, %v3592
        %v3609 = vadd.f32 %v3496, %v3593
        %v3610 = vadd.f32 %v3497, %v3594
        %v3611 = vadd.f32 %v3498, %v3595
        %v3612 = vadd.f32 %v3499, %v3596
        %v3613 = vadd.f32 %v3500, %v3597
        %v3614 = vadd.f32 %v3501, %v3598
        %v3615 = vadd.f32 %v3502, %v3599
        %v3616 = vadd.f32 %v3503, %v3600
        %v3617 = vadd.f32 %v3504, %v3601
        %v3618 = vadd.f32 %v3505, %v3602
        %v3619 = vadd.f32 %v3506, %v3603
        %v3620 = vadd.f32 %v3507, %v3604
        %v3621 = vadd.f32 %v3508, %v3605
        %v3622 = vadd.f32 %v3509, %v3606
        %v3623 = vadd.f32 %v3510, %v3607
        %v3624 = vmul.f32 %v3567, %v3023
        %v3625 = vmul.f32 %v3568, %v3024
        %v3626 = vmul.f32 %v3569, %v3025
        %v3627 = vmul.f32 %v3570, %v3026
        %v3628 = vmul.f32 %v3563, %v3027
        %v3629 = vmul.f32 %v3564, %v3028
        %v3630 = vmul.f32 %v3565, %v3029
        %v3631 = vmul.f32 %v3566, %v3030
        %v3632 = vmul.f32 %v3559, %v3031
        %v3633 = vmul.f32 %v3560, %v3032
        %v3634 = vmul.f32 %v3561, %v3033
        %v3635 = vmul.f32 %v3562, %v3034
        %v3636 = vmul.f32 %v3571, %v3035
        %v3637 = vmul.f32 %v3572, %v3036
        %v3638 = vmul.f32 %v3573, %v3037
        %v3639 = vmul.f32 %v3574, %v3038
        %v3640 = vadd.f32 %v3527, %v3624
        %v3641 = vadd.f32 %v3528, %v3625
        %v3642 = vadd.f32 %v3529, %v3626
        %v3643 = vadd.f32 %v3530, %v3627
        %v3644 = vadd.f32 %v3531, %v3628
        %v3645 = vadd.f32 %v3532, %v3629
        %v3646 = vadd.f32 %v3533, %v3630
        %v3647 = vadd.f32 %v3534, %v3631
        %v3648 = vadd.f32 %v3535, %v3632
        %v3649 = vadd.f32 %v3536, %v3633
        %v3650 = vadd.f32 %v3537, %v3634
        %v3651 = vadd.f32 %v3538, %v3635
        %v3652 = vadd.f32 %v3539, %v3636
        %v3653 = vadd.f32 %v3540, %v3637
        %v3654 = vadd.f32 %v3541, %v3638
        %v3655 = vadd.f32 %v3542, %v3639
        %v3656 = vrot.slane %v3220, 2
        %v3657 = vrot.slane %v3221, 2
        %v3658 = vrot.slane %v3222, 2
        %v3659 = vrot.slane %v3223, 2
        %v3660 = vrot.slane %v3224, 2
        %v3661 = vrot.slane %v3225, 2
        %v3662 = vrot.slane %v3226, 2
        %v3663 = vrot.slane %v3227, 2
        %v3664 = vrot.slane %v3228, 2
        %v3665 = vrot.slane %v3229, 2
        %v3666 = vrot.slane %v3230, 2
        %v3667 = vrot.slane %v3231, 2
        %v3668 = vrot.slane %v3232, 2
        %v3669 = vrot.slane %v3233, 2
        %v3670 = vrot.slane %v3234, 2
        %v3671 = vrot.slane %v3235, 2
        %v3672 = vsel %vm2060, %v3664, %v3668
        %v3673 = vsel %vm2060, %v3665, %v3669
        %v3674 = vsel %vm2060, %v3666, %v3670
        %v3675 = vsel %vm2060, %v3667, %v3671
        %v3676 = vsel %vm2060, %v3660, %v3664
        %v3677 = vsel %vm2060, %v3661, %v3665
        %v3678 = vsel %vm2060, %v3662, %v3666
        %v3679 = vsel %vm2060, %v3663, %v3667
        %v3680 = vsel %vm2060, %v3656, %v3660
        %v3681 = vsel %vm2060, %v3657, %v3661
        %v3682 = vsel %vm2060, %v3658, %v3662
        %v3683 = vsel %vm2060, %v3659, %v3663
        %v3684 = vsel %vm2060, %v3668, %v3656
        %v3685 = vsel %vm2060, %v3669, %v3657
        %v3686 = vsel %vm2060, %v3670, %v3658
        %v3687 = vsel %vm2060, %v3671, %v3659
        %s3688 = scalar_lea.vmem [#allocation3], 2432
        %v3689 = vld [vmem:[%s3688] sm:$0xff]
        %v3690 = vld [vmem:[%s3688 + $0x8] sm:$0xff]
        %v3691 = vld [vmem:[%s3688 + $0x10] sm:$0xff]
        %v3692 = vld [vmem:[%s3688 + $0x18] sm:$0xff]
        %v3693 = vld [vmem:[%s3688 + $0x20] sm:$0xff]
        %v3694 = vld [vmem:[%s3688 + $0x28] sm:$0xff]
        %v3695 = vld [vmem:[%s3688 + $0x30] sm:$0xff]
        %v3696 = vld [vmem:[%s3688 + $0x38] sm:$0xff]
        %v3697 = vld [vmem:[%s3688 + $0x40] sm:$0xff]
        %v3698 = vld [vmem:[%s3688 + $0x48] sm:$0xff]
        %v3699 = vld [vmem:[%s3688 + $0x50] sm:$0xff]
        %v3700 = vld [vmem:[%s3688 + $0x58] sm:$0xff]
        %v3701 = vld [vmem:[%s3688 + $0x60] sm:$0xff]
        %v3702 = vld [vmem:[%s3688 + $0x68] sm:$0xff]
        %v3703 = vld [vmem:[%s3688 + $0x70] sm:$0xff]
        %v3704 = vld [vmem:[%s3688 + $0x78] sm:$0xff]
        %v3705 = vmul.f32 %v3680, %v3689
        %v3706 = vmul.f32 %v3681, %v3690
        %v3707 = vmul.f32 %v3682, %v3691
        %v3708 = vmul.f32 %v3683, %v3692
        %v3709 = vmul.f32 %v3676, %v3693
        %v3710 = vmul.f32 %v3677, %v3694
        %v3711 = vmul.f32 %v3678, %v3695
        %v3712 = vmul.f32 %v3679, %v3696
        %v3713 = vmul.f32 %v3672, %v3697
        %v3714 = vmul.f32 %v3673, %v3698
        %v3715 = vmul.f32 %v3674, %v3699
        %v3716 = vmul.f32 %v3675, %v3700
        %v3717 = vmul.f32 %v3684, %v3701
        %v3718 = vmul.f32 %v3685, %v3702
        %v3719 = vmul.f32 %v3686, %v3703
        %v3720 = vmul.f32 %v3687, %v3704
        %v3721 = vadd.f32 %v3608, %v3705
        %v3722 = vadd.f32 %v3609, %v3706
        %v3723 = vadd.f32 %v3610, %v3707
        %v3724 = vadd.f32 %v3611, %v3708
        %v3725 = vadd.f32 %v3612, %v3709
        %v3726 = vadd.f32 %v3613, %v3710
        %v3727 = vadd.f32 %v3614, %v3711
        %v3728 = vadd.f32 %v3615, %v3712
        %v3729 = vadd.f32 %v3616, %v3713
        %v3730 = vadd.f32 %v3617, %v3714
        %v3731 = vadd.f32 %v3618, %v3715
        %v3732 = vadd.f32 %v3619, %v3716
        %v3733 = vadd.f32 %v3620, %v3717
        %v3734 = vadd.f32 %v3621, %v3718
        %v3735 = vadd.f32 %v3622, %v3719
        %v3736 = vadd.f32 %v3623, %v3720
        %v3737 = vmul.f32 %v3680, %v3136
        %v3738 = vmul.f32 %v3681, %v3137
        %v3739 = vmul.f32 %v3682, %v3138
        %v3740 = vmul.f32 %v3683, %v3139
        %v3741 = vmul.f32 %v3676, %v3140
        %v3742 = vmul.f32 %v3677, %v3141
        %v3743 = vmul.f32 %v3678, %v3142
        %v3744 = vmul.f32 %v3679, %v3143
        %v3745 = vmul.f32 %v3672, %v3144
        %v3746 = vmul.f32 %v3673, %v3145
        %v3747 = vmul.f32 %v3674, %v3146
        %v3748 = vmul.f32 %v3675, %v3147
        %v3749 = vmul.f32 %v3684, %v3148
        %v3750 = vmul.f32 %v3685, %v3149
        %v3751 = vmul.f32 %v3686, %v3150
        %v3752 = vmul.f32 %v3687, %v3151
        %v3753 = vadd.f32 %v3640, %v3737
        %v3754 = vadd.f32 %v3641, %v3738
        %v3755 = vadd.f32 %v3642, %v3739
        %v3756 = vadd.f32 %v3643, %v3740
        %v3757 = vadd.f32 %v3644, %v3741
        %v3758 = vadd.f32 %v3645, %v3742
        %v3759 = vadd.f32 %v3646, %v3743
        %v3760 = vadd.f32 %v3647, %v3744
        %v3761 = vadd.f32 %v3648, %v3745
        %v3762 = vadd.f32 %v3649, %v3746
        %v3763 = vadd.f32 %v3650, %v3747
        %v3764 = vadd.f32 %v3651, %v3748
        %v3765 = vadd.f32 %v3652, %v3749
        %v3766 = vadd.f32 %v3653, %v3750
        %v3767 = vadd.f32 %v3654, %v3751
        %v3768 = vadd.f32 %v3655, %v3752
        %s3769 = sadd.s32 %s1744, 4
        %s3770 = smul.u32 %s3769, 16
        %s3771 = smul.addr %s3770, 8
        %s3772 = scalar_lea.vmem [#allocation2], %s3771
        %v3773 = vld [vmem:[%s3772] sm:$0xff]
        %v3774 = vld [vmem:[%s3772 + $0x8] sm:$0xff]
        %v3775 = vld [vmem:[%s3772 + $0x10] sm:$0xff]
        %v3776 = vld [vmem:[%s3772 + $0x18] sm:$0xff]
        %v3777 = vld [vmem:[%s3772 + $0x20] sm:$0xff]
        %v3778 = vld [vmem:[%s3772 + $0x28] sm:$0xff]
        %v3779 = vld [vmem:[%s3772 + $0x30] sm:$0xff]
        %v3780 = vld [vmem:[%s3772 + $0x38] sm:$0xff]
        %v3781 = vld [vmem:[%s3772 + $0x40] sm:$0xff]
        %v3782 = vld [vmem:[%s3772 + $0x48] sm:$0xff]
        %v3783 = vld [vmem:[%s3772 + $0x50] sm:$0xff]
        %v3784 = vld [vmem:[%s3772 + $0x58] sm:$0xff]
        %v3785 = vld [vmem:[%s3772 + $0x60] sm:$0xff]
        %v3786 = vld [vmem:[%s3772 + $0x68] sm:$0xff]
        %v3787 = vld [vmem:[%s3772 + $0x70] sm:$0xff]
        %v3788 = vld [vmem:[%s3772 + $0x78] sm:$0xff]
        %v3789 = vrot.slane %v3773, 6
        %v3790 = vrot.slane %v3774, 6
        %v3791 = vrot.slane %v3775, 6
        %v3792 = vrot.slane %v3776, 6
        %v3793 = vrot.slane %v3777, 6
        %v3794 = vrot.slane %v3778, 6
        %v3795 = vrot.slane %v3779, 6
        %v3796 = vrot.slane %v3780, 6
        %v3797 = vrot.slane %v3781, 6
        %v3798 = vrot.slane %v3782, 6
        %v3799 = vrot.slane %v3783, 6
        %v3800 = vrot.slane %v3784, 6
        %v3801 = vrot.slane %v3785, 6
        %v3802 = vrot.slane %v3786, 6
        %v3803 = vrot.slane %v3787, 6
        %v3804 = vrot.slane %v3788, 6
        %v3805 = vsel %vm1782, %v3797, %v3801
        %v3806 = vsel %vm1782, %v3798, %v3802
        %v3807 = vsel %vm1782, %v3799, %v3803
        %v3808 = vsel %vm1782, %v3800, %v3804
        %v3809 = vsel %vm1782, %v3793, %v3797
        %v3810 = vsel %vm1782, %v3794, %v3798
        %v3811 = vsel %vm1782, %v3795, %v3799
        %v3812 = vsel %vm1782, %v3796, %v3800
        %v3813 = vsel %vm1782, %v3789, %v3793
        %v3814 = vsel %vm1782, %v3790, %v3794
        %v3815 = vsel %vm1782, %v3791, %v3795
        %v3816 = vsel %vm1782, %v3792, %v3796
        %v3817 = vsel %vm1782, %v3801, %v3789
        %v3818 = vsel %vm1782, %v3802, %v3790
        %v3819 = vsel %vm1782, %v3803, %v3791
        %v3820 = vsel %vm1782, %v3804, %v3792
        %s3821 = scalar_lea.vmem [#allocation3], 2560
        %v3822 = vld [vmem:[%s3821] sm:$0xff]
        %v3823 = vld [vmem:[%s3821 + $0x8] sm:$0xff]
        %v3824 = vld [vmem:[%s3821 + $0x10] sm:$0xff]
        %v3825 = vld [vmem:[%s3821 + $0x18] sm:$0xff]
        %v3826 = vld [vmem:[%s3821 + $0x20] sm:$0xff]
        %v3827 = vld [vmem:[%s3821 + $0x28] sm:$0xff]
        %v3828 = vld [vmem:[%s3821 + $0x30] sm:$0xff]
        %v3829 = vld [vmem:[%s3821 + $0x38] sm:$0xff]
        %v3830 = vld [vmem:[%s3821 + $0x40] sm:$0xff]
        %v3831 = vld [vmem:[%s3821 + $0x48] sm:$0xff]
        %v3832 = vld [vmem:[%s3821 + $0x50] sm:$0xff]
        %v3833 = vld [vmem:[%s3821 + $0x58] sm:$0xff]
        %v3834 = vld [vmem:[%s3821 + $0x60] sm:$0xff]
        %v3835 = vld [vmem:[%s3821 + $0x68] sm:$0xff]
        %v3836 = vld [vmem:[%s3821 + $0x70] sm:$0xff]
        %v3837 = vld [vmem:[%s3821 + $0x78] sm:$0xff]
        %v3838 = vmul.f32 %v3817, %v3822
        %v3839 = vmul.f32 %v3818, %v3823
        %v3840 = vmul.f32 %v3819, %v3824
        %v3841 = vmul.f32 %v3820, %v3825
        %v3842 = vmul.f32 %v3813, %v3826
        %v3843 = vmul.f32 %v3814, %v3827
        %v3844 = vmul.f32 %v3815, %v3828
        %v3845 = vmul.f32 %v3816, %v3829
        %v3846 = vmul.f32 %v3809, %v3830
        %v3847 = vmul.f32 %v3810, %v3831
        %v3848 = vmul.f32 %v3811, %v3832
        %v3849 = vmul.f32 %v3812, %v3833
        %v3850 = vmul.f32 %v3805, %v3834
        %v3851 = vmul.f32 %v3806, %v3835
        %v3852 = vmul.f32 %v3807, %v3836
        %v3853 = vmul.f32 %v3808, %v3837
        %v3854 = vadd.f32 %v3721, %v3838
        %v3855 = vadd.f32 %v3722, %v3839
        %v3856 = vadd.f32 %v3723, %v3840
        %v3857 = vadd.f32 %v3724, %v3841
        %v3858 = vadd.f32 %v3725, %v3842
        %v3859 = vadd.f32 %v3726, %v3843
        %v3860 = vadd.f32 %v3727, %v3844
        %v3861 = vadd.f32 %v3728, %v3845
        %v3862 = vadd.f32 %v3729, %v3846
        %v3863 = vadd.f32 %v3730, %v3847
        %v3864 = vadd.f32 %v3731, %v3848
        %v3865 = vadd.f32 %v3732, %v3849
        %v3866 = vadd.f32 %v3733, %v3850
        %v3867 = vadd.f32 %v3734, %v3851
        %v3868 = vadd.f32 %v3735, %v3852
        %v3869 = vadd.f32 %v3736, %v3853
        %v3870 = vmul.f32 %v3817, %v3269
        %v3871 = vmul.f32 %v3818, %v3270
        %v3872 = vmul.f32 %v3819, %v3271
        %v3873 = vmul.f32 %v3820, %v3272
        %v3874 = vmul.f32 %v3813, %v3273
        %v3875 = vmul.f32 %v3814, %v3274
        %v3876 = vmul.f32 %v3815, %v3275
        %v3877 = vmul.f32 %v3816, %v3276
        %v3878 = vmul.f32 %v3809, %v3277
        %v3879 = vmul.f32 %v3810, %v3278
        %v3880 = vmul.f32 %v3811, %v3279
        %v3881 = vmul.f32 %v3812, %v3280
        %v3882 = vmul.f32 %v3805, %v3281
        %v3883 = vmul.f32 %v3806, %v3282
        %v3884 = vmul.f32 %v3807, %v3283
        %v3885 = vmul.f32 %v3808, %v3284
        %v3886 = vadd.f32 %v3753, %v3870
        %v3887 = vadd.f32 %v3754, %v3871
        %v3888 = vadd.f32 %v3755, %v3872
        %v3889 = vadd.f32 %v3756, %v3873
        %v3890 = vadd.f32 %v3757, %v3874
        %v3891 = vadd.f32 %v3758, %v3875
        %v3892 = vadd.f32 %v3759, %v3876
        %v3893 = vadd.f32 %v3760, %v3877
        %v3894 = vadd.f32 %v3761, %v3878
        %v3895 = vadd.f32 %v3762, %v3879
        %v3896 = vadd.f32 %v3763, %v3880
        %v3897 = vadd.f32 %v3764, %v3881
        %v3898 = vadd.f32 %v3765, %v3882
        %v3899 = vadd.f32 %v3766, %v3883
        %v3900 = vadd.f32 %v3767, %v3884
        %v3901 = vadd.f32 %v3768, %v3885
        %v3902 = vrot.slane %v3773, 7
        %v3903 = vrot.slane %v3774, 7
        %v3904 = vrot.slane %v3775, 7
        %v3905 = vrot.slane %v3776, 7
        %v3906 = vrot.slane %v3777, 7
        %v3907 = vrot.slane %v3778, 7
        %v3908 = vrot.slane %v3779, 7
        %v3909 = vrot.slane %v3780, 7
        %v3910 = vrot.slane %v3781, 7
        %v3911 = vrot.slane %v3782, 7
        %v3912 = vrot.slane %v3783, 7
        %v3913 = vrot.slane %v3784, 7
        %v3914 = vrot.slane %v3785, 7
        %v3915 = vrot.slane %v3786, 7
        %v3916 = vrot.slane %v3787, 7
        %v3917 = vrot.slane %v3788, 7
        %v3918 = vsel %vm1847, %v3910, %v3914
        %v3919 = vsel %vm1847, %v3911, %v3915
        %v3920 = vsel %vm1847, %v3912, %v3916
        %v3921 = vsel %vm1847, %v3913, %v3917
        %v3922 = vsel %vm1847, %v3906, %v3910
        %v3923 = vsel %vm1847, %v3907, %v3911
        %v3924 = vsel %vm1847, %v3908, %v3912
        %v3925 = vsel %vm1847, %v3909, %v3913
        %v3926 = vsel %vm1847, %v3902, %v3906
        %v3927 = vsel %vm1847, %v3903, %v3907
        %v3928 = vsel %vm1847, %v3904, %v3908
        %v3929 = vsel %vm1847, %v3905, %v3909
        %v3930 = vsel %vm1847, %v3914, %v3902
        %v3931 = vsel %vm1847, %v3915, %v3903
        %v3932 = vsel %vm1847, %v3916, %v3904
        %v3933 = vsel %vm1847, %v3917, %v3905
        %s3934 = scalar_lea.vmem [#allocation3], 2688
        %v3935 = vld [vmem:[%s3934] sm:$0xff]
        %v3936 = vld [vmem:[%s3934 + $0x8] sm:$0xff]
        %v3937 = vld [vmem:[%s3934 + $0x10] sm:$0xff]
        %v3938 = vld [vmem:[%s3934 + $0x18] sm:$0xff]
        %v3939 = vld [vmem:[%s3934 + $0x20] sm:$0xff]
        %v3940 = vld [vmem:[%s3934 + $0x28] sm:$0xff]
        %v3941 = vld [vmem:[%s3934 + $0x30] sm:$0xff]
        %v3942 = vld [vmem:[%s3934 + $0x38] sm:$0xff]
        %v3943 = vld [vmem:[%s3934 + $0x40] sm:$0xff]
        %v3944 = vld [vmem:[%s3934 + $0x48] sm:$0xff]
        %v3945 = vld [vmem:[%s3934 + $0x50] sm:$0xff]
        %v3946 = vld [vmem:[%s3934 + $0x58] sm:$0xff]
        %v3947 = vld [vmem:[%s3934 + $0x60] sm:$0xff]
        %v3948 = vld [vmem:[%s3934 + $0x68] sm:$0xff]
        %v3949 = vld [vmem:[%s3934 + $0x70] sm:$0xff]
        %v3950 = vld [vmem:[%s3934 + $0x78] sm:$0xff]
        %v3951 = vmul.f32 %v3930, %v3935
        %v3952 = vmul.f32 %v3931, %v3936
        %v3953 = vmul.f32 %v3932, %v3937
        %v3954 = vmul.f32 %v3933, %v3938
        %v3955 = vmul.f32 %v3926, %v3939
        %v3956 = vmul.f32 %v3927, %v3940
        %v3957 = vmul.f32 %v3928, %v3941
        %v3958 = vmul.f32 %v3929, %v3942
        %v3959 = vmul.f32 %v3922, %v3943
        %v3960 = vmul.f32 %v3923, %v3944
        %v3961 = vmul.f32 %v3924, %v3945
        %v3962 = vmul.f32 %v3925, %v3946
        %v3963 = vmul.f32 %v3918, %v3947
        %v3964 = vmul.f32 %v3919, %v3948
        %v3965 = vmul.f32 %v3920, %v3949
        %v3966 = vmul.f32 %v3921, %v3950
        %v3967 = vadd.f32 %v3854, %v3951
        %v3968 = vadd.f32 %v3855, %v3952
        %v3969 = vadd.f32 %v3856, %v3953
        %v3970 = vadd.f32 %v3857, %v3954
        %v3971 = vadd.f32 %v3858, %v3955
        %v3972 = vadd.f32 %v3859, %v3956
        %v3973 = vadd.f32 %v3860, %v3957
        %v3974 = vadd.f32 %v3861, %v3958
        %v3975 = vadd.f32 %v3862, %v3959
        %v3976 = vadd.f32 %v3863, %v3960
        %v3977 = vadd.f32 %v3864, %v3961
        %v3978 = vadd.f32 %v3865, %v3962
        %v3979 = vadd.f32 %v3866, %v3963
        %v3980 = vadd.f32 %v3867, %v3964
        %v3981 = vadd.f32 %v3868, %v3965
        %v3982 = vadd.f32 %v3869, %v3966
        %v3983 = vmul.f32 %v3930, %v3382
        %v3984 = vmul.f32 %v3931, %v3383
        %v3985 = vmul.f32 %v3932, %v3384
        %v3986 = vmul.f32 %v3933, %v3385
        %v3987 = vmul.f32 %v3926, %v3386
        %v3988 = vmul.f32 %v3927, %v3387
        %v3989 = vmul.f32 %v3928, %v3388
        %v3990 = vmul.f32 %v3929, %v3389
        %v3991 = vmul.f32 %v3922, %v3390
        %v3992 = vmul.f32 %v3923, %v3391
        %v3993 = vmul.f32 %v3924, %v3392
        %v3994 = vmul.f32 %v3925, %v3393
        %v3995 = vmul.f32 %v3918, %v3394
        %v3996 = vmul.f32 %v3919, %v3395
        %v3997 = vmul.f32 %v3920, %v3396
        %v3998 = vmul.f32 %v3921, %v3397
        %v3999 = vadd.f32 %v3886, %v3983
        %v4000 = vadd.f32 %v3887, %v3984
        %v4001 = vadd.f32 %v3888, %v3985
        %v4002 = vadd.f32 %v3889, %v3986
        %v4003 = vadd.f32 %v3890, %v3987
        %v4004 = vadd.f32 %v3891, %v3988
        %v4005 = vadd.f32 %v3892, %v3989
        %v4006 = vadd.f32 %v3893, %v3990
        %v4007 = vadd.f32 %v3894, %v3991
        %v4008 = vadd.f32 %v3895, %v3992
        %v4009 = vadd.f32 %v3896, %v3993
        %v4010 = vadd.f32 %v3897, %v3994
        %v4011 = vadd.f32 %v3898, %v3995
        %v4012 = vadd.f32 %v3899, %v3996
        %v4013 = vadd.f32 %v3900, %v3997
        %v4014 = vadd.f32 %v3901, %v3998
        %s4015 = scalar_lea.vmem [#allocation3], 2816
        %v4016 = vld [vmem:[%s4015] sm:$0xff]
        %v4017 = vld [vmem:[%s4015 + $0x8] sm:$0xff]
        %v4018 = vld [vmem:[%s4015 + $0x10] sm:$0xff]
        %v4019 = vld [vmem:[%s4015 + $0x18] sm:$0xff]
        %v4020 = vld [vmem:[%s4015 + $0x20] sm:$0xff]
        %v4021 = vld [vmem:[%s4015 + $0x28] sm:$0xff]
        %v4022 = vld [vmem:[%s4015 + $0x30] sm:$0xff]
        %v4023 = vld [vmem:[%s4015 + $0x38] sm:$0xff]
        %v4024 = vld [vmem:[%s4015 + $0x40] sm:$0xff]
        %v4025 = vld [vmem:[%s4015 + $0x48] sm:$0xff]
        %v4026 = vld [vmem:[%s4015 + $0x50] sm:$0xff]
        %v4027 = vld [vmem:[%s4015 + $0x58] sm:$0xff]
        %v4028 = vld [vmem:[%s4015 + $0x60] sm:$0xff]
        %v4029 = vld [vmem:[%s4015 + $0x68] sm:$0xff]
        %v4030 = vld [vmem:[%s4015 + $0x70] sm:$0xff]
        %v4031 = vld [vmem:[%s4015 + $0x78] sm:$0xff]
        %v4032 = vmul.f32 %v3773, %v4016
        %v4033 = vmul.f32 %v3774, %v4017
        %v4034 = vmul.f32 %v3775, %v4018
        %v4035 = vmul.f32 %v3776, %v4019
        %v4036 = vmul.f32 %v3777, %v4020
        %v4037 = vmul.f32 %v3778, %v4021
        %v4038 = vmul.f32 %v3779, %v4022
        %v4039 = vmul.f32 %v3780, %v4023
        %v4040 = vmul.f32 %v3781, %v4024
        %v4041 = vmul.f32 %v3782, %v4025
        %v4042 = vmul.f32 %v3783, %v4026
        %v4043 = vmul.f32 %v3784, %v4027
        %v4044 = vmul.f32 %v3785, %v4028
        %v4045 = vmul.f32 %v3786, %v4029
        %v4046 = vmul.f32 %v3787, %v4030
        %v4047 = vmul.f32 %v3788, %v4031
        %v4048 = vadd.f32 %v3967, %v4032
        %v4049 = vadd.f32 %v3968, %v4033
        %v4050 = vadd.f32 %v3969, %v4034
        %v4051 = vadd.f32 %v3970, %v4035
        %v4052 = vadd.f32 %v3971, %v4036
        %v4053 = vadd.f32 %v3972, %v4037
        %v4054 = vadd.f32 %v3973, %v4038
        %v4055 = vadd.f32 %v3974, %v4039
        %v4056 = vadd.f32 %v3975, %v4040
        %v4057 = vadd.f32 %v3976, %v4041
        %v4058 = vadd.f32 %v3977, %v4042
        %v4059 = vadd.f32 %v3978, %v4043
        %v4060 = vadd.f32 %v3979, %v4044
        %v4061 = vadd.f32 %v3980, %v4045
        %v4062 = vadd.f32 %v3981, %v4046
        %v4063 = vadd.f32 %v3982, %v4047
        %v4064 = vmul.f32 %v3773, %v3463
        %v4065 = vmul.f32 %v3774, %v3464
        %v4066 = vmul.f32 %v3775, %v3465
        %v4067 = vmul.f32 %v3776, %v3466
        %v4068 = vmul.f32 %v3777, %v3467
        %v4069 = vmul.f32 %v3778, %v3468
        %v4070 = vmul.f32 %v3779, %v3469
        %v4071 = vmul.f32 %v3780, %v3470
        %v4072 = vmul.f32 %v3781, %v3471
        %v4073 = vmul.f32 %v3782, %v3472
        %v4074 = vmul.f32 %v3783, %v3473
        %v4075 = vmul.f32 %v3784, %v3474
        %v4076 = vmul.f32 %v3785, %v3475
        %v4077 = vmul.f32 %v3786, %v3476
        %v4078 = vmul.f32 %v3787, %v3477
        %v4079 = vmul.f32 %v3788, %v3478
        %v4080 = vadd.f32 %v3999, %v4064
        %v4081 = vadd.f32 %v4000, %v4065
        %v4082 = vadd.f32 %v4001, %v4066
        %v4083 = vadd.f32 %v4002, %v4067
        %v4084 = vadd.f32 %v4003, %v4068
        %v4085 = vadd.f32 %v4004, %v4069
        %v4086 = vadd.f32 %v4005, %v4070
        %v4087 = vadd.f32 %v4006, %v4071
        %v4088 = vadd.f32 %v4007, %v4072
        %v4089 = vadd.f32 %v4008, %v4073
        %v4090 = vadd.f32 %v4009, %v4074
        %v4091 = vadd.f32 %v4010, %v4075
        %v4092 = vadd.f32 %v4011, %v4076
        %v4093 = vadd.f32 %v4012, %v4077
        %v4094 = vadd.f32 %v4013, %v4078
        %v4095 = vadd.f32 %v4014, %v4079
        %v4096 = vrot.slane %v3773, 1
        %v4097 = vrot.slane %v3774, 1
        %v4098 = vrot.slane %v3775, 1
        %v4099 = vrot.slane %v3776, 1
        %v4100 = vrot.slane %v3777, 1
        %v4101 = vrot.slane %v3778, 1
        %v4102 = vrot.slane %v3779, 1
        %v4103 = vrot.slane %v3780, 1
        %v4104 = vrot.slane %v3781, 1
        %v4105 = vrot.slane %v3782, 1
        %v4106 = vrot.slane %v3783, 1
        %v4107 = vrot.slane %v3784, 1
        %v4108 = vrot.slane %v3785, 1
        %v4109 = vrot.slane %v3786, 1
        %v4110 = vrot.slane %v3787, 1
        %v4111 = vrot.slane %v3788, 1
        %v4112 = vsel %vm1978, %v4104, %v4108
        %v4113 = vsel %vm1978, %v4105, %v4109
        %v4114 = vsel %vm1978, %v4106, %v4110
        %v4115 = vsel %vm1978, %v4107, %v4111
        %v4116 = vsel %vm1978, %v4100, %v4104
        %v4117 = vsel %vm1978, %v4101, %v4105
        %v4118 = vsel %vm1978, %v4102, %v4106
        %v4119 = vsel %vm1978, %v4103, %v4107
        %v4120 = vsel %vm1978, %v4096, %v4100
        %v4121 = vsel %vm1978, %v4097, %v4101
        %v4122 = vsel %vm1978, %v4098, %v4102
        %v4123 = vsel %vm1978, %v4099, %v4103
        %v4124 = vsel %vm1978, %v4108, %v4096
        %v4125 = vsel %vm1978, %v4109, %v4097
        %v4126 = vsel %vm1978, %v4110, %v4098
        %v4127 = vsel %vm1978, %v4111, %v4099
        %s4128 = scalar_lea.vmem [#allocation3], 2944
        %v4129 = vld [vmem:[%s4128] sm:$0xff]
        %v4130 = vld [vmem:[%s4128 + $0x8] sm:$0xff]
        %v4131 = vld [vmem:[%s4128 + $0x10] sm:$0xff]
        %v4132 = vld [vmem:[%s4128 + $0x18] sm:$0xff]
        %v4133 = vld [vmem:[%s4128 + $0x20] sm:$0xff]
        %v4134 = vld [vmem:[%s4128 + $0x28] sm:$0xff]
        %v4135 = vld [vmem:[%s4128 + $0x30] sm:$0xff]
        %v4136 = vld [vmem:[%s4128 + $0x38] sm:$0xff]
        %v4137 = vld [vmem:[%s4128 + $0x40] sm:$0xff]
        %v4138 = vld [vmem:[%s4128 + $0x48] sm:$0xff]
        %v4139 = vld [vmem:[%s4128 + $0x50] sm:$0xff]
        %v4140 = vld [vmem:[%s4128 + $0x58] sm:$0xff]
        %v4141 = vld [vmem:[%s4128 + $0x60] sm:$0xff]
        %v4142 = vld [vmem:[%s4128 + $0x68] sm:$0xff]
        %v4143 = vld [vmem:[%s4128 + $0x70] sm:$0xff]
        %v4144 = vld [vmem:[%s4128 + $0x78] sm:$0xff]
        %v4145 = vmul.f32 %v4120, %v4129
        %v4146 = vmul.f32 %v4121, %v4130
        %v4147 = vmul.f32 %v4122, %v4131
        %v4148 = vmul.f32 %v4123, %v4132
        %v4149 = vmul.f32 %v4116, %v4133
        %v4150 = vmul.f32 %v4117, %v4134
        %v4151 = vmul.f32 %v4118, %v4135
        %v4152 = vmul.f32 %v4119, %v4136
        %v4153 = vmul.f32 %v4112, %v4137
        %v4154 = vmul.f32 %v4113, %v4138
        %v4155 = vmul.f32 %v4114, %v4139
        %v4156 = vmul.f32 %v4115, %v4140
        %v4157 = vmul.f32 %v4124, %v4141
        %v4158 = vmul.f32 %v4125, %v4142
        %v4159 = vmul.f32 %v4126, %v4143
        %v4160 = vmul.f32 %v4127, %v4144
        %v4161 = vadd.f32 %v4048, %v4145
        %v4162 = vadd.f32 %v4049, %v4146
        %v4163 = vadd.f32 %v4050, %v4147
        %v4164 = vadd.f32 %v4051, %v4148
        %v4165 = vadd.f32 %v4052, %v4149
        %v4166 = vadd.f32 %v4053, %v4150
        %v4167 = vadd.f32 %v4054, %v4151
        %v4168 = vadd.f32 %v4055, %v4152
        %v4169 = vadd.f32 %v4056, %v4153
        %v4170 = vadd.f32 %v4057, %v4154
        %v4171 = vadd.f32 %v4058, %v4155
        %v4172 = vadd.f32 %v4059, %v4156
        %v4173 = vadd.f32 %v4060, %v4157
        %v4174 = vadd.f32 %v4061, %v4158
        %v4175 = vadd.f32 %v4062, %v4159
        %v4176 = vadd.f32 %v4063, %v4160
        %v4177 = vmul.f32 %v4120, %v3576
        %v4178 = vmul.f32 %v4121, %v3577
        %v4179 = vmul.f32 %v4122, %v3578
        %v4180 = vmul.f32 %v4123, %v3579
        %v4181 = vmul.f32 %v4116, %v3580
        %v4182 = vmul.f32 %v4117, %v3581
        %v4183 = vmul.f32 %v4118, %v3582
        %v4184 = vmul.f32 %v4119, %v3583
        %v4185 = vmul.f32 %v4112, %v3584
        %v4186 = vmul.f32 %v4113, %v3585
        %v4187 = vmul.f32 %v4114, %v3586
        %v4188 = vmul.f32 %v4115, %v3587
        %v4189 = vmul.f32 %v4124, %v3588
        %v4190 = vmul.f32 %v4125, %v3589
        %v4191 = vmul.f32 %v4126, %v3590
        %v4192 = vmul.f32 %v4127, %v3591
        %v4193 = vadd.f32 %v4080, %v4177
        %v4194 = vadd.f32 %v4081, %v4178
        %v4195 = vadd.f32 %v4082, %v4179
        %v4196 = vadd.f32 %v4083, %v4180
        %v4197 = vadd.f32 %v4084, %v4181
        %v4198 = vadd.f32 %v4085, %v4182
        %v4199 = vadd.f32 %v4086, %v4183
        %v4200 = vadd.f32 %v4087, %v4184
        %v4201 = vadd.f32 %v4088, %v4185
        %v4202 = vadd.f32 %v4089, %v4186
        %v4203 = vadd.f32 %v4090, %v4187
        %v4204 = vadd.f32 %v4091, %v4188
        %v4205 = vadd.f32 %v4092, %v4189
        %v4206 = vadd.f32 %v4093, %v4190
        %v4207 = vadd.f32 %v4094, %v4191
        %v4208 = vadd.f32 %v4095, %v4192
        %v4209 = vrot.slane %v3773, 2
        %v4210 = vrot.slane %v3774, 2
        %v4211 = vrot.slane %v3775, 2
        %v4212 = vrot.slane %v3776, 2
        %v4213 = vrot.slane %v3777, 2
        %v4214 = vrot.slane %v3778, 2
        %v4215 = vrot.slane %v3779, 2
        %v4216 = vrot.slane %v3780, 2
        %v4217 = vrot.slane %v3781, 2
        %v4218 = vrot.slane %v3782, 2
        %v4219 = vrot.slane %v3783, 2
        %v4220 = vrot.slane %v3784, 2
        %v4221 = vrot.slane %v3785, 2
        %v4222 = vrot.slane %v3786, 2
        %v4223 = vrot.slane %v3787, 2
        %v4224 = vrot.slane %v3788, 2
        %v4225 = vsel %vm2060, %v4217, %v4221
        %v4226 = vsel %vm2060, %v4218, %v4222
        %v4227 = vsel %vm2060, %v4219, %v4223
        %v4228 = vsel %vm2060, %v4220, %v4224
        %v4229 = vsel %vm2060, %v4213, %v4217
        %v4230 = vsel %vm2060, %v4214, %v4218
        %v4231 = vsel %vm2060, %v4215, %v4219
        %v4232 = vsel %vm2060, %v4216, %v4220
        %v4233 = vsel %vm2060, %v4209, %v4213
        %v4234 = vsel %vm2060, %v4210, %v4214
        %v4235 = vsel %vm2060, %v4211, %v4215
        %v4236 = vsel %vm2060, %v4212, %v4216
        %v4237 = vsel %vm2060, %v4221, %v4209
        %v4238 = vsel %vm2060, %v4222, %v4210
        %v4239 = vsel %vm2060, %v4223, %v4211
        %v4240 = vsel %vm2060, %v4224, %v4212
        %s4241 = scalar_lea.vmem [#allocation3], 3072
        %v4242 = vld [vmem:[%s4241] sm:$0xff]
        %v4243 = vld [vmem:[%s4241 + $0x8] sm:$0xff]
        %v4244 = vld [vmem:[%s4241 + $0x10] sm:$0xff]
        %v4245 = vld [vmem:[%s4241 + $0x18] sm:$0xff]
        %v4246 = vld [vmem:[%s4241 + $0x20] sm:$0xff]
        %v4247 = vld [vmem:[%s4241 + $0x28] sm:$0xff]
        %v4248 = vld [vmem:[%s4241 + $0x30] sm:$0xff]
        %v4249 = vld [vmem:[%s4241 + $0x38] sm:$0xff]
        %v4250 = vld [vmem:[%s4241 + $0x40] sm:$0xff]
        %v4251 = vld [vmem:[%s4241 + $0x48] sm:$0xff]
        %v4252 = vld [vmem:[%s4241 + $0x50] sm:$0xff]
        %v4253 = vld [vmem:[%s4241 + $0x58] sm:$0xff]
        %v4254 = vld [vmem:[%s4241 + $0x60] sm:$0xff]
        %v4255 = vld [vmem:[%s4241 + $0x68] sm:$0xff]
        %v4256 = vld [vmem:[%s4241 + $0x70] sm:$0xff]
        %v4257 = vld [vmem:[%s4241 + $0x78] sm:$0xff]
        %v4258 = vmul.f32 %v4233, %v4242
        %v4259 = vmul.f32 %v4234, %v4243
        %v4260 = vmul.f32 %v4235, %v4244
        %v4261 = vmul.f32 %v4236, %v4245
        %v4262 = vmul.f32 %v4229, %v4246
        %v4263 = vmul.f32 %v4230, %v4247
        %v4264 = vmul.f32 %v4231, %v4248
        %v4265 = vmul.f32 %v4232, %v4249
        %v4266 = vmul.f32 %v4225, %v4250
        %v4267 = vmul.f32 %v4226, %v4251
        %v4268 = vmul.f32 %v4227, %v4252
        %v4269 = vmul.f32 %v4228, %v4253
        %v4270 = vmul.f32 %v4237, %v4254
        %v4271 = vmul.f32 %v4238, %v4255
        %v4272 = vmul.f32 %v4239, %v4256
        %v4273 = vmul.f32 %v4240, %v4257
        %v4274 = vadd.f32 %v4161, %v4258
        %v4275 = vadd.f32 %v4162, %v4259
        %v4276 = vadd.f32 %v4163, %v4260
        %v4277 = vadd.f32 %v4164, %v4261
        %v4278 = vadd.f32 %v4165, %v4262
        %v4279 = vadd.f32 %v4166, %v4263
        %v4280 = vadd.f32 %v4167, %v4264
        %v4281 = vadd.f32 %v4168, %v4265
        %v4282 = vadd.f32 %v4169, %v4266
        %v4283 = vadd.f32 %v4170, %v4267
        %v4284 = vadd.f32 %v4171, %v4268
        %v4285 = vadd.f32 %v4172, %v4269
        %v4286 = vadd.f32 %v4173, %v4270
        %v4287 = vadd.f32 %v4174, %v4271
        %v4288 = vadd.f32 %v4175, %v4272
        %v4289 = vadd.f32 %v4176, %v4273
        %v4290 = vmul.f32 %v4233, %v3689
        %v4291 = vmul.f32 %v4234, %v3690
        %v4292 = vmul.f32 %v4235, %v3691
        %v4293 = vmul.f32 %v4236, %v3692
        %v4294 = vmul.f32 %v4229, %v3693
        %v4295 = vmul.f32 %v4230, %v3694
        %v4296 = vmul.f32 %v4231, %v3695
        %v4297 = vmul.f32 %v4232, %v3696
        %v4298 = vmul.f32 %v4225, %v3697
        %v4299 = vmul.f32 %v4226, %v3698
        %v4300 = vmul.f32 %v4227, %v3699
        %v4301 = vmul.f32 %v4228, %v3700
        %v4302 = vmul.f32 %v4237, %v3701
        %v4303 = vmul.f32 %v4238, %v3702
        %v4304 = vmul.f32 %v4239, %v3703
        %v4305 = vmul.f32 %v4240, %v3704
        %v4306 = vadd.f32 %v4193, %v4290
        %v4307 = vadd.f32 %v4194, %v4291
        %v4308 = vadd.f32 %v4195, %v4292
        %v4309 = vadd.f32 %v4196, %v4293
        %v4310 = vadd.f32 %v4197, %v4294
        %v4311 = vadd.f32 %v4198, %v4295
        %v4312 = vadd.f32 %v4199, %v4296
        %v4313 = vadd.f32 %v4200, %v4297
        %v4314 = vadd.f32 %v4201, %v4298
        %v4315 = vadd.f32 %v4202, %v4299
        %v4316 = vadd.f32 %v4203, %v4300
        %v4317 = vadd.f32 %v4204, %v4301
        %v4318 = vadd.f32 %v4205, %v4302
        %v4319 = vadd.f32 %v4206, %v4303
        %v4320 = vadd.f32 %v4207, %v4304
        %v4321 = vadd.f32 %v4208, %v4305
        %s4322 = sadd.s32 %s1744, 5
        %s4323 = smul.u32 %s4322, 16
        %s4324 = smul.addr %s4323, 8
        %s4325 = scalar_lea.vmem [#allocation2], %s4324
        %v4326 = vld [vmem:[%s4325] sm:$0xff]
        %v4327 = vld [vmem:[%s4325 + $0x8] sm:$0xff]
        %v4328 = vld [vmem:[%s4325 + $0x10] sm:$0xff]
        %v4329 = vld [vmem:[%s4325 + $0x18] sm:$0xff]
        %v4330 = vld [vmem:[%s4325 + $0x20] sm:$0xff]
        %v4331 = vld [vmem:[%s4325 + $0x28] sm:$0xff]
        %v4332 = vld [vmem:[%s4325 + $0x30] sm:$0xff]
        %v4333 = vld [vmem:[%s4325 + $0x38] sm:$0xff]
        %v4334 = vld [vmem:[%s4325 + $0x40] sm:$0xff]
        %v4335 = vld [vmem:[%s4325 + $0x48] sm:$0xff]
        %v4336 = vld [vmem:[%s4325 + $0x50] sm:$0xff]
        %v4337 = vld [vmem:[%s4325 + $0x58] sm:$0xff]
        %v4338 = vld [vmem:[%s4325 + $0x60] sm:$0xff]
        %v4339 = vld [vmem:[%s4325 + $0x68] sm:$0xff]
        %v4340 = vld [vmem:[%s4325 + $0x70] sm:$0xff]
        %v4341 = vld [vmem:[%s4325 + $0x78] sm:$0xff]
        %v4342 = vrot.slane %v4326, 6
        %v4343 = vrot.slane %v4327, 6
        %v4344 = vrot.slane %v4328, 6
        %v4345 = vrot.slane %v4329, 6
        %v4346 = vrot.slane %v4330, 6
        %v4347 = vrot.slane %v4331, 6
        %v4348 = vrot.slane %v4332, 6
        %v4349 = vrot.slane %v4333, 6
        %v4350 = vrot.slane %v4334, 6
        %v4351 = vrot.slane %v4335, 6
        %v4352 = vrot.slane %v4336, 6
        %v4353 = vrot.slane %v4337, 6
        %v4354 = vrot.slane %v4338, 6
        %v4355 = vrot.slane %v4339, 6
        %v4356 = vrot.slane %v4340, 6
        %v4357 = vrot.slane %v4341, 6
        %v4358 = vsel %vm1782, %v4350, %v4354
        %v4359 = vsel %vm1782, %v4351, %v4355
        %v4360 = vsel %vm1782, %v4352, %v4356
        %v4361 = vsel %vm1782, %v4353, %v4357
        %v4362 = vsel %vm1782, %v4346, %v4350
        %v4363 = vsel %vm1782, %v4347, %v4351
        %v4364 = vsel %vm1782, %v4348, %v4352
        %v4365 = vsel %vm1782, %v4349, %v4353
        %v4366 = vsel %vm1782, %v4342, %v4346
        %v4367 = vsel %vm1782, %v4343, %v4347
        %v4368 = vsel %vm1782, %v4344, %v4348
        %v4369 = vsel %vm1782, %v4345, %v4349
        %v4370 = vsel %vm1782, %v4354, %v4342
        %v4371 = vsel %vm1782, %v4355, %v4343
        %v4372 = vsel %vm1782, %v4356, %v4344
        %v4373 = vsel %vm1782, %v4357, %v4345
        %v4374 = vmul.f32 %v4370, %v3822
        %v4375 = vmul.f32 %v4371, %v3823
        %v4376 = vmul.f32 %v4372, %v3824
        %v4377 = vmul.f32 %v4373, %v3825
        %v4378 = vmul.f32 %v4366, %v3826
        %v4379 = vmul.f32 %v4367, %v3827
        %v4380 = vmul.f32 %v4368, %v3828
        %v4381 = vmul.f32 %v4369, %v3829
        %v4382 = vmul.f32 %v4362, %v3830
        %v4383 = vmul.f32 %v4363, %v3831
        %v4384 = vmul.f32 %v4364, %v3832
        %v4385 = vmul.f32 %v4365, %v3833
        %v4386 = vmul.f32 %v4358, %v3834
        %v4387 = vmul.f32 %v4359, %v3835
        %v4388 = vmul.f32 %v4360, %v3836
        %v4389 = vmul.f32 %v4361, %v3837
        %v4390 = vadd.f32 %v4306, %v4374
        %v4391 = vadd.f32 %v4307, %v4375
        %v4392 = vadd.f32 %v4308, %v4376
        %v4393 = vadd.f32 %v4309, %v4377
        %v4394 = vadd.f32 %v4310, %v4378
        %v4395 = vadd.f32 %v4311, %v4379
        %v4396 = vadd.f32 %v4312, %v4380
        %v4397 = vadd.f32 %v4313, %v4381
        %v4398 = vadd.f32 %v4314, %v4382
        %v4399 = vadd.f32 %v4315, %v4383
        %v4400 = vadd.f32 %v4316, %v4384
        %v4401 = vadd.f32 %v4317, %v4385
        %v4402 = vadd.f32 %v4318, %v4386
        %v4403 = vadd.f32 %v4319, %v4387
        %v4404 = vadd.f32 %v4320, %v4388
        %v4405 = vadd.f32 %v4321, %v4389
        %v4406 = vrot.slane %v4326, 7
        %v4407 = vrot.slane %v4327, 7
        %v4408 = vrot.slane %v4328, 7
        %v4409 = vrot.slane %v4329, 7
        %v4410 = vrot.slane %v4330, 7
        %v4411 = vrot.slane %v4331, 7
        %v4412 = vrot.slane %v4332, 7
        %v4413 = vrot.slane %v4333, 7
        %v4414 = vrot.slane %v4334, 7
        %v4415 = vrot.slane %v4335, 7
        %v4416 = vrot.slane %v4336, 7
        %v4417 = vrot.slane %v4337, 7
        %v4418 = vrot.slane %v4338, 7
        %v4419 = vrot.slane %v4339, 7
        %v4420 = vrot.slane %v4340, 7
        %v4421 = vrot.slane %v4341, 7
        %v4422 = vsel %vm1847, %v4414, %v4418
        %v4423 = vsel %vm1847, %v4415, %v4419
        %v4424 = vsel %vm1847, %v4416, %v4420
        %v4425 = vsel %vm1847, %v4417, %v4421
        %v4426 = vsel %vm1847, %v4410, %v4414
        %v4427 = vsel %vm1847, %v4411, %v4415
        %v4428 = vsel %vm1847, %v4412, %v4416
        %v4429 = vsel %vm1847, %v4413, %v4417
        %v4430 = vsel %vm1847, %v4406, %v4410
        %v4431 = vsel %vm1847, %v4407, %v4411
        %v4432 = vsel %vm1847, %v4408, %v4412
        %v4433 = vsel %vm1847, %v4409, %v4413
        %v4434 = vsel %vm1847, %v4418, %v4406
        %v4435 = vsel %vm1847, %v4419, %v4407
        %v4436 = vsel %vm1847, %v4420, %v4408
        %v4437 = vsel %vm1847, %v4421, %v4409
        %v4438 = vmul.f32 %v4434, %v3935
        %v4439 = vmul.f32 %v4435, %v3936
        %v4440 = vmul.f32 %v4436, %v3937
        %v4441 = vmul.f32 %v4437, %v3938
        %v4442 = vmul.f32 %v4430, %v3939
        %v4443 = vmul.f32 %v4431, %v3940
        %v4444 = vmul.f32 %v4432, %v3941
        %v4445 = vmul.f32 %v4433, %v3942
        %v4446 = vmul.f32 %v4426, %v3943
        %v4447 = vmul.f32 %v4427, %v3944
        %v4448 = vmul.f32 %v4428, %v3945
        %v4449 = vmul.f32 %v4429, %v3946
        %v4450 = vmul.f32 %v4422, %v3947
        %v4451 = vmul.f32 %v4423, %v3948
        %v4452 = vmul.f32 %v4424, %v3949
        %v4453 = vmul.f32 %v4425, %v3950
        %v4454 = vadd.f32 %v4390, %v4438
        %v4455 = vadd.f32 %v4391, %v4439
        %v4456 = vadd.f32 %v4392, %v4440
        %v4457 = vadd.f32 %v4393, %v4441
        %v4458 = vadd.f32 %v4394, %v4442
        %v4459 = vadd.f32 %v4395, %v4443
        %v4460 = vadd.f32 %v4396, %v4444
        %v4461 = vadd.f32 %v4397, %v4445
        %v4462 = vadd.f32 %v4398, %v4446
        %v4463 = vadd.f32 %v4399, %v4447
        %v4464 = vadd.f32 %v4400, %v4448
        %v4465 = vadd.f32 %v4401, %v4449
        %v4466 = vadd.f32 %v4402, %v4450
        %v4467 = vadd.f32 %v4403, %v4451
        %v4468 = vadd.f32 %v4404, %v4452
        %v4469 = vadd.f32 %v4405, %v4453
        %v4470 = vmul.f32 %v4326, %v4016
        %v4471 = vmul.f32 %v4327, %v4017
        %v4472 = vmul.f32 %v4328, %v4018
        %v4473 = vmul.f32 %v4329, %v4019
        %v4474 = vmul.f32 %v4330, %v4020
        %v4475 = vmul.f32 %v4331, %v4021
        %v4476 = vmul.f32 %v4332, %v4022
        %v4477 = vmul.f32 %v4333, %v4023
        %v4478 = vmul.f32 %v4334, %v4024
        %v4479 = vmul.f32 %v4335, %v4025
        %v4480 = vmul.f32 %v4336, %v4026
        %v4481 = vmul.f32 %v4337, %v4027
        %v4482 = vmul.f32 %v4338, %v4028
        %v4483 = vmul.f32 %v4339, %v4029
        %v4484 = vmul.f32 %v4340, %v4030
        %v4485 = vmul.f32 %v4341, %v4031
        %v4486 = vadd.f32 %v4454, %v4470
        %v4487 = vadd.f32 %v4455, %v4471
        %v4488 = vadd.f32 %v4456, %v4472
        %v4489 = vadd.f32 %v4457, %v4473
        %v4490 = vadd.f32 %v4458, %v4474
        %v4491 = vadd.f32 %v4459, %v4475
        %v4492 = vadd.f32 %v4460, %v4476
        %v4493 = vadd.f32 %v4461, %v4477
        %v4494 = vadd.f32 %v4462, %v4478
        %v4495 = vadd.f32 %v4463, %v4479
        %v4496 = vadd.f32 %v4464, %v4480
        %v4497 = vadd.f32 %v4465, %v4481
        %v4498 = vadd.f32 %v4466, %v4482
        %v4499 = vadd.f32 %v4467, %v4483
        %v4500 = vadd.f32 %v4468, %v4484
        %v4501 = vadd.f32 %v4469, %v4485
        %v4502 = vrot.slane %v4326, 1
        %v4503 = vrot.slane %v4327, 1
        %v4504 = vrot.slane %v4328, 1
        %v4505 = vrot.slane %v4329, 1
        %v4506 = vrot.slane %v4330, 1
        %v4507 = vrot.slane %v4331, 1
        %v4508 = vrot.slane %v4332, 1
        %v4509 = vrot.slane %v4333, 1
        %v4510 = vrot.slane %v4334, 1
        %v4511 = vrot.slane %v4335, 1
        %v4512 = vrot.slane %v4336, 1
        %v4513 = vrot.slane %v4337, 1
        %v4514 = vrot.slane %v4338, 1
        %v4515 = vrot.slane %v4339, 1
        %v4516 = vrot.slane %v4340, 1
        %v4517 = vrot.slane %v4341, 1
        %v4518 = vsel %vm1978, %v4510, %v4514
        %v4519 = vsel %vm1978, %v4511, %v4515
        %v4520 = vsel %vm1978, %v4512, %v4516
        %v4521 = vsel %vm1978, %v4513, %v4517
        %v4522 = vsel %vm1978, %v4506, %v4510
        %v4523 = vsel %vm1978, %v4507, %v4511
        %v4524 = vsel %vm1978, %v4508, %v4512
        %v4525 = vsel %vm1978, %v4509, %v4513
        %v4526 = vsel %vm1978, %v4502, %v4506
        %v4527 = vsel %vm1978, %v4503, %v4507
        %v4528 = vsel %vm1978, %v4504, %v4508
        %v4529 = vsel %vm1978, %v4505, %v4509
        %v4530 = vsel %vm1978, %v4514, %v4502
        %v4531 = vsel %vm1978, %v4515, %v4503
        %v4532 = vsel %vm1978, %v4516, %v4504
        %v4533 = vsel %vm1978, %v4517, %v4505
        %v4534 = vmul.f32 %v4526, %v4129
        %v4535 = vmul.f32 %v4527, %v4130
        %v4536 = vmul.f32 %v4528, %v4131
        %v4537 = vmul.f32 %v4529, %v4132
        %v4538 = vmul.f32 %v4522, %v4133
        %v4539 = vmul.f32 %v4523, %v4134
        %v4540 = vmul.f32 %v4524, %v4135
        %v4541 = vmul.f32 %v4525, %v4136
        %v4542 = vmul.f32 %v4518, %v4137
        %v4543 = vmul.f32 %v4519, %v4138
        %v4544 = vmul.f32 %v4520, %v4139
        %v4545 = vmul.f32 %v4521, %v4140
        %v4546 = vmul.f32 %v4530, %v4141
        %v4547 = vmul.f32 %v4531, %v4142
        %v4548 = vmul.f32 %v4532, %v4143
        %v4549 = vmul.f32 %v4533, %v4144
        %v4550 = vadd.f32 %v4486, %v4534
        %v4551 = vadd.f32 %v4487, %v4535
        %v4552 = vadd.f32 %v4488, %v4536
        %v4553 = vadd.f32 %v4489, %v4537
        %v4554 = vadd.f32 %v4490, %v4538
        %v4555 = vadd.f32 %v4491, %v4539
        %v4556 = vadd.f32 %v4492, %v4540
        %v4557 = vadd.f32 %v4493, %v4541
        %v4558 = vadd.f32 %v4494, %v4542
        %v4559 = vadd.f32 %v4495, %v4543
        %v4560 = vadd.f32 %v4496, %v4544
        %v4561 = vadd.f32 %v4497, %v4545
        %v4562 = vadd.f32 %v4498, %v4546
        %v4563 = vadd.f32 %v4499, %v4547
        %v4564 = vadd.f32 %v4500, %v4548
        %v4565 = vadd.f32 %v4501, %v4549
        %v4566 = vrot.slane %v4326, 2
        %v4567 = vrot.slane %v4327, 2
        %v4568 = vrot.slane %v4328, 2
        %v4569 = vrot.slane %v4329, 2
        %v4570 = vrot.slane %v4330, 2
        %v4571 = vrot.slane %v4331, 2
        %v4572 = vrot.slane %v4332, 2
        %v4573 = vrot.slane %v4333, 2
        %v4574 = vrot.slane %v4334, 2
        %v4575 = vrot.slane %v4335, 2
        %v4576 = vrot.slane %v4336, 2
        %v4577 = vrot.slane %v4337, 2
        %v4578 = vrot.slane %v4338, 2
        %v4579 = vrot.slane %v4339, 2
        %v4580 = vrot.slane %v4340, 2
        %v4581 = vrot.slane %v4341, 2
        %v4582 = vsel %vm2060, %v4574, %v4578
        %v4583 = vsel %vm2060, %v4575, %v4579
        %v4584 = vsel %vm2060, %v4576, %v4580
        %v4585 = vsel %vm2060, %v4577, %v4581
        %v4586 = vsel %vm2060, %v4570, %v4574
        %v4587 = vsel %vm2060, %v4571, %v4575
        %v4588 = vsel %vm2060, %v4572, %v4576
        %v4589 = vsel %vm2060, %v4573, %v4577
        %v4590 = vsel %vm2060, %v4566, %v4570
        %v4591 = vsel %vm2060, %v4567, %v4571
        %v4592 = vsel %vm2060, %v4568, %v4572
        %v4593 = vsel %vm2060, %v4569, %v4573
        %v4594 = vsel %vm2060, %v4578, %v4566
        %v4595 = vsel %vm2060, %v4579, %v4567
        %v4596 = vsel %vm2060, %v4580, %v4568
        %v4597 = vsel %vm2060, %v4581, %v4569
        %v4598 = vmul.f32 %v4590, %v4242
        %v4599 = vmul.f32 %v4591, %v4243
        %v4600 = vmul.f32 %v4592, %v4244
        %v4601 = vmul.f32 %v4593, %v4245
        %v4602 = vmul.f32 %v4586, %v4246
        %v4603 = vmul.f32 %v4587, %v4247
        %v4604 = vmul.f32 %v4588, %v4248
        %v4605 = vmul.f32 %v4589, %v4249
        %v4606 = vmul.f32 %v4582, %v4250
        %v4607 = vmul.f32 %v4583, %v4251
        %v4608 = vmul.f32 %v4584, %v4252
        %v4609 = vmul.f32 %v4585, %v4253
        %v4610 = vmul.f32 %v4594, %v4254
        %v4611 = vmul.f32 %v4595, %v4255
        %v4612 = vmul.f32 %v4596, %v4256
        %v4613 = vmul.f32 %v4597, %v4257
        %v4614 = vadd.f32 %v4550, %v4598
        %v4615 = vadd.f32 %v4551, %v4599
        %v4616 = vadd.f32 %v4552, %v4600
        %v4617 = vadd.f32 %v4553, %v4601
        %v4618 = vadd.f32 %v4554, %v4602
        %v4619 = vadd.f32 %v4555, %v4603
        %v4620 = vadd.f32 %v4556, %v4604
        %v4621 = vadd.f32 %v4557, %v4605
        %v4622 = vadd.f32 %v4558, %v4606
        %v4623 = vadd.f32 %v4559, %v4607
        %v4624 = vadd.f32 %v4560, %v4608
        %v4625 = vadd.f32 %v4561, %v4609
        %v4626 = vadd.f32 %v4562, %v4610
        %v4627 = vadd.f32 %v4563, %v4611
        %v4628 = vadd.f32 %v4564, %v4612
        %v4629 = vadd.f32 %v4565, %v4613
        %s4630 = smul.u32 %s1743, 16
        %s4631 = smul.addr %s4630, 8
        %s4632 = scalar_lea.vmem %s167, %s4631
        %4633 = vst [vmem:[%s4632] sm:$0xff] %v4274
        %4634 = vst [vmem:[%s4632 + $0x8] sm:$0xff] %v4275
        %4635 = vst [vmem:[%s4632 + $0x10] sm:$0xff] %v4276
        %vm4636 = vcmask 785408
        %4637 = vst.msk [vmem:[%s4632 + $0x18] sm:$0xff] %vm4636, %v4277
        %4638 = vst [vmem:[%s4632 + $0x20] sm:$0xff] %v4278
        %4639 = vst [vmem:[%s4632 + $0x28] sm:$0xff] %v4279
        %4640 = vst [vmem:[%s4632 + $0x30] sm:$0xff] %v4280
        %4641 = vst.msk [vmem:[%s4632 + $0x38] sm:$0xff] %vm4636, %v4281
        %4642 = vst [vmem:[%s4632 + $0x40] sm:$0xff] %v4282
        %4643 = vst [vmem:[%s4632 + $0x48] sm:$0xff] %v4283
        %4644 = vst [vmem:[%s4632 + $0x50] sm:$0xff] %v4284
        %4645 = vst.msk [vmem:[%s4632 + $0x58] sm:$0xff] %vm4636, %v4285
        %4646 = vst [vmem:[%s4632 + $0x60] sm:$0xf] %v4286
        %4647 = vst [vmem:[%s4632 + $0x68] sm:$0xf] %v4287
        %4648 = vst [vmem:[%s4632 + $0x70] sm:$0xf] %v4288
        %vm4649 = vcmask 781312
        %4650 = vst.msk [vmem:[%s4632 + $0x78] sm:$0xf] %vm4649, %v4289
        %s4651 = sadd.s32 %s1743, 1
        %s4652 = smul.u32 %s4651, 16
        %s4653 = smul.addr %s4652, 8
        %s4654 = scalar_lea.vmem %s167, %s4653
        %4655 = vst [vmem:[%s4654] sm:$0xff] %v4614
        %4656 = vst [vmem:[%s4654 + $0x8] sm:$0xff] %v4615
        %4657 = vst [vmem:[%s4654 + $0x10] sm:$0xff] %v4616
        %4658 = vst.msk [vmem:[%s4654 + $0x18] sm:$0xff] %vm4636, %v4617
        %4659 = vst [vmem:[%s4654 + $0x20] sm:$0xff] %v4618
        %4660 = vst [vmem:[%s4654 + $0x28] sm:$0xff] %v4619
        %4661 = vst [vmem:[%s4654 + $0x30] sm:$0xff] %v4620
        %4662 = vst.msk [vmem:[%s4654 + $0x38] sm:$0xff] %vm4636, %v4621
        %4663 = vst [vmem:[%s4654 + $0x40] sm:$0xff] %v4622
        %4664 = vst [vmem:[%s4654 + $0x48] sm:$0xff] %v4623
        %4665 = vst [vmem:[%s4654 + $0x50] sm:$0xff] %v4624
        %4666 = vst.msk [vmem:[%s4654 + $0x58] sm:$0xff] %vm4636, %v4625
        %4667 = vst [vmem:[%s4654 + $0x60] sm:$0xf] %v4626
        %4668 = vst [vmem:[%s4654 + $0x68] sm:$0xf] %v4627
        %4669 = vst [vmem:[%s4654 + $0x70] sm:$0xf] %v4628
        %4670 = vst.msk [vmem:[%s4654 + $0x78] sm:$0xf] %vm4649, %v4629
      $region48: #{tpu_custom_call.1} parent=27 // loop_footer
        %s1742 = sadd.s32 1, %s1738
      $region49: #{tpu_custom_call.1} parent=27 // loop_footer_branch
        %1737 = sbr.rel target = $region45
      $region50: #{tpu_custom_call.1} parent=27 // loop_exit
        _
      %s4671 = smul.u32 14, %s18
      %p4672 = scmp.lt.s32.totalorder %s17, 0
      %s4673 = scalar_select %p4672, %s17, 0
      %p4674 = scmp.lt.s32.totalorder %s4671, 27
      %s4675 = scalar_select %p4674, %s4671, 27
      %s4676 = smul.addr %s4675, 16
      %s4677 = smul.addr %s4673, 448
      %s4678 = sadd.s32 %s4676, %s4677
      %s4679 = smul.addr %s4678, 8
      %s4680 = scalar_lea.vmem %s2, %s4679
      // Predicated region
      $region51: #{tpu_custom_call.1} parent=27 // pred_check
        %p4681 = pneg %p92
      $region52: #{tpu_custom_call.1} parent=27 // pred_check_branch
        %4683 = sbr.rel (%p4681) target = $region54
      $region53: #{tpu_custom_call.1} parent=27 // pred_region
        %s4684 = smul.u32 14, %s18
      $region54: #{tpu_custom_call.1} parent=27 // pred_fallthru
        _
    $region28: #{tpu_custom_call.1} parent=5 // pred_fallthru
      _
    %p4685 = scmp.le.s32.totalorder 2, %s8
    // Predicated region
    $region55: #{tpu_custom_call.1} parent=5 // pred_check
      %p4686 = pneg %p4685
    $region56: #{tpu_custom_call.1} parent=5 // pred_check_branch
      %4688 = sbr.rel (%p4686) target = $region58
    $region57: #{tpu_custom_call.1} parent=5 // pred_region
      %s4689 = ssub.s32 %s8, 2
      // Predicated region
      $region59: #{tpu_custom_call.1} parent=57 // pred_check
        %p4690 = pneg %p98
      $region60: #{tpu_custom_call.1} parent=57 // pred_check_branch
        %4692 = sbr.rel (%p4690) target = $region62
      $region61: #{tpu_custom_call.1} parent=57 // pred_region
        %s4693 = smul.u32 14, %s20
        %p4694 = scmp.lt.s32.totalorder %s19, 0
        %s4695 = scalar_select %p4694, %s19, 0
        %p4696 = scmp.lt.s32.totalorder %s4693, 27
        %s4697 = scalar_select %p4696, %s4693, 27
        %s4698 = smul.addr %s4697, 16
        %s4699 = smul.addr %s4695, 448
        %s4700 = sadd.s32 %s4698, %s4699
        %s4701 = smul.addr %s4700, 8
        %s4702 = scalar_lea.vmem %s2, %s4701
      $region62: #{tpu_custom_call.1} parent=57 // pred_fallthru
        _
    $region58: #{tpu_custom_call.1} parent=5 // pred_fallthru
      _
  $region6: #{tpu_custom_call.1} parent=0 // loop_footer
    %s12 = sadd.s32 1, %s8
  $region7: #{tpu_custom_call.1} parent=0 // loop_footer_branch
    %7 = sbr.rel target = $region3
  $region8: #{tpu_custom_call.1} parent=0 // loop_exit
    _

</llo_original>
